<compile_context>
chip_gen: v7x
topology: tpu7x:2x2x1
jax: 0.10.0
libtpu: 0.0.40
codegen_flags: <defaults>
</compile_context>

<pallas_src>
import functools

import jax
import jax.numpy as jnp
from jax.experimental import pallas as pl
from jax.experimental.pallas import tpu as pltpu

NUM_BN = 20          # bn1..bn20
NUM_HID_FC = 24      # fc2..fc25 (square hidden->hidden layers)
BN_EPS = 1e-5
LEAKY_SLOPE = 0.5

# Keep the hidden->hidden weight stack VMEM-resident below this size; above it,
# stream per-layer weights from HBM through a double-buffered scratch.
_RESIDENT_WH_BYTES = 16 * 1024 * 1024


def _leaky(v):
    # LeakyReLU with slope in (0, 1) == elementwise max(v, slope*v).
    return jnp.maximum(v, LEAKY_SLOPE * v)


def _layer_chain(x_ref, w1_ref, b1_ref, bh_ref, g_ref, be_ref, wo_ref, bo_ref,
                 o_ref, get_w, prefetch, wait):
    """Shared fc/LeakyReLU/BN chain; weight access is abstracted via callbacks."""
    B = x_ref.shape[0]
    inv_b = 1.0 / B
    w_dtype = w1_ref.dtype

    def bn(h, i):
        # Fused training-mode BatchNorm1d: single pass for sum / sum-of-squares,
        # then one FMA per element with folded scale / shift.
        s1 = jnp.sum(h, axis=0, keepdims=True)
        s2 = jnp.sum(h * h, axis=0, keepdims=True)
        mean = s1 * inv_b
        var = jnp.maximum(s2 * inv_b - mean * mean, 0.0)   # clamp cancellation
        scale = g_ref[i, :] * jax.lax.rsqrt(var + BN_EPS)
        shift = be_ref[i, :] - scale * mean
        return h * scale + shift

    # Prefetch fc2's weight while fc1 + bn1 run (no-op on the resident path).
    prefetch(0)

    # fc1 + LeakyReLU + bn1
    h = _leaky(jnp.dot(x_ref[...].astype(w_dtype), w1_ref[...],
                       preferred_element_type=jnp.float32) + b1_ref[0, :])
    h = bn(h, 0)

    # fc2..fc25 (bn2..bn20 on the first 19 of them)
    for l in range(NUM_HID_FC):
        wait(l)
        if l + 1 < NUM_HID_FC:
            prefetch(l + 1)                  # overlap next weight DMA w/ compute
        h = _leaky(jnp.dot(h.astype(w_dtype), get_w(l),
                           preferred_element_type=jnp.float32) + bh_ref[l, :])
        if l + 1 < NUM_BN:                   # bn2..bn20 -> gamma/beta rows 1..19
            h = bn(h, l + 1)

    # fc_out
    out = jnp.dot(h.astype(w_dtype), wo_ref[...],
                  preferred_element_type=jnp.float32) + bo_ref[0, :]
    o_ref[...] = out.astype(o_ref.dtype)


def h_hat_kernel_resident(x_ref, w1_ref, b1_ref, wh_ref, bh_ref, g_ref, be_ref,
                          wo_ref, bo_ref, o_ref):
    """All operands (incl. the [24,H,H] weight stack) live in VMEM."""
    _layer_chain(x_ref, w1_ref, b1_ref, bh_ref, g_ref, be_ref, wo_ref, bo_ref,
                 o_ref,
                 get_w=lambda l: wh_ref[l],
                 prefetch=lambda l: None,
                 wait=lambda l: None)


def h_hat_kernel_stream(x_ref, w1_ref, b1_ref, wh_hbm, bh_ref, g_ref, be_ref,
                        wo_ref, bo_ref, o_ref, wbuf, sem):
    """Weight stack stays in HBM; each layer's [H,H] weight is streamed through
    the double-buffered `wbuf` scratch with manual async DMA."""
    copies = {}

    def prefetch(l):
        slot = l & 1
        cp = pltpu.make_async_copy(wh_hbm.at[l], wbuf.at[slot], sem.at[slot])
        cp.start()
        copies[l] = cp

    _layer_chain(x_ref, w1_ref, b1_ref, bh_ref, g_ref, be_ref, wo_ref, bo_ref,
                 o_ref,
                 get_w=lambda l: wbuf[l & 1],
                 prefetch=prefetch,
                 wait=lambda l: copies[l].wait())


def h_hat_forward(x, params, force_stream=False):
    B, in_dim = x.shape
    H = params["w1"].shape[1]
    out_dim = params["wo"].shape[1]
    w_dtype = params["wh"].dtype
    w_isz = jnp.dtype(w_dtype).itemsize

    wh_bytes = NUM_HID_FC * H * H * w_isz
    stream = force_stream or (wh_bytes > _RESIDENT_WH_BYTES)

    vmem = pl.BlockSpec(memory_space=pltpu.MemorySpace.VMEM)
    hbm = pl.BlockSpec(memory_space=pl.ANY)

    # Advisory cost for XLA's scheduler.
    flops = 2 * B * (in_dim * H + NUM_HID_FC * H * H + H * out_dim)
    bytes_accessed = int(
        x.size * x.dtype.itemsize
        + sum(int(v.size) * jnp.dtype(v.dtype).itemsize for v in params.values())
        + B * out_dim * 4)
    cost = pl.CostEstimate(flops=int(flops),
                           transcendentals=int(NUM_BN * H),
                           bytes_accessed=bytes_accessed)

    # VMEM footprint: resident operands (+ either the whole weight stack or a
    # double-buffered weight tile) + a handful of live [B, H] f32 activations.
    # 2x headroom, clamped to what fits every chip (v7x physical VMEM = 64 MiB).
    resident = (B * in_dim * 4 + (in_dim * H + H * out_dim) * w_isz
                + (1 + NUM_HID_FC + 2 * NUM_BN) * H * 4      # b1, bh, gamma, beta
                + out_dim * 4 + B * out_dim * 4
                + (2 * H * H * w_isz if stream else wh_bytes)
                + 6 * B * H * 4)                             # live activations
    vmem_limit = int(max(32 * 1024 * 1024, min(64 * 1024 * 1024, 2 * resident)))

    if stream:
        kernel = h_hat_kernel_stream
        wh_spec = hbm
        scratch = [pltpu.VMEM((2, H, H), w_dtype),
                   pltpu.SemaphoreType.DMA((2,))]
    else:
        kernel = h_hat_kernel_resident
        wh_spec = vmem
        scratch = []

    return pl.pallas_call(
        kernel,
        out_shape=jax.ShapeDtypeStruct((B, out_dim), jnp.float32),
        in_specs=[vmem, vmem, vmem, wh_spec, vmem, vmem, vmem, vmem, vmem],
        out_specs=vmem,
        scratch_shapes=scratch,
        compiler_params=pltpu.CompilerParams(vmem_limit_bytes=vmem_limit),
        cost_estimate=cost,
    )(x, params["w1"], params["b1"], params["wh"], params["bh"],
      params["gamma"], params["beta"], params["wo"], params["bo"])


def h_hat_reference(x, params):
    """Plain-JAX reference matching the PyTorch forward semantics (f32)."""
    def bn(h, g, b):
        mean = jnp.mean(h, axis=0, keepdims=True)
        var = jnp.mean(jnp.square(h - mean), axis=0, keepdims=True)
        return g * (h - mean) / jnp.sqrt(var + BN_EPS) + b

    def leaky(v):
        return jnp.where(v >= 0.0, v, LEAKY_SLOPE * v)

    h = leaky(x @ params["w1"] + params["b1"][0])
    h = bn(h, params["gamma"][0], params["beta"][0])
    for l in range(NUM_BN - 1):
        h = leaky(h @ params["wh"][l] + params["bh"][l])
        h = bn(h, params["gamma"][l + 1], params["beta"][l + 1])
    for l in range(NUM_BN - 1, NUM_HID_FC):
        h = leaky(h @ params["wh"][l] + params["bh"][l])
    return h @ params["wo"] + params["bo"][0]


def init_params(key, input_dim, hidden_dim, output_dim):
    ks = jax.random.split(key, 8)
    scale = 0.1
    return {
        "w1": scale * jax.random.normal(ks[0], (input_dim, hidden_dim), jnp.float32),
        "b1": scale * jax.random.normal(ks[1], (1, hidden_dim), jnp.float32),
        "wh": scale * jax.random.normal(ks[2], (NUM_HID_FC, hidden_dim, hidden_dim), jnp.float32),
        "bh": scale * jax.random.normal(ks[3], (NUM_HID_FC, hidden_dim), jnp.float32),
        # gamma/beta perturbed away from (1, 0) so BN matters.
        "gamma": 1.0 + 0.1 * jax.random.normal(ks[4], (NUM_BN, hidden_dim), jnp.float32),
        "beta": 0.1 * jax.random.normal(ks[5], (NUM_BN, hidden_dim), jnp.float32),
        "wo": scale * jax.random.normal(ks[6], (hidden_dim, output_dim), jnp.float32),
        "bo": scale * jax.random.normal(ks[7], (1, output_dim), jnp.float32),
    }


def cast_matmul_weights(params, dtype):
    """Pre-cast only the matmul operands (weights); biases/BN params stay f32."""
    p = dict(params)
    for k in ("w1", "wh", "wo"):
        p[k] = params[k].astype(dtype)
    return p


if __name__ == "__main__":
    input_dim, hidden_dim, output_dim = 16, 32, 16
    batch = 8

    key = jax.random.PRNGKey(0)
    k_x, k_p = jax.random.split(key)
    x = jax.random.normal(k_x, (batch, input_dim), jnp.float32)
    params = init_params(k_p, input_dim, hidden_dim, output_dim)

    fwd = jax.jit(h_hat_forward)                                   # resident path
    fwd_stream = jax.jit(functools.partial(h_hat_forward,
                                           force_stream=True))    # streaming path
    ref = h_hat_reference(x, params)

    # f32 matmul path, VMEM-resident weights: tight check against the reference.
    out = jax.block_until_ready(fwd(x, params))
    assert out.shape == (batch, output_dim)
    assert jnp.allclose(out, ref, atol=1e-4, rtol=1e-4), (
        f"f32 resident max abs err {jnp.max(jnp.abs(out - ref))}")

    # f32 matmul path, HBM-streamed weights (manual double-buffered DMA).
    out_s = jax.block_until_ready(fwd_stream(x, params))
    assert out_s.shape == (batch, output_dim)
    assert jnp.allclose(out_s, ref, atol=1e-4, rtol=1e-4), (
        f"f32 streaming max abs err {jnp.max(jnp.abs(out_s - ref))}")

    # bf16 matmul path (native MXU dtype, f32 accumulation): looser tolerance.
    params_bf16 = cast_matmul_weights(params, jnp.bfloat16)
    out_bf16 = jax.block_until_ready(fwd(x, params_bf16))
    assert out_bf16.shape == (batch, output_dim)
    assert bool(jnp.all(jnp.isfinite(out_bf16)))
    assert jnp.allclose(out_bf16, ref, atol=5e-2, rtol=5e-2), (
        f"bf16 max abs err {jnp.max(jnp.abs(out_bf16 - ref))}")

    print("KERNEL_OK")
</pallas_src>

<mosaic_0001>
module attributes {stable_mosaic.version = 11 : i64} {
  func.func @h_hat_kernel_resident(%arg0: memref<8x16xf32, #tpu.memory_space<vmem>>, %arg1: memref<16x32xf32, #tpu.memory_space<vmem>>, %arg2: memref<1x32xf32, #tpu.memory_space<vmem>>, %arg3: memref<24x32x32xf32, #tpu.memory_space<vmem>>, %arg4: memref<24x32xf32, #tpu.memory_space<vmem>>, %arg5: memref<20x32xf32, #tpu.memory_space<vmem>>, %arg6: memref<20x32xf32, #tpu.memory_space<vmem>>, %arg7: memref<32x16xf32, #tpu.memory_space<vmem>>, %arg8: memref<1x16xf32, #tpu.memory_space<vmem>>, %arg9: memref<8x16xf32, #tpu.memory_space<vmem>>) attributes {dimension_semantics = [], scalar_prefetch = 0 : i64, scratch_operands = 0 : i64, tpu.core_type = #tpu.core_type<tc>} {
    %c0 = arith.constant 0 : index
    %c0_0 = arith.constant 0 : index
    %0 = vector.load %arg0[%c0, %c0_0] : memref<8x16xf32, #tpu.memory_space<vmem>>, vector<8x16xf32>
    %c0_1 = arith.constant 0 : index
    %c0_2 = arith.constant 0 : index
    %1 = vector.load %arg1[%c0_1, %c0_2] : memref<16x32xf32, #tpu.memory_space<vmem>>, vector<16x32xf32>
    %cst = arith.constant dense<0.000000e+00> : vector<8x32xf32>
    %2 = tpu.matmul %0, %1, %cst {dimension_numbers = #tpu.dot_dimension_numbers<[1], [0], [0], [1], [0, 0, 1, 1], [], []>} : vector<8x16xf32>, vector<16x32xf32>, vector<8x32xf32> -> vector<8x32xf32>
    %c0_3 = arith.constant 0 : index
    %c0_4 = arith.constant 0 : index
    %3 = vector.load %arg2[%c0_3, %c0_4] : memref<1x32xf32, #tpu.memory_space<vmem>>, vector<1x32xf32>
    %4 = vector.shape_cast %3 : vector<1x32xf32> to vector<32xf32>
    %5 = vector.shape_cast %4 : vector<32xf32> to vector<1x32xf32>
    %6 = vector.broadcast %5 : vector<1x32xf32> to vector<8x32xf32>
    %7 = arith.addf %2, %6 : vector<8x32xf32>
    %cst_5 = arith.constant 5.000000e-01 : f32
    %8 = vector.broadcast %cst_5 : f32 to vector<8x32xf32>
    %9 = arith.mulf %8, %7 : vector<8x32xf32>
    %10 = arith.maximumf %7, %9 : vector<8x32xf32>
    %cst_6 = arith.constant dense<0.000000e+00> : vector<32xf32>
    %11 = vector.multi_reduction <add>, %10, %cst_6 [0] : vector<8x32xf32> to vector<32xf32>
    %12 = vector.shape_cast %11 : vector<32xf32> to vector<1x32xf32>
    %13 = arith.mulf %10, %10 : vector<8x32xf32>
    %cst_7 = arith.constant dense<0.000000e+00> : vector<32xf32>
    %14 = vector.multi_reduction <add>, %13, %cst_7 [0] : vector<8x32xf32> to vector<32xf32>
    %15 = vector.shape_cast %14 : vector<32xf32> to vector<1x32xf32>
    %cst_8 = arith.constant 1.250000e-01 : f32
    %16 = vector.broadcast %cst_8 : f32 to vector<1x32xf32>
    %17 = arith.mulf %12, %16 : vector<1x32xf32>
    %cst_9 = arith.constant 1.250000e-01 : f32
    %18 = vector.broadcast %cst_9 : f32 to vector<1x32xf32>
    %19 = arith.mulf %15, %18 : vector<1x32xf32>
    %20 = arith.mulf %17, %17 : vector<1x32xf32>
    %21 = arith.subf %19, %20 : vector<1x32xf32>
    %cst_10 = arith.constant 0.000000e+00 : f32
    %22 = vector.broadcast %cst_10 : f32 to vector<1x32xf32>
    %23 = arith.maximumf %21, %22 : vector<1x32xf32>
    %c0_11 = arith.constant 0 : index
    %c0_12 = arith.constant 0 : index
    %24 = vector.load %arg5[%c0_11, %c0_12] : memref<20x32xf32, #tpu.memory_space<vmem>>, vector<1x32xf32>
    %25 = vector.shape_cast %24 : vector<1x32xf32> to vector<32xf32>
    %cst_13 = arith.constant 9.99999974E-6 : f32
    %26 = vector.broadcast %cst_13 : f32 to vector<1x32xf32>
    %27 = arith.addf %23, %26 : vector<1x32xf32>
    %28 = math.rsqrt %27 : vector<1x32xf32>
    %29 = vector.shape_cast %25 : vector<32xf32> to vector<1x32xf32>
    %30 = arith.mulf %29, %28 : vector<1x32xf32>
    %c0_14 = arith.constant 0 : index
    %c0_15 = arith.constant 0 : index
    %31 = vector.load %arg6[%c0_14, %c0_15] : memref<20x32xf32, #tpu.memory_space<vmem>>, vector<1x32xf32>
    %32 = vector.shape_cast %31 : vector<1x32xf32> to vector<32xf32>
    %33 = arith.mulf %30, %17 : vector<1x32xf32>
    %34 = vector.shape_cast %32 : vector<32xf32> to vector<1x32xf32>
    %35 = arith.subf %34, %33 : vector<1x32xf32>
    %36 = vector.broadcast %30 : vector<1x32xf32> to vector<8x32xf32>
    %37 = arith.mulf %10, %36 : vector<8x32xf32>
    %38 = vector.broadcast %35 : vector<1x32xf32> to vector<8x32xf32>
    %39 = arith.addf %37, %38 : vector<8x32xf32>
    %c0_16 = arith.constant 0 : index
    %c0_17 = arith.constant 0 : index
    %c0_18 = arith.constant 0 : index
    %40 = vector.load %arg3[%c0_16, %c0_17, %c0_18] : memref<24x32x32xf32, #tpu.memory_space<vmem>>, vector<1x32x32xf32>
    %41 = vector.shape_cast %40 : vector<1x32x32xf32> to vector<32x32xf32>
    %cst_19 = arith.constant dense<0.000000e+00> : vector<8x32xf32>
    %42 = tpu.matmul %39, %41, %cst_19 {dimension_numbers = #tpu.dot_dimension_numbers<[1], [0], [0], [1], [0, 0, 1, 1], [], []>} : vector<8x32xf32>, vector<32x32xf32>, vector<8x32xf32> -> vector<8x32xf32>
    %c0_20 = arith.constant 0 : index
    %c0_21 = arith.constant 0 : index
    %43 = vector.load %arg4[%c0_20, %c0_21] : memref<24x32xf32, #tpu.memory_space<vmem>>, vector<1x32xf32>
    %44 = vector.shape_cast %43 : vector<1x32xf32> to vector<32xf32>
    %45 = vector.shape_cast %44 : vector<32xf32> to vector<1x32xf32>
    %46 = vector.broadcast %45 : vector<1x32xf32> to vector<8x32xf32>
    %47 = arith.addf %42, %46 : vector<8x32xf32>
    %cst_22 = arith.constant 5.000000e-01 : f32
    %48 = vector.broadcast %cst_22 : f32 to vector<8x32xf32>
    %49 = arith.mulf %48, %47 : vector<8x32xf32>
    %50 = arith.maximumf %47, %49 : vector<8x32xf32>
    %cst_23 = arith.constant dense<0.000000e+00> : vector<32xf32>
    %51 = vector.multi_reduction <add>, %50, %cst_23 [0] : vector<8x32xf32> to vector<32xf32>
    %52 = vector.shape_cast %51 : vector<32xf32> to vector<1x32xf32>
    %53 = arith.mulf %50, %50 : vector<8x32xf32>
    %cst_24 = arith.constant dense<0.000000e+00> : vector<32xf32>
    %54 = vector.multi_reduction <add>, %53, %cst_24 [0] : vector<8x32xf32> to vector<32xf32>
    %55 = vector.shape_cast %54 : vector<32xf32> to vector<1x32xf32>
    %cst_25 = arith.constant 1.250000e-01 : f32
    %56 = vector.broadcast %cst_25 : f32 to vector<1x32xf32>
    %57 = arith.mulf %52, %56 : vector<1x32xf32>
    %cst_26 = arith.constant 1.250000e-01 : f32
    %58 = vector.broadcast %cst_26 : f32 to vector<1x32xf32>
    %59 = arith.mulf %55, %58 : vector<1x32xf32>
    %60 = arith.mulf %57, %57 : vector<1x32xf32>
    %61 = arith.subf %59, %60 : vector<1x32xf32>
    %cst_27 = arith.constant 0.000000e+00 : f32
    %62 = vector.broadcast %cst_27 : f32 to vector<1x32xf32>
    %63 = arith.maximumf %61, %62 : vector<1x32xf32>
    %c1 = arith.constant 1 : index
    %c0_28 = arith.constant 0 : index
    %64 = vector.load %arg5[%c1, %c0_28] : memref<20x32xf32, #tpu.memory_space<vmem>>, vector<1x32xf32>
    %65 = vector.shape_cast %64 : vector<1x32xf32> to vector<32xf32>
    %cst_29 = arith.constant 9.99999974E-6 : f32
    %66 = vector.broadcast %cst_29 : f32 to vector<1x32xf32>
    %67 = arith.addf %63, %66 : vector<1x32xf32>
    %68 = math.rsqrt %67 : vector<1x32xf32>
    %69 = vector.shape_cast %65 : vector<32xf32> to vector<1x32xf32>
    %70 = arith.mulf %69, %68 : vector<1x32xf32>
    %c1_30 = arith.constant 1 : index
    %c0_31 = arith.constant 0 : index
    %71 = vector.load %arg6[%c1_30, %c0_31] : memref<20x32xf32, #tpu.memory_space<vmem>>, vector<1x32xf32>
    %72 = vector.shape_cast %71 : vector<1x32xf32> to vector<32xf32>
    %73 = arith.mulf %70, %57 : vector<1x32xf32>
    %74 = vector.shape_cast %72 : vector<32xf32> to vector<1x32xf32>
    %75 = arith.subf %74, %73 : vector<1x32xf32>
    %76 = vector.broadcast %70 : vector<1x32xf32> to vector<8x32xf32>
    %77 = arith.mulf %50, %76 : vector<8x32xf32>
    %78 = vector.broadcast %75 : vector<1x32xf32> to vector<8x32xf32>
    %79 = arith.addf %77, %78 : vector<8x32xf32>
    %c1_32 = arith.constant 1 : index
    %c0_33 = arith.constant 0 : index
    %c0_34 = arith.constant 0 : index
    %80 = vector.load %arg3[%c1_32, %c0_33, %c0_34] : memref<24x32x32xf32, #tpu.memory_space<vmem>>, vector<1x32x32xf32>
    %81 = vector.shape_cast %80 : vector<1x32x32xf32> to vector<32x32xf32>
    %cst_35 = arith.constant dense<0.000000e+00> : vector<8x32xf32>
    %82 = tpu.matmul %79, %81, %cst_35 {dimension_numbers = #tpu.dot_dimension_numbers<[1], [0], [0], [1], [0, 0, 1, 1], [], []>} : vector<8x32xf32>, vector<32x32xf32>, vector<8x32xf32> -> vector<8x32xf32>
    %c1_36 = arith.constant 1 : index
    %c0_37 = arith.constant 0 : index
    %83 = vector.load %arg4[%c1_36, %c0_37] : memref<24x32xf32, #tpu.memory_space<vmem>>, vector<1x32xf32>
    %84 = vector.shape_cast %83 : vector<1x32xf32> to vector<32xf32>
    %85 = vector.shape_cast %84 : vector<32xf32> to vector<1x32xf32>
    %86 = vector.broadcast %85 : vector<1x32xf32> to vector<8x32xf32>
    %87 = arith.addf %82, %86 : vector<8x32xf32>
    %cst_38 = arith.constant 5.000000e-01 : f32
    %88 = vector.broadcast %cst_38 : f32 to vector<8x32xf32>
    %89 = arith.mulf %88, %87 : vector<8x32xf32>
    %90 = arith.maximumf %87, %89 : vector<8x32xf32>
    %cst_39 = arith.constant dense<0.000000e+00> : vector<32xf32>
    %91 = vector.multi_reduction <add>, %90, %cst_39 [0] : vector<8x32xf32> to vector<32xf32>
    %92 = vector.shape_cast %91 : vector<32xf32> to vector<1x32xf32>
    %93 = arith.mulf %90, %90 : vector<8x32xf32>
    %cst_40 = arith.constant dense<0.000000e+00> : vector<32xf32>
    %94 = vector.multi_reduction <add>, %93, %cst_40 [0] : vector<8x32xf32> to vector<32xf32>
    %95 = vector.shape_cast %94 : vector<32xf32> to vector<1x32xf32>
    %cst_41 = arith.constant 1.250000e-01 : f32
    %96 = vector.broadcast %cst_41 : f32 to vector<1x32xf32>
    %97 = arith.mulf %92, %96 : vector<1x32xf32>
    %cst_42 = arith.constant 1.250000e-01 : f32
    %98 = vector.broadcast %cst_42 : f32 to vector<1x32xf32>
    %99 = arith.mulf %95, %98 : vector<1x32xf32>
    %100 = arith.mulf %97, %97 : vector<1x32xf32>
    %101 = arith.subf %99, %100 : vector<1x32xf32>
    %cst_43 = arith.constant 0.000000e+00 : f32
    %102 = vector.broadcast %cst_43 : f32 to vector<1x32xf32>
    %103 = arith.maximumf %101, %102 : vector<1x32xf32>
    %c2 = arith.constant 2 : index
    %c0_44 = arith.constant 0 : index
    %104 = vector.load %arg5[%c2, %c0_44] : memref<20x32xf32, #tpu.memory_space<vmem>>, vector<1x32xf32>
    %105 = vector.shape_cast %104 : vector<1x32xf32> to vector<32xf32>
    %cst_45 = arith.constant 9.99999974E-6 : f32
    %106 = vector.broadcast %cst_45 : f32 to vector<1x32xf32>
    %107 = arith.addf %103, %106 : vector<1x32xf32>
    %108 = math.rsqrt %107 : vector<1x32xf32>
    %109 = vector.shape_cast %105 : vector<32xf32> to vector<1x32xf32>
    %110 = arith.mulf %109, %108 : vector<1x32xf32>
    %c2_46 = arith.constant 2 : index
    %c0_47 = arith.constant 0 : index
    %111 = vector.load %arg6[%c2_46, %c0_47] : memref<20x32xf32, #tpu.memory_space<vmem>>, vector<1x32xf32>
    %112 = vector.shape_cast %111 : vector<1x32xf32> to vector<32xf32>
    %113 = arith.mulf %110, %97 : vector<1x32xf32>
    %114 = vector.shape_cast %112 : vector<32xf32> to vector<1x32xf32>
    %115 = arith.subf %114, %113 : vector<1x32xf32>
    %116 = vector.broadcast %110 : vector<1x32xf32> to vector<8x32xf32>
    %117 = arith.mulf %90, %116 : vector<8x32xf32>
    %118 = vector.broadcast %115 : vector<1x32xf32> to vector<8x32xf32>
    %119 = arith.addf %117, %118 : vector<8x32xf32>
    %c2_48 = arith.constant 2 : index
    %c0_49 = arith.constant 0 : index
    %c0_50 = arith.constant 0 : index
    %120 = vector.load %arg3[%c2_48, %c0_49, %c0_50] : memref<24x32x32xf32, #tpu.memory_space<vmem>>, vector<1x32x32xf32>
    %121 = vector.shape_cast %120 : vector<1x32x32xf32> to vector<32x32xf32>
    %cst_51 = arith.constant dense<0.000000e+00> : vector<8x32xf32>
    %122 = tpu.matmul %119, %121, %cst_51 {dimension_numbers = #tpu.dot_dimension_numbers<[1], [0], [0], [1], [0, 0, 1, 1], [], []>} : vector<8x32xf32>, vector<32x32xf32>, vector<8x32xf32> -> vector<8x32xf32>
    %c2_52 = arith.constant 2 : index
    %c0_53 = arith.constant 0 : index
    %123 = vector.load %arg4[%c2_52, %c0_53] : memref<24x32xf32, #tpu.memory_space<vmem>>, vector<1x32xf32>
    %124 = vector.shape_cast %123 : vector<1x32xf32> to vector<32xf32>
    %125 = vector.shape_cast %124 : vector<32xf32> to vector<1x32xf32>
    %126 = vector.broadcast %125 : vector<1x32xf32> to vector<8x32xf32>
    %127 = arith.addf %122, %126 : vector<8x32xf32>
    %cst_54 = arith.constant 5.000000e-01 : f32
    %128 = vector.broadcast %cst_54 : f32 to vector<8x32xf32>
    %129 = arith.mulf %128, %127 : vector<8x32xf32>
    %130 = arith.maximumf %127, %129 : vector<8x32xf32>
    %cst_55 = arith.constant dense<0.000000e+00> : vector<32xf32>
    %131 = vector.multi_reduction <add>, %130, %cst_55 [0] : vector<8x32xf32> to vector<32xf32>
    %132 = vector.shape_cast %131 : vector<32xf32> to vector<1x32xf32>
    %133 = arith.mulf %130, %130 : vector<8x32xf32>
    %cst_56 = arith.constant dense<0.000000e+00> : vector<32xf32>
    %134 = vector.multi_reduction <add>, %133, %cst_56 [0] : vector<8x32xf32> to vector<32xf32>
    %135 = vector.shape_cast %134 : vector<32xf32> to vector<1x32xf32>
    %cst_57 = arith.constant 1.250000e-01 : f32
    %136 = vector.broadcast %cst_57 : f32 to vector<1x32xf32>
    %137 = arith.mulf %132, %136 : vector<1x32xf32>
    %cst_58 = arith.constant 1.250000e-01 : f32
    %138 = vector.broadcast %cst_58 : f32 to vector<1x32xf32>
    %139 = arith.mulf %135, %138 : vector<1x32xf32>
    %140 = arith.mulf %137, %137 : vector<1x32xf32>
    %141 = arith.subf %139, %140 : vector<1x32xf32>
    %cst_59 = arith.constant 0.000000e+00 : f32
    %142 = vector.broadcast %cst_59 : f32 to vector<1x32xf32>
    %143 = arith.maximumf %141, %142 : vector<1x32xf32>
    %c3 = arith.constant 3 : index
    %c0_60 = arith.constant 0 : index
    %144 = vector.load %arg5[%c3, %c0_60] : memref<20x32xf32, #tpu.memory_space<vmem>>, vector<1x32xf32>
    %145 = vector.shape_cast %144 : vector<1x32xf32> to vector<32xf32>
    %cst_61 = arith.constant 9.99999974E-6 : f32
    %146 = vector.broadcast %cst_61 : f32 to vector<1x32xf32>
    %147 = arith.addf %143, %146 : vector<1x32xf32>
    %148 = math.rsqrt %147 : vector<1x32xf32>
    %149 = vector.shape_cast %145 : vector<32xf32> to vector<1x32xf32>
    %150 = arith.mulf %149, %148 : vector<1x32xf32>
    %c3_62 = arith.constant 3 : index
    %c0_63 = arith.constant 0 : index
    %151 = vector.load %arg6[%c3_62, %c0_63] : memref<20x32xf32, #tpu.memory_space<vmem>>, vector<1x32xf32>
    %152 = vector.shape_cast %151 : vector<1x32xf32> to vector<32xf32>
    %153 = arith.mulf %150, %137 : vector<1x32xf32>
    %154 = vector.shape_cast %152 : vector<32xf32> to vector<1x32xf32>
    %155 = arith.subf %154, %153 : vector<1x32xf32>
    %156 = vector.broadcast %150 : vector<1x32xf32> to vector<8x32xf32>
    %157 = arith.mulf %130, %156 : vector<8x32xf32>
    %158 = vector.broadcast %155 : vector<1x32xf32> to vector<8x32xf32>
    %159 = arith.addf %157, %158 : vector<8x32xf32>
    %c3_64 = arith.constant 3 : index
    %c0_65 = arith.constant 0 : index
    %c0_66 = arith.constant 0 : index
    %160 = vector.load %arg3[%c3_64, %c0_65, %c0_66] : memref<24x32x32xf32, #tpu.memory_space<vmem>>, vector<1x32x32xf32>
    %161 = vector.shape_cast %160 : vector<1x32x32xf32> to vector<32x32xf32>
    %cst_67 = arith.constant dense<0.000000e+00> : vector<8x32xf32>
    %162 = tpu.matmul %159, %161, %cst_67 {dimension_numbers = #tpu.dot_dimension_numbers<[1], [0], [0], [1], [0, 0, 1, 1], [], []>} : vector<8x32xf32>, vector<32x32xf32>, vector<8x32xf32> -> vector<8x32xf32>
    %c3_68 = arith.constant 3 : index
    %c0_69 = arith.constant 0 : index
    %163 = vector.load %arg4[%c3_68, %c0_69] : memref<24x32xf32, #tpu.memory_space<vmem>>, vector<1x32xf32>
    %164 = vector.shape_cast %163 : vector<1x32xf32> to vector<32xf32>
    %165 = vector.shape_cast %164 : vector<32xf32> to vector<1x32xf32>
    %166 = vector.broadcast %165 : vector<1x32xf32> to vector<8x32xf32>
    %167 = arith.addf %162, %166 : vector<8x32xf32>
    %cst_70 = arith.constant 5.000000e-01 : f32
    %168 = vector.broadcast %cst_70 : f32 to vector<8x32xf32>
    %169 = arith.mulf %168, %167 : vector<8x32xf32>
    %170 = arith.maximumf %167, %169 : vector<8x32xf32>
    %cst_71 = arith.constant dense<0.000000e+00> : vector<32xf32>
    %171 = vector.multi_reduction <add>, %170, %cst_71 [0] : vector<8x32xf32> to vector<32xf32>
    %172 = vector.shape_cast %171 : vector<32xf32> to vector<1x32xf32>
    %173 = arith.mulf %170, %170 : vector<8x32xf32>
    %cst_72 = arith.constant dense<0.000000e+00> : vector<32xf32>
    %174 = vector.multi_reduction <add>, %173, %cst_72 [0] : vector<8x32xf32> to vector<32xf32>
    %175 = vector.shape_cast %174 : vector<32xf32> to vector<1x32xf32>
    %cst_73 = arith.constant 1.250000e-01 : f32
    %176 = vector.broadcast %cst_73 : f32 to vector<1x32xf32>
    %177 = arith.mulf %172, %176 : vector<1x32xf32>
    %cst_74 = arith.constant 1.250000e-01 : f32
    %178 = vector.broadcast %cst_74 : f32 to vector<1x32xf32>
    %179 = arith.mulf %175, %178 : vector<1x32xf32>
    %180 = arith.mulf %177, %177 : vector<1x32xf32>
    %181 = arith.subf %179, %180 : vector<1x32xf32>
    %cst_75 = arith.constant 0.000000e+00 : f32
    %182 = vector.broadcast %cst_75 : f32 to vector<1x32xf32>
    %183 = arith.maximumf %181, %182 : vector<1x32xf32>
    %c4 = arith.constant 4 : index
    %c0_76 = arith.constant 0 : index
    %184 = vector.load %arg5[%c4, %c0_76] : memref<20x32xf32, #tpu.memory_space<vmem>>, vector<1x32xf32>
    %185 = vector.shape_cast %184 : vector<1x32xf32> to vector<32xf32>
    %cst_77 = arith.constant 9.99999974E-6 : f32
    %186 = vector.broadcast %cst_77 : f32 to vector<1x32xf32>
    %187 = arith.addf %183, %186 : vector<1x32xf32>
    %188 = math.rsqrt %187 : vector<1x32xf32>
    %189 = vector.shape_cast %185 : vector<32xf32> to vector<1x32xf32>
    %190 = arith.mulf %189, %188 : vector<1x32xf32>
    %c4_78 = arith.constant 4 : index
    %c0_79 = arith.constant 0 : index
    %191 = vector.load %arg6[%c4_78, %c0_79] : memref<20x32xf32, #tpu.memory_space<vmem>>, vector<1x32xf32>
    %192 = vector.shape_cast %191 : vector<1x32xf32> to vector<32xf32>
    %193 = arith.mulf %190, %177 : vector<1x32xf32>
    %194 = vector.shape_cast %192 : vector<32xf32> to vector<1x32xf32>
    %195 = arith.subf %194, %193 : vector<1x32xf32>
    %196 = vector.broadcast %190 : vector<1x32xf32> to vector<8x32xf32>
    %197 = arith.mulf %170, %196 : vector<8x32xf32>
    %198 = vector.broadcast %195 : vector<1x32xf32> to vector<8x32xf32>
    %199 = arith.addf %197, %198 : vector<8x32xf32>
    %c4_80 = arith.constant 4 : index
    %c0_81 = arith.constant 0 : index
    %c0_82 = arith.constant 0 : index
    %200 = vector.load %arg3[%c4_80, %c0_81, %c0_82] : memref<24x32x32xf32, #tpu.memory_space<vmem>>, vector<1x32x32xf32>
    %201 = vector.shape_cast %200 : vector<1x32x32xf32> to vector<32x32xf32>
    %cst_83 = arith.constant dense<0.000000e+00> : vector<8x32xf32>
    %202 = tpu.matmul %199, %201, %cst_83 {dimension_numbers = #tpu.dot_dimension_numbers<[1], [0], [0], [1], [0, 0, 1, 1], [], []>} : vector<8x32xf32>, vector<32x32xf32>, vector<8x32xf32> -> vector<8x32xf32>
    %c4_84 = arith.constant 4 : index
    %c0_85 = arith.constant 0 : index
    %203 = vector.load %arg4[%c4_84, %c0_85] : memref<24x32xf32, #tpu.memory_space<vmem>>, vector<1x32xf32>
    %204 = vector.shape_cast %203 : vector<1x32xf32> to vector<32xf32>
    %205 = vector.shape_cast %204 : vector<32xf32> to vector<1x32xf32>
    %206 = vector.broadcast %205 : vector<1x32xf32> to vector<8x32xf32>
    %207 = arith.addf %202, %206 : vector<8x32xf32>
    %cst_86 = arith.constant 5.000000e-01 : f32
    %208 = vector.broadcast %cst_86 : f32 to vector<8x32xf32>
    %209 = arith.mulf %208, %207 : vector<8x32xf32>
    %210 = arith.maximumf %207, %209 : vector<8x32xf32>
    %cst_87 = arith.constant dense<0.000000e+00> : vector<32xf32>
    %211 = vector.multi_reduction <add>, %210, %cst_87 [0] : vector<8x32xf32> to vector<32xf32>
    %212 = vector.shape_cast %211 : vector<32xf32> to vector<1x32xf32>
    %213 = arith.mulf %210, %210 : vector<8x32xf32>
    %cst_88 = arith.constant dense<0.000000e+00> : vector<32xf32>
    %214 = vector.multi_reduction <add>, %213, %cst_88 [0] : vector<8x32xf32> to vector<32xf32>
    %215 = vector.shape_cast %214 : vector<32xf32> to vector<1x32xf32>
    %cst_89 = arith.constant 1.250000e-01 : f32
    %216 = vector.broadcast %cst_89 : f32 to vector<1x32xf32>
    %217 = arith.mulf %212, %216 : vector<1x32xf32>
    %cst_90 = arith.constant 1.250000e-01 : f32
    %218 = vector.broadcast %cst_90 : f32 to vector<1x32xf32>
    %219 = arith.mulf %215, %218 : vector<1x32xf32>
    %220 = arith.mulf %217, %217 : vector<1x32xf32>
    %221 = arith.subf %219, %220 : vector<1x32xf32>
    %cst_91 = arith.constant 0.000000e+00 : f32
    %222 = vector.broadcast %cst_91 : f32 to vector<1x32xf32>
    %223 = arith.maximumf %221, %222 : vector<1x32xf32>
    %c5 = arith.constant 5 : index
    %c0_92 = arith.constant 0 : index
    %224 = vector.load %arg5[%c5, %c0_92] : memref<20x32xf32, #tpu.memory_space<vmem>>, vector<1x32xf32>
    %225 = vector.shape_cast %224 : vector<1x32xf32> to vector<32xf32>
    %cst_93 = arith.constant 9.99999974E-6 : f32
    %226 = vector.broadcast %cst_93 : f32 to vector<1x32xf32>
    %227 = arith.addf %223, %226 : vector<1x32xf32>
    %228 = math.rsqrt %227 : vector<1x32xf32>
    %229 = vector.shape_cast %225 : vector<32xf32> to vector<1x32xf32>
    %230 = arith.mulf %229, %228 : vector<1x32xf32>
    %c5_94 = arith.constant 5 : index
    %c0_95 = arith.constant 0 : index
    %231 = vector.load %arg6[%c5_94, %c0_95] : memref<20x32xf32, #tpu.memory_space<vmem>>, vector<1x32xf32>
    %232 = vector.shape_cast %231 : vector<1x32xf32> to vector<32xf32>
    %233 = arith.mulf %230, %217 : vector<1x32xf32>
    %234 = vector.shape_cast %232 : vector<32xf32> to vector<1x32xf32>
    %235 = arith.subf %234, %233 : vector<1x32xf32>
    %236 = vector.broadcast %230 : vector<1x32xf32> to vector<8x32xf32>
    %237 = arith.mulf %210, %236 : vector<8x32xf32>
    %238 = vector.broadcast %235 : vector<1x32xf32> to vector<8x32xf32>
    %239 = arith.addf %237, %238 : vector<8x32xf32>
    %c5_96 = arith.constant 5 : index
    %c0_97 = arith.constant 0 : index
    %c0_98 = arith.constant 0 : index
    %240 = vector.load %arg3[%c5_96, %c0_97, %c0_98] : memref<24x32x32xf32, #tpu.memory_space<vmem>>, vector<1x32x32xf32>
    %241 = vector.shape_cast %240 : vector<1x32x32xf32> to vector<32x32xf32>
    %cst_99 = arith.constant dense<0.000000e+00> : vector<8x32xf32>
    %242 = tpu.matmul %239, %241, %cst_99 {dimension_numbers = #tpu.dot_dimension_numbers<[1], [0], [0], [1], [0, 0, 1, 1], [], []>} : vector<8x32xf32>, vector<32x32xf32>, vector<8x32xf32> -> vector<8x32xf32>
    %c5_100 = arith.constant 5 : index
    %c0_101 = arith.constant 0 : index
    %243 = vector.load %arg4[%c5_100, %c0_101] : memref<24x32xf32, #tpu.memory_space<vmem>>, vector<1x32xf32>
    %244 = vector.shape_cast %243 : vector<1x32xf32> to vector<32xf32>
    %245 = vector.shape_cast %244 : vector<32xf32> to vector<1x32xf32>
    %246 = vector.broadcast %245 : vector<1x32xf32> to vector<8x32xf32>
    %247 = arith.addf %242, %246 : vector<8x32xf32>
    %cst_102 = arith.constant 5.000000e-01 : f32
    %248 = vector.broadcast %cst_102 : f32 to vector<8x32xf32>
    %249 = arith.mulf %248, %247 : vector<8x32xf32>
    %250 = arith.maximumf %247, %249 : vector<8x32xf32>
    %cst_103 = arith.constant dense<0.000000e+00> : vector<32xf32>
    %251 = vector.multi_reduction <add>, %250, %cst_103 [0] : vector<8x32xf32> to vector<32xf32>
    %252 = vector.shape_cast %251 : vector<32xf32> to vector<1x32xf32>
    %253 = arith.mulf %250, %250 : vector<8x32xf32>
    %cst_104 = arith.constant dense<0.000000e+00> : vector<32xf32>
    %254 = vector.multi_reduction <add>, %253, %cst_104 [0] : vector<8x32xf32> to vector<32xf32>
    %255 = vector.shape_cast %254 : vector<32xf32> to vector<1x32xf32>
    %cst_105 = arith.constant 1.250000e-01 : f32
    %256 = vector.broadcast %cst_105 : f32 to vector<1x32xf32>
    %257 = arith.mulf %252, %256 : vector<1x32xf32>
    %cst_106 = arith.constant 1.250000e-01 : f32
    %258 = vector.broadcast %cst_106 : f32 to vector<1x32xf32>
    %259 = arith.mulf %255, %258 : vector<1x32xf32>
    %260 = arith.mulf %257, %257 : vector<1x32xf32>
    %261 = arith.subf %259, %260 : vector<1x32xf32>
    %cst_107 = arith.constant 0.000000e+00 : f32
    %262 = vector.broadcast %cst_107 : f32 to vector<1x32xf32>
    %263 = arith.maximumf %261, %262 : vector<1x32xf32>
    %c6 = arith.constant 6 : index
    %c0_108 = arith.constant 0 : index
    %264 = vector.load %arg5[%c6, %c0_108] : memref<20x32xf32, #tpu.memory_space<vmem>>, vector<1x32xf32>
    %265 = vector.shape_cast %264 : vector<1x32xf32> to vector<32xf32>
    %cst_109 = arith.constant 9.99999974E-6 : f32
    %266 = vector.broadcast %cst_109 : f32 to vector<1x32xf32>
    %267 = arith.addf %263, %266 : vector<1x32xf32>
    %268 = math.rsqrt %267 : vector<1x32xf32>
    %269 = vector.shape_cast %265 : vector<32xf32> to vector<1x32xf32>
    %270 = arith.mulf %269, %268 : vector<1x32xf32>
    %c6_110 = arith.constant 6 : index
    %c0_111 = arith.constant 0 : index
    %271 = vector.load %arg6[%c6_110, %c0_111] : memref<20x32xf32, #tpu.memory_space<vmem>>, vector<1x32xf32>
    %272 = vector.shape_cast %271 : vector<1x32xf32> to vector<32xf32>
    %273 = arith.mulf %270, %257 : vector<1x32xf32>
    %274 = vector.shape_cast %272 : vector<32xf32> to vector<1x32xf32>
    %275 = arith.subf %274, %273 : vector<1x32xf32>
    %276 = vector.broadcast %270 : vector<1x32xf32> to vector<8x32xf32>
    %277 = arith.mulf %250, %276 : vector<8x32xf32>
    %278 = vector.broadcast %275 : vector<1x32xf32> to vector<8x32xf32>
    %279 = arith.addf %277, %278 : vector<8x32xf32>
    %c6_112 = arith.constant 6 : index
    %c0_113 = arith.constant 0 : index
    %c0_114 = arith.constant 0 : index
    %280 = vector.load %arg3[%c6_112, %c0_113, %c0_114] : memref<24x32x32xf32, #tpu.memory_space<vmem>>, vector<1x32x32xf32>
    %281 = vector.shape_cast %280 : vector<1x32x32xf32> to vector<32x32xf32>
    %cst_115 = arith.constant dense<0.000000e+00> : vector<8x32xf32>
    %282 = tpu.matmul %279, %281, %cst_115 {dimension_numbers = #tpu.dot_dimension_numbers<[1], [0], [0], [1], [0, 0, 1, 1], [], []>} : vector<8x32xf32>, vector<32x32xf32>, vector<8x32xf32> -> vector<8x32xf32>
    %c6_116 = arith.constant 6 : index
    %c0_117 = arith.constant 0 : index
    %283 = vector.load %arg4[%c6_116, %c0_117] : memref<24x32xf32, #tpu.memory_space<vmem>>, vector<1x32xf32>
    %284 = vector.shape_cast %283 : vector<1x32xf32> to vector<32xf32>
    %285 = vector.shape_cast %284 : vector<32xf32> to vector<1x32xf32>
    %286 = vector.broadcast %285 : vector<1x32xf32> to vector<8x32xf32>
    %287 = arith.addf %282, %286 : vector<8x32xf32>
    %cst_118 = arith.constant 5.000000e-01 : f32
    %288 = vector.broadcast %cst_118 : f32 to vector<8x32xf32>
    %289 = arith.mulf %288, %287 : vector<8x32xf32>
    %290 = arith.maximumf %287, %289 : vector<8x32xf32>
    %cst_119 = arith.constant dense<0.000000e+00> : vector<32xf32>
    %291 = vector.multi_reduction <add>, %290, %cst_119 [0] : vector<8x32xf32> to vector<32xf32>
    %292 = vector.shape_cast %291 : vector<32xf32> to vector<1x32xf32>
    %293 = arith.mulf %290, %290 : vector<8x32xf32>
    %cst_120 = arith.constant dense<0.000000e+00> : vector<32xf32>
    %294 = vector.multi_reduction <add>, %293, %cst_120 [0] : vector<8x32xf32> to vector<32xf32>
    %295 = vector.shape_cast %294 : vector<32xf32> to vector<1x32xf32>
    %cst_121 = arith.constant 1.250000e-01 : f32
    %296 = vector.broadcast %cst_121 : f32 to vector<1x32xf32>
    %297 = arith.mulf %292, %296 : vector<1x32xf32>
    %cst_122 = arith.constant 1.250000e-01 : f32
    %298 = vector.broadcast %cst_122 : f32 to vector<1x32xf32>
    %299 = arith.mulf %295, %298 : vector<1x32xf32>
    %300 = arith.mulf %297, %297 : vector<1x32xf32>
    %301 = arith.subf %299, %300 : vector<1x32xf32>
    %cst_123 = arith.constant 0.000000e+00 : f32
    %302 = vector.broadcast %cst_123 : f32 to vector<1x32xf32>
    %303 = arith.maximumf %301, %302 : vector<1x32xf32>
    %c7 = arith.constant 7 : index
    %c0_124 = arith.constant 0 : index
    %304 = vector.load %arg5[%c7, %c0_124] : memref<20x32xf32, #tpu.memory_space<vmem>>, vector<1x32xf32>
    %305 = vector.shape_cast %304 : vector<1x32xf32> to vector<32xf32>
    %cst_125 = arith.constant 9.99999974E-6 : f32
    %306 = vector.broadcast %cst_125 : f32 to vector<1x32xf32>
    %307 = arith.addf %303, %306 : vector<1x32xf32>
    %308 = math.rsqrt %307 : vector<1x32xf32>
    %309 = vector.shape_cast %305 : vector<32xf32> to vector<1x32xf32>
    %310 = arith.mulf %309, %308 : vector<1x32xf32>
    %c7_126 = arith.constant 7 : index
    %c0_127 = arith.constant 0 : index
    %311 = vector.load %arg6[%c7_126, %c0_127] : memref<20x32xf32, #tpu.memory_space<vmem>>, vector<1x32xf32>
    %312 = vector.shape_cast %311 : vector<1x32xf32> to vector<32xf32>
    %313 = arith.mulf %310, %297 : vector<1x32xf32>
    %314 = vector.shape_cast %312 : vector<32xf32> to vector<1x32xf32>
    %315 = arith.subf %314, %313 : vector<1x32xf32>
    %316 = vector.broadcast %310 : vector<1x32xf32> to vector<8x32xf32>
    %317 = arith.mulf %290, %316 : vector<8x32xf32>
    %318 = vector.broadcast %315 : vector<1x32xf32> to vector<8x32xf32>
    %319 = arith.addf %317, %318 : vector<8x32xf32>
    %c7_128 = arith.constant 7 : index
    %c0_129 = arith.constant 0 : index
    %c0_130 = arith.constant 0 : index
    %320 = vector.load %arg3[%c7_128, %c0_129, %c0_130] : memref<24x32x32xf32, #tpu.memory_space<vmem>>, vector<1x32x32xf32>
    %321 = vector.shape_cast %320 : vector<1x32x32xf32> to vector<32x32xf32>
    %cst_131 = arith.constant dense<0.000000e+00> : vector<8x32xf32>
    %322 = tpu.matmul %319, %321, %cst_131 {dimension_numbers = #tpu.dot_dimension_numbers<[1], [0], [0], [1], [0, 0, 1, 1], [], []>} : vector<8x32xf32>, vector<32x32xf32>, vector<8x32xf32> -> vector<8x32xf32>
    %c7_132 = arith.constant 7 : index
    %c0_133 = arith.constant 0 : index
    %323 = vector.load %arg4[%c7_132, %c0_133] : memref<24x32xf32, #tpu.memory_space<vmem>>, vector<1x32xf32>
    %324 = vector.shape_cast %323 : vector<1x32xf32> to vector<32xf32>
    %325 = vector.shape_cast %324 : vector<32xf32> to vector<1x32xf32>
    %326 = vector.broadcast %325 : vector<1x32xf32> to vector<8x32xf32>
    %327 = arith.addf %322, %326 : vector<8x32xf32>
    %cst_134 = arith.constant 5.000000e-01 : f32
    %328 = vector.broadcast %cst_134 : f32 to vector<8x32xf32>
    %329 = arith.mulf %328, %327 : vector<8x32xf32>
    %330 = arith.maximumf %327, %329 : vector<8x32xf32>
    %cst_135 = arith.constant dense<0.000000e+00> : vector<32xf32>
    %331 = vector.multi_reduction <add>, %330, %cst_135 [0] : vector<8x32xf32> to vector<32xf32>
    %332 = vector.shape_cast %331 : vector<32xf32> to vector<1x32xf32>
    %333 = arith.mulf %330, %330 : vector<8x32xf32>
    %cst_136 = arith.constant dense<0.000000e+00> : vector<32xf32>
    %334 = vector.multi_reduction <add>, %333, %cst_136 [0] : vector<8x32xf32> to vector<32xf32>
    %335 = vector.shape_cast %334 : vector<32xf32> to vector<1x32xf32>
    %cst_137 = arith.constant 1.250000e-01 : f32
    %336 = vector.broadcast %cst_137 : f32 to vector<1x32xf32>
    %337 = arith.mulf %332, %336 : vector<1x32xf32>
    %cst_138 = arith.constant 1.250000e-01 : f32
    %338 = vector.broadcast %cst_138 : f32 to vector<1x32xf32>
    %339 = arith.mulf %335, %338 : vector<1x32xf32>
    %340 = arith.mulf %337, %337 : vector<1x32xf32>
    %341 = arith.subf %339, %340 : vector<1x32xf32>
    %cst_139 = arith.constant 0.000000e+00 : f32
    %342 = vector.broadcast %cst_139 : f32 to vector<1x32xf32>
    %343 = arith.maximumf %341, %342 : vector<1x32xf32>
    %c8 = arith.constant 8 : index
    %c0_140 = arith.constant 0 : index
    %344 = vector.load %arg5[%c8, %c0_140] : memref<20x32xf32, #tpu.memory_space<vmem>>, vector<1x32xf32>
    %345 = vector.shape_cast %344 : vector<1x32xf32> to vector<32xf32>
    %cst_141 = arith.constant 9.99999974E-6 : f32
    %346 = vector.broadcast %cst_141 : f32 to vector<1x32xf32>
    %347 = arith.addf %343, %346 : vector<1x32xf32>
    %348 = math.rsqrt %347 : vector<1x32xf32>
    %349 = vector.shape_cast %345 : vector<32xf32> to vector<1x32xf32>
    %350 = arith.mulf %349, %348 : vector<1x32xf32>
    %c8_142 = arith.constant 8 : index
    %c0_143 = arith.constant 0 : index
    %351 = vector.load %arg6[%c8_142, %c0_143] : memref<20x32xf32, #tpu.memory_space<vmem>>, vector<1x32xf32>
    %352 = vector.shape_cast %351 : vector<1x32xf32> to vector<32xf32>
    %353 = arith.mulf %350, %337 : vector<1x32xf32>
    %354 = vector.shape_cast %352 : vector<32xf32> to vector<1x32xf32>
    %355 = arith.subf %354, %353 : vector<1x32xf32>
    %356 = vector.broadcast %350 : vector<1x32xf32> to vector<8x32xf32>
    %357 = arith.mulf %330, %356 : vector<8x32xf32>
    %358 = vector.broadcast %355 : vector<1x32xf32> to vector<8x32xf32>
    %359 = arith.addf %357, %358 : vector<8x32xf32>
    %c8_144 = arith.constant 8 : index
    %c0_145 = arith.constant 0 : index
    %c0_146 = arith.constant 0 : index
    %360 = vector.load %arg3[%c8_144, %c0_145, %c0_146] : memref<24x32x32xf32, #tpu.memory_space<vmem>>, vector<1x32x32xf32>
    %361 = vector.shape_cast %360 : vector<1x32x32xf32> to vector<32x32xf32>
    %cst_147 = arith.constant dense<0.000000e+00> : vector<8x32xf32>
    %362 = tpu.matmul %359, %361, %cst_147 {dimension_numbers = #tpu.dot_dimension_numbers<[1], [0], [0], [1], [0, 0, 1, 1], [], []>} : vector<8x32xf32>, vector<32x32xf32>, vector<8x32xf32> -> vector<8x32xf32>
    %c8_148 = arith.constant 8 : index
    %c0_149 = arith.constant 0 : index
    %363 = vector.load %arg4[%c8_148, %c0_149] : memref<24x32xf32, #tpu.memory_space<vmem>>, vector<1x32xf32>
    %364 = vector.shape_cast %363 : vector<1x32xf32> to vector<32xf32>
    %365 = vector.shape_cast %364 : vector<32xf32> to vector<1x32xf32>
    %366 = vector.broadcast %365 : vector<1x32xf32> to vector<8x32xf32>
    %367 = arith.addf %362, %366 : vector<8x32xf32>
    %cst_150 = arith.constant 5.000000e-01 : f32
    %368 = vector.broadcast %cst_150 : f32 to vector<8x32xf32>
    %369 = arith.mulf %368, %367 : vector<8x32xf32>
    %370 = arith.maximumf %367, %369 : vector<8x32xf32>
    %cst_151 = arith.constant dense<0.000000e+00> : vector<32xf32>
    %371 = vector.multi_reduction <add>, %370, %cst_151 [0] : vector<8x32xf32> to vector<32xf32>
    %372 = vector.shape_cast %371 : vector<32xf32> to vector<1x32xf32>
    %373 = arith.mulf %370, %370 : vector<8x32xf32>
    %cst_152 = arith.constant dense<0.000000e+00> : vector<32xf32>
    %374 = vector.multi_reduction <add>, %373, %cst_152 [0] : vector<8x32xf32> to vector<32xf32>
    %375 = vector.shape_cast %374 : vector<32xf32> to vector<1x32xf32>
    %cst_153 = arith.constant 1.250000e-01 : f32
    %376 = vector.broadcast %cst_153 : f32 to vector<1x32xf32>
    %377 = arith.mulf %372, %376 : vector<1x32xf32>
    %cst_154 = arith.constant 1.250000e-01 : f32
    %378 = vector.broadcast %cst_154 : f32 to vector<1x32xf32>
    %379 = arith.mulf %375, %378 : vector<1x32xf32>
    %380 = arith.mulf %377, %377 : vector<1x32xf32>
    %381 = arith.subf %379, %380 : vector<1x32xf32>
    %cst_155 = arith.constant 0.000000e+00 : f32
    %382 = vector.broadcast %cst_155 : f32 to vector<1x32xf32>
    %383 = arith.maximumf %381, %382 : vector<1x32xf32>
    %c9 = arith.constant 9 : index
    %c0_156 = arith.constant 0 : index
    %384 = vector.load %arg5[%c9, %c0_156] : memref<20x32xf32, #tpu.memory_space<vmem>>, vector<1x32xf32>
    %385 = vector.shape_cast %384 : vector<1x32xf32> to vector<32xf32>
    %cst_157 = arith.constant 9.99999974E-6 : f32
    %386 = vector.broadcast %cst_157 : f32 to vector<1x32xf32>
    %387 = arith.addf %383, %386 : vector<1x32xf32>
    %388 = math.rsqrt %387 : vector<1x32xf32>
    %389 = vector.shape_cast %385 : vector<32xf32> to vector<1x32xf32>
    %390 = arith.mulf %389, %388 : vector<1x32xf32>
    %c9_158 = arith.constant 9 : index
    %c0_159 = arith.constant 0 : index
    %391 = vector.load %arg6[%c9_158, %c0_159] : memref<20x32xf32, #tpu.memory_space<vmem>>, vector<1x32xf32>
    %392 = vector.shape_cast %391 : vector<1x32xf32> to vector<32xf32>
    %393 = arith.mulf %390, %377 : vector<1x32xf32>
    %394 = vector.shape_cast %392 : vector<32xf32> to vector<1x32xf32>
    %395 = arith.subf %394, %393 : vector<1x32xf32>
    %396 = vector.broadcast %390 : vector<1x32xf32> to vector<8x32xf32>
    %397 = arith.mulf %370, %396 : vector<8x32xf32>
    %398 = vector.broadcast %395 : vector<1x32xf32> to vector<8x32xf32>
    %399 = arith.addf %397, %398 : vector<8x32xf32>
    %c9_160 = arith.constant 9 : index
    %c0_161 = arith.constant 0 : index
    %c0_162 = arith.constant 0 : index
    %400 = vector.load %arg3[%c9_160, %c0_161, %c0_162] : memref<24x32x32xf32, #tpu.memory_space<vmem>>, vector<1x32x32xf32>
    %401 = vector.shape_cast %400 : vector<1x32x32xf32> to vector<32x32xf32>
    %cst_163 = arith.constant dense<0.000000e+00> : vector<8x32xf32>
    %402 = tpu.matmul %399, %401, %cst_163 {dimension_numbers = #tpu.dot_dimension_numbers<[1], [0], [0], [1], [0, 0, 1, 1], [], []>} : vector<8x32xf32>, vector<32x32xf32>, vector<8x32xf32> -> vector<8x32xf32>
    %c9_164 = arith.constant 9 : index
    %c0_165 = arith.constant 0 : index
    %403 = vector.load %arg4[%c9_164, %c0_165] : memref<24x32xf32, #tpu.memory_space<vmem>>, vector<1x32xf32>
    %404 = vector.shape_cast %403 : vector<1x32xf32> to vector<32xf32>
    %405 = vector.shape_cast %404 : vector<32xf32> to vector<1x32xf32>
    %406 = vector.broadcast %405 : vector<1x32xf32> to vector<8x32xf32>
    %407 = arith.addf %402, %406 : vector<8x32xf32>
    %cst_166 = arith.constant 5.000000e-01 : f32
    %408 = vector.broadcast %cst_166 : f32 to vector<8x32xf32>
    %409 = arith.mulf %408, %407 : vector<8x32xf32>
    %410 = arith.maximumf %407, %409 : vector<8x32xf32>
    %cst_167 = arith.constant dense<0.000000e+00> : vector<32xf32>
    %411 = vector.multi_reduction <add>, %410, %cst_167 [0] : vector<8x32xf32> to vector<32xf32>
    %412 = vector.shape_cast %411 : vector<32xf32> to vector<1x32xf32>
    %413 = arith.mulf %410, %410 : vector<8x32xf32>
    %cst_168 = arith.constant dense<0.000000e+00> : vector<32xf32>
    %414 = vector.multi_reduction <add>, %413, %cst_168 [0] : vector<8x32xf32> to vector<32xf32>
    %415 = vector.shape_cast %414 : vector<32xf32> to vector<1x32xf32>
    %cst_169 = arith.constant 1.250000e-01 : f32
    %416 = vector.broadcast %cst_169 : f32 to vector<1x32xf32>
    %417 = arith.mulf %412, %416 : vector<1x32xf32>
    %cst_170 = arith.constant 1.250000e-01 : f32
    %418 = vector.broadcast %cst_170 : f32 to vector<1x32xf32>
    %419 = arith.mulf %415, %418 : vector<1x32xf32>
    %420 = arith.mulf %417, %417 : vector<1x32xf32>
    %421 = arith.subf %419, %420 : vector<1x32xf32>
    %cst_171 = arith.constant 0.000000e+00 : f32
    %422 = vector.broadcast %cst_171 : f32 to vector<1x32xf32>
    %423 = arith.maximumf %421, %422 : vector<1x32xf32>
    %c10 = arith.constant 10 : index
    %c0_172 = arith.constant 0 : index
    %424 = vector.load %arg5[%c10, %c0_172] : memref<20x32xf32, #tpu.memory_space<vmem>>, vector<1x32xf32>
    %425 = vector.shape_cast %424 : vector<1x32xf32> to vector<32xf32>
    %cst_173 = arith.constant 9.99999974E-6 : f32
    %426 = vector.broadcast %cst_173 : f32 to vector<1x32xf32>
    %427 = arith.addf %423, %426 : vector<1x32xf32>
    %428 = math.rsqrt %427 : vector<1x32xf32>
    %429 = vector.shape_cast %425 : vector<32xf32> to vector<1x32xf32>
    %430 = arith.mulf %429, %428 : vector<1x32xf32>
    %c10_174 = arith.constant 10 : index
    %c0_175 = arith.constant 0 : index
    %431 = vector.load %arg6[%c10_174, %c0_175] : memref<20x32xf32, #tpu.memory_space<vmem>>, vector<1x32xf32>
    %432 = vector.shape_cast %431 : vector<1x32xf32> to vector<32xf32>
    %433 = arith.mulf %430, %417 : vector<1x32xf32>
    %434 = vector.shape_cast %432 : vector<32xf32> to vector<1x32xf32>
    %435 = arith.subf %434, %433 : vector<1x32xf32>
    %436 = vector.broadcast %430 : vector<1x32xf32> to vector<8x32xf32>
    %437 = arith.mulf %410, %436 : vector<8x32xf32>
    %438 = vector.broadcast %435 : vector<1x32xf32> to vector<8x32xf32>
    %439 = arith.addf %437, %438 : vector<8x32xf32>
    %c10_176 = arith.constant 10 : index
    %c0_177 = arith.constant 0 : index
    %c0_178 = arith.constant 0 : index
    %440 = vector.load %arg3[%c10_176, %c0_177, %c0_178] : memref<24x32x32xf32, #tpu.memory_space<vmem>>, vector<1x32x32xf32>
    %441 = vector.shape_cast %440 : vector<1x32x32xf32> to vector<32x32xf32>
    %cst_179 = arith.constant dense<0.000000e+00> : vector<8x32xf32>
    %442 = tpu.matmul %439, %441, %cst_179 {dimension_numbers = #tpu.dot_dimension_numbers<[1], [0], [0], [1], [0, 0, 1, 1], [], []>} : vector<8x32xf32>, vector<32x32xf32>, vector<8x32xf32> -> vector<8x32xf32>
    %c10_180 = arith.constant 10 : index
    %c0_181 = arith.constant 0 : index
    %443 = vector.load %arg4[%c10_180, %c0_181] : memref<24x32xf32, #tpu.memory_space<vmem>>, vector<1x32xf32>
    %444 = vector.shape_cast %443 : vector<1x32xf32> to vector<32xf32>
    %445 = vector.shape_cast %444 : vector<32xf32> to vector<1x32xf32>
    %446 = vector.broadcast %445 : vector<1x32xf32> to vector<8x32xf32>
    %447 = arith.addf %442, %446 : vector<8x32xf32>
    %cst_182 = arith.constant 5.000000e-01 : f32
    %448 = vector.broadcast %cst_182 : f32 to vector<8x32xf32>
    %449 = arith.mulf %448, %447 : vector<8x32xf32>
    %450 = arith.maximumf %447, %449 : vector<8x32xf32>
    %cst_183 = arith.constant dense<0.000000e+00> : vector<32xf32>
    %451 = vector.multi_reduction <add>, %450, %cst_183 [0] : vector<8x32xf32> to vector<32xf32>
    %452 = vector.shape_cast %451 : vector<32xf32> to vector<1x32xf32>
    %453 = arith.mulf %450, %450 : vector<8x32xf32>
    %cst_184 = arith.constant dense<0.000000e+00> : vector<32xf32>
    %454 = vector.multi_reduction <add>, %453, %cst_184 [0] : vector<8x32xf32> to vector<32xf32>
    %455 = vector.shape_cast %454 : vector<32xf32> to vector<1x32xf32>
    %cst_185 = arith.constant 1.250000e-01 : f32
    %456 = vector.broadcast %cst_185 : f32 to vector<1x32xf32>
    %457 = arith.mulf %452, %456 : vector<1x32xf32>
    %cst_186 = arith.constant 1.250000e-01 : f32
    %458 = vector.broadcast %cst_186 : f32 to vector<1x32xf32>
    %459 = arith.mulf %455, %458 : vector<1x32xf32>
    %460 = arith.mulf %457, %457 : vector<1x32xf32>
    %461 = arith.subf %459, %460 : vector<1x32xf32>
    %cst_187 = arith.constant 0.000000e+00 : f32
    %462 = vector.broadcast %cst_187 : f32 to vector<1x32xf32>
    %463 = arith.maximumf %461, %462 : vector<1x32xf32>
    %c11 = arith.constant 11 : index
    %c0_188 = arith.constant 0 : index
    %464 = vector.load %arg5[%c11, %c0_188] : memref<20x32xf32, #tpu.memory_space<vmem>>, vector<1x32xf32>
    %465 = vector.shape_cast %464 : vector<1x32xf32> to vector<32xf32>
    %cst_189 = arith.constant 9.99999974E-6 : f32
    %466 = vector.broadcast %cst_189 : f32 to vector<1x32xf32>
    %467 = arith.addf %463, %466 : vector<1x32xf32>
    %468 = math.rsqrt %467 : vector<1x32xf32>
    %469 = vector.shape_cast %465 : vector<32xf32> to vector<1x32xf32>
    %470 = arith.mulf %469, %468 : vector<1x32xf32>
    %c11_190 = arith.constant 11 : index
    %c0_191 = arith.constant 0 : index
    %471 = vector.load %arg6[%c11_190, %c0_191] : memref<20x32xf32, #tpu.memory_space<vmem>>, vector<1x32xf32>
    %472 = vector.shape_cast %471 : vector<1x32xf32> to vector<32xf32>
    %473 = arith.mulf %470, %457 : vector<1x32xf32>
    %474 = vector.shape_cast %472 : vector<32xf32> to vector<1x32xf32>
    %475 = arith.subf %474, %473 : vector<1x32xf32>
    %476 = vector.broadcast %470 : vector<1x32xf32> to vector<8x32xf32>
    %477 = arith.mulf %450, %476 : vector<8x32xf32>
    %478 = vector.broadcast %475 : vector<1x32xf32> to vector<8x32xf32>
    %479 = arith.addf %477, %478 : vector<8x32xf32>
    %c11_192 = arith.constant 11 : index
    %c0_193 = arith.constant 0 : index
    %c0_194 = arith.constant 0 : index
    %480 = vector.load %arg3[%c11_192, %c0_193, %c0_194] : memref<24x32x32xf32, #tpu.memory_space<vmem>>, vector<1x32x32xf32>
    %481 = vector.shape_cast %480 : vector<1x32x32xf32> to vector<32x32xf32>
    %cst_195 = arith.constant dense<0.000000e+00> : vector<8x32xf32>
    %482 = tpu.matmul %479, %481, %cst_195 {dimension_numbers = #tpu.dot_dimension_numbers<[1], [0], [0], [1], [0, 0, 1, 1], [], []>} : vector<8x32xf32>, vector<32x32xf32>, vector<8x32xf32> -> vector<8x32xf32>
    %c11_196 = arith.constant 11 : index
    %c0_197 = arith.constant 0 : index
    %483 = vector.load %arg4[%c11_196, %c0_197] : memref<24x32xf32, #tpu.memory_space<vmem>>, vector<1x32xf32>
    %484 = vector.shape_cast %483 : vector<1x32xf32> to vector<32xf32>
    %485 = vector.shape_cast %484 : vector<32xf32> to vector<1x32xf32>
    %486 = vector.broadcast %485 : vector<1x32xf32> to vector<8x32xf32>
    %487 = arith.addf %482, %486 : vector<8x32xf32>
    %cst_198 = arith.constant 5.000000e-01 : f32
    %488 = vector.broadcast %cst_198 : f32 to vector<8x32xf32>
    %489 = arith.mulf %488, %487 : vector<8x32xf32>
    %490 = arith.maximumf %487, %489 : vector<8x32xf32>
    %cst_199 = arith.constant dense<0.000000e+00> : vector<32xf32>
    %491 = vector.multi_reduction <add>, %490, %cst_199 [0] : vector<8x32xf32> to vector<32xf32>
    %492 = vector.shape_cast %491 : vector<32xf32> to vector<1x32xf32>
    %493 = arith.mulf %490, %490 : vector<8x32xf32>
    %cst_200 = arith.constant dense<0.000000e+00> : vector<32xf32>
    %494 = vector.multi_reduction <add>, %493, %cst_200 [0] : vector<8x32xf32> to vector<32xf32>
    %495 = vector.shape_cast %494 : vector<32xf32> to vector<1x32xf32>
    %cst_201 = arith.constant 1.250000e-01 : f32
    %496 = vector.broadcast %cst_201 : f32 to vector<1x32xf32>
    %497 = arith.mulf %492, %496 : vector<1x32xf32>
    %cst_202 = arith.constant 1.250000e-01 : f32
    %498 = vector.broadcast %cst_202 : f32 to vector<1x32xf32>
    %499 = arith.mulf %495, %498 : vector<1x32xf32>
    %500 = arith.mulf %497, %497 : vector<1x32xf32>
    %501 = arith.subf %499, %500 : vector<1x32xf32>
    %cst_203 = arith.constant 0.000000e+00 : f32
    %502 = vector.broadcast %cst_203 : f32 to vector<1x32xf32>
    %503 = arith.maximumf %501, %502 : vector<1x32xf32>
    %c12 = arith.constant 12 : index
    %c0_204 = arith.constant 0 : index
    %504 = vector.load %arg5[%c12, %c0_204] : memref<20x32xf32, #tpu.memory_space<vmem>>, vector<1x32xf32>
    %505 = vector.shape_cast %504 : vector<1x32xf32> to vector<32xf32>
    %cst_205 = arith.constant 9.99999974E-6 : f32
    %506 = vector.broadcast %cst_205 : f32 to vector<1x32xf32>
    %507 = arith.addf %503, %506 : vector<1x32xf32>
    %508 = math.rsqrt %507 : vector<1x32xf32>
    %509 = vector.shape_cast %505 : vector<32xf32> to vector<1x32xf32>
    %510 = arith.mulf %509, %508 : vector<1x32xf32>
    %c12_206 = arith.constant 12 : index
    %c0_207 = arith.constant 0 : index
    %511 = vector.load %arg6[%c12_206, %c0_207] : memref<20x32xf32, #tpu.memory_space<vmem>>, vector<1x32xf32>
    %512 = vector.shape_cast %511 : vector<1x32xf32> to vector<32xf32>
    %513 = arith.mulf %510, %497 : vector<1x32xf32>
    %514 = vector.shape_cast %512 : vector<32xf32> to vector<1x32xf32>
    %515 = arith.subf %514, %513 : vector<1x32xf32>
    %516 = vector.broadcast %510 : vector<1x32xf32> to vector<8x32xf32>
    %517 = arith.mulf %490, %516 : vector<8x32xf32>
    %518 = vector.broadcast %515 : vector<1x32xf32> to vector<8x32xf32>
    %519 = arith.addf %517, %518 : vector<8x32xf32>
    %c12_208 = arith.constant 12 : index
    %c0_209 = arith.constant 0 : index
    %c0_210 = arith.constant 0 : index
    %520 = vector.load %arg3[%c12_208, %c0_209, %c0_210] : memref<24x32x32xf32, #tpu.memory_space<vmem>>, vector<1x32x32xf32>
    %521 = vector.shape_cast %520 : vector<1x32x32xf32> to vector<32x32xf32>
    %cst_211 = arith.constant dense<0.000000e+00> : vector<8x32xf32>
    %522 = tpu.matmul %519, %521, %cst_211 {dimension_numbers = #tpu.dot_dimension_numbers<[1], [0], [0], [1], [0, 0, 1, 1], [], []>} : vector<8x32xf32>, vector<32x32xf32>, vector<8x32xf32> -> vector<8x32xf32>
    %c12_212 = arith.constant 12 : index
    %c0_213 = arith.constant 0 : index
    %523 = vector.load %arg4[%c12_212, %c0_213] : memref<24x32xf32, #tpu.memory_space<vmem>>, vector<1x32xf32>
    %524 = vector.shape_cast %523 : vector<1x32xf32> to vector<32xf32>
    %525 = vector.shape_cast %524 : vector<32xf32> to vector<1x32xf32>
    %526 = vector.broadcast %525 : vector<1x32xf32> to vector<8x32xf32>
    %527 = arith.addf %522, %526 : vector<8x32xf32>
    %cst_214 = arith.constant 5.000000e-01 : f32
    %528 = vector.broadcast %cst_214 : f32 to vector<8x32xf32>
    %529 = arith.mulf %528, %527 : vector<8x32xf32>
    %530 = arith.maximumf %527, %529 : vector<8x32xf32>
    %cst_215 = arith.constant dense<0.000000e+00> : vector<32xf32>
    %531 = vector.multi_reduction <add>, %530, %cst_215 [0] : vector<8x32xf32> to vector<32xf32>
    %532 = vector.shape_cast %531 : vector<32xf32> to vector<1x32xf32>
    %533 = arith.mulf %530, %530 : vector<8x32xf32>
    %cst_216 = arith.constant dense<0.000000e+00> : vector<32xf32>
    %534 = vector.multi_reduction <add>, %533, %cst_216 [0] : vector<8x32xf32> to vector<32xf32>
    %535 = vector.shape_cast %534 : vector<32xf32> to vector<1x32xf32>
    %cst_217 = arith.constant 1.250000e-01 : f32
    %536 = vector.broadcast %cst_217 : f32 to vector<1x32xf32>
    %537 = arith.mulf %532, %536 : vector<1x32xf32>
    %cst_218 = arith.constant 1.250000e-01 : f32
    %538 = vector.broadcast %cst_218 : f32 to vector<1x32xf32>
    %539 = arith.mulf %535, %538 : vector<1x32xf32>
    %540 = arith.mulf %537, %537 : vector<1x32xf32>
    %541 = arith.subf %539, %540 : vector<1x32xf32>
    %cst_219 = arith.constant 0.000000e+00 : f32
    %542 = vector.broadcast %cst_219 : f32 to vector<1x32xf32>
    %543 = arith.maximumf %541, %542 : vector<1x32xf32>
    %c13 = arith.constant 13 : index
    %c0_220 = arith.constant 0 : index
    %544 = vector.load %arg5[%c13, %c0_220] : memref<20x32xf32, #tpu.memory_space<vmem>>, vector<1x32xf32>
    %545 = vector.shape_cast %544 : vector<1x32xf32> to vector<32xf32>
    %cst_221 = arith.constant 9.99999974E-6 : f32
    %546 = vector.broadcast %cst_221 : f32 to vector<1x32xf32>
    %547 = arith.addf %543, %546 : vector<1x32xf32>
    %548 = math.rsqrt %547 : vector<1x32xf32>
    %549 = vector.shape_cast %545 : vector<32xf32> to vector<1x32xf32>
    %550 = arith.mulf %549, %548 : vector<1x32xf32>
    %c13_222 = arith.constant 13 : index
    %c0_223 = arith.constant 0 : index
    %551 = vector.load %arg6[%c13_222, %c0_223] : memref<20x32xf32, #tpu.memory_space<vmem>>, vector<1x32xf32>
    %552 = vector.shape_cast %551 : vector<1x32xf32> to vector<32xf32>
    %553 = arith.mulf %550, %537 : vector<1x32xf32>
    %554 = vector.shape_cast %552 : vector<32xf32> to vector<1x32xf32>
    %555 = arith.subf %554, %553 : vector<1x32xf32>
    %556 = vector.broadcast %550 : vector<1x32xf32> to vector<8x32xf32>
    %557 = arith.mulf %530, %556 : vector<8x32xf32>
    %558 = vector.broadcast %555 : vector<1x32xf32> to vector<8x32xf32>
    %559 = arith.addf %557, %558 : vector<8x32xf32>
    %c13_224 = arith.constant 13 : index
    %c0_225 = arith.constant 0 : index
    %c0_226 = arith.constant 0 : index
    %560 = vector.load %arg3[%c13_224, %c0_225, %c0_226] : memref<24x32x32xf32, #tpu.memory_space<vmem>>, vector<1x32x32xf32>
    %561 = vector.shape_cast %560 : vector<1x32x32xf32> to vector<32x32xf32>
    %cst_227 = arith.constant dense<0.000000e+00> : vector<8x32xf32>
    %562 = tpu.matmul %559, %561, %cst_227 {dimension_numbers = #tpu.dot_dimension_numbers<[1], [0], [0], [1], [0, 0, 1, 1], [], []>} : vector<8x32xf32>, vector<32x32xf32>, vector<8x32xf32> -> vector<8x32xf32>
    %c13_228 = arith.constant 13 : index
    %c0_229 = arith.constant 0 : index
    %563 = vector.load %arg4[%c13_228, %c0_229] : memref<24x32xf32, #tpu.memory_space<vmem>>, vector<1x32xf32>
    %564 = vector.shape_cast %563 : vector<1x32xf32> to vector<32xf32>
    %565 = vector.shape_cast %564 : vector<32xf32> to vector<1x32xf32>
    %566 = vector.broadcast %565 : vector<1x32xf32> to vector<8x32xf32>
    %567 = arith.addf %562, %566 : vector<8x32xf32>
    %cst_230 = arith.constant 5.000000e-01 : f32
    %568 = vector.broadcast %cst_230 : f32 to vector<8x32xf32>
    %569 = arith.mulf %568, %567 : vector<8x32xf32>
    %570 = arith.maximumf %567, %569 : vector<8x32xf32>
    %cst_231 = arith.constant dense<0.000000e+00> : vector<32xf32>
    %571 = vector.multi_reduction <add>, %570, %cst_231 [0] : vector<8x32xf32> to vector<32xf32>
    %572 = vector.shape_cast %571 : vector<32xf32> to vector<1x32xf32>
    %573 = arith.mulf %570, %570 : vector<8x32xf32>
    %cst_232 = arith.constant dense<0.000000e+00> : vector<32xf32>
    %574 = vector.multi_reduction <add>, %573, %cst_232 [0] : vector<8x32xf32> to vector<32xf32>
    %575 = vector.shape_cast %574 : vector<32xf32> to vector<1x32xf32>
    %cst_233 = arith.constant 1.250000e-01 : f32
    %576 = vector.broadcast %cst_233 : f32 to vector<1x32xf32>
    %577 = arith.mulf %572, %576 : vector<1x32xf32>
    %cst_234 = arith.constant 1.250000e-01 : f32
    %578 = vector.broadcast %cst_234 : f32 to vector<1x32xf32>
    %579 = arith.mulf %575, %578 : vector<1x32xf32>
    %580 = arith.mulf %577, %577 : vector<1x32xf32>
    %581 = arith.subf %579, %580 : vector<1x32xf32>
    %cst_235 = arith.constant 0.000000e+00 : f32
    %582 = vector.broadcast %cst_235 : f32 to vector<1x32xf32>
    %583 = arith.maximumf %581, %582 : vector<1x32xf32>
    %c14 = arith.constant 14 : index
    %c0_236 = arith.constant 0 : index
    %584 = vector.load %arg5[%c14, %c0_236] : memref<20x32xf32, #tpu.memory_space<vmem>>, vector<1x32xf32>
    %585 = vector.shape_cast %584 : vector<1x32xf32> to vector<32xf32>
    %cst_237 = arith.constant 9.99999974E-6 : f32
    %586 = vector.broadcast %cst_237 : f32 to vector<1x32xf32>
    %587 = arith.addf %583, %586 : vector<1x32xf32>
    %588 = math.rsqrt %587 : vector<1x32xf32>
    %589 = vector.shape_cast %585 : vector<32xf32> to vector<1x32xf32>
    %590 = arith.mulf %589, %588 : vector<1x32xf32>
    %c14_238 = arith.constant 14 : index
    %c0_239 = arith.constant 0 : index
    %591 = vector.load %arg6[%c14_238, %c0_239] : memref<20x32xf32, #tpu.memory_space<vmem>>, vector<1x32xf32>
    %592 = vector.shape_cast %591 : vector<1x32xf32> to vector<32xf32>
    %593 = arith.mulf %590, %577 : vector<1x32xf32>
    %594 = vector.shape_cast %592 : vector<32xf32> to vector<1x32xf32>
    %595 = arith.subf %594, %593 : vector<1x32xf32>
    %596 = vector.broadcast %590 : vector<1x32xf32> to vector<8x32xf32>
    %597 = arith.mulf %570, %596 : vector<8x32xf32>
    %598 = vector.broadcast %595 : vector<1x32xf32> to vector<8x32xf32>
    %599 = arith.addf %597, %598 : vector<8x32xf32>
    %c14_240 = arith.constant 14 : index
    %c0_241 = arith.constant 0 : index
    %c0_242 = arith.constant 0 : index
    %600 = vector.load %arg3[%c14_240, %c0_241, %c0_242] : memref<24x32x32xf32, #tpu.memory_space<vmem>>, vector<1x32x32xf32>
    %601 = vector.shape_cast %600 : vector<1x32x32xf32> to vector<32x32xf32>
    %cst_243 = arith.constant dense<0.000000e+00> : vector<8x32xf32>
    %602 = tpu.matmul %599, %601, %cst_243 {dimension_numbers = #tpu.dot_dimension_numbers<[1], [0], [0], [1], [0, 0, 1, 1], [], []>} : vector<8x32xf32>, vector<32x32xf32>, vector<8x32xf32> -> vector<8x32xf32>
    %c14_244 = arith.constant 14 : index
    %c0_245 = arith.constant 0 : index
    %603 = vector.load %arg4[%c14_244, %c0_245] : memref<24x32xf32, #tpu.memory_space<vmem>>, vector<1x32xf32>
    %604 = vector.shape_cast %603 : vector<1x32xf32> to vector<32xf32>
    %605 = vector.shape_cast %604 : vector<32xf32> to vector<1x32xf32>
    %606 = vector.broadcast %605 : vector<1x32xf32> to vector<8x32xf32>
    %607 = arith.addf %602, %606 : vector<8x32xf32>
    %cst_246 = arith.constant 5.000000e-01 : f32
    %608 = vector.broadcast %cst_246 : f32 to vector<8x32xf32>
    %609 = arith.mulf %608, %607 : vector<8x32xf32>
    %610 = arith.maximumf %607, %609 : vector<8x32xf32>
    %cst_247 = arith.constant dense<0.000000e+00> : vector<32xf32>
    %611 = vector.multi_reduction <add>, %610, %cst_247 [0] : vector<8x32xf32> to vector<32xf32>
    %612 = vector.shape_cast %611 : vector<32xf32> to vector<1x32xf32>
    %613 = arith.mulf %610, %610 : vector<8x32xf32>
    %cst_248 = arith.constant dense<0.000000e+00> : vector<32xf32>
    %614 = vector.multi_reduction <add>, %613, %cst_248 [0] : vector<8x32xf32> to vector<32xf32>
    %615 = vector.shape_cast %614 : vector<32xf32> to vector<1x32xf32>
    %cst_249 = arith.constant 1.250000e-01 : f32
    %616 = vector.broadcast %cst_249 : f32 to vector<1x32xf32>
    %617 = arith.mulf %612, %616 : vector<1x32xf32>
    %cst_250 = arith.constant 1.250000e-01 : f32
    %618 = vector.broadcast %cst_250 : f32 to vector<1x32xf32>
    %619 = arith.mulf %615, %618 : vector<1x32xf32>
    %620 = arith.mulf %617, %617 : vector<1x32xf32>
    %621 = arith.subf %619, %620 : vector<1x32xf32>
    %cst_251 = arith.constant 0.000000e+00 : f32
    %622 = vector.broadcast %cst_251 : f32 to vector<1x32xf32>
    %623 = arith.maximumf %621, %622 : vector<1x32xf32>
    %c15 = arith.constant 15 : index
    %c0_252 = arith.constant 0 : index
    %624 = vector.load %arg5[%c15, %c0_252] : memref<20x32xf32, #tpu.memory_space<vmem>>, vector<1x32xf32>
    %625 = vector.shape_cast %624 : vector<1x32xf32> to vector<32xf32>
    %cst_253 = arith.constant 9.99999974E-6 : f32
    %626 = vector.broadcast %cst_253 : f32 to vector<1x32xf32>
    %627 = arith.addf %623, %626 : vector<1x32xf32>
    %628 = math.rsqrt %627 : vector<1x32xf32>
    %629 = vector.shape_cast %625 : vector<32xf32> to vector<1x32xf32>
    %630 = arith.mulf %629, %628 : vector<1x32xf32>
    %c15_254 = arith.constant 15 : index
    %c0_255 = arith.constant 0 : index
    %631 = vector.load %arg6[%c15_254, %c0_255] : memref<20x32xf32, #tpu.memory_space<vmem>>, vector<1x32xf32>
    %632 = vector.shape_cast %631 : vector<1x32xf32> to vector<32xf32>
    %633 = arith.mulf %630, %617 : vector<1x32xf32>
    %634 = vector.shape_cast %632 : vector<32xf32> to vector<1x32xf32>
    %635 = arith.subf %634, %633 : vector<1x32xf32>
    %636 = vector.broadcast %630 : vector<1x32xf32> to vector<8x32xf32>
    %637 = arith.mulf %610, %636 : vector<8x32xf32>
    %638 = vector.broadcast %635 : vector<1x32xf32> to vector<8x32xf32>
    %639 = arith.addf %637, %638 : vector<8x32xf32>
    %c15_256 = arith.constant 15 : index
    %c0_257 = arith.constant 0 : index
    %c0_258 = arith.constant 0 : index
    %640 = vector.load %arg3[%c15_256, %c0_257, %c0_258] : memref<24x32x32xf32, #tpu.memory_space<vmem>>, vector<1x32x32xf32>
    %641 = vector.shape_cast %640 : vector<1x32x32xf32> to vector<32x32xf32>
    %cst_259 = arith.constant dense<0.000000e+00> : vector<8x32xf32>
    %642 = tpu.matmul %639, %641, %cst_259 {dimension_numbers = #tpu.dot_dimension_numbers<[1], [0], [0], [1], [0, 0, 1, 1], [], []>} : vector<8x32xf32>, vector<32x32xf32>, vector<8x32xf32> -> vector<8x32xf32>
    %c15_260 = arith.constant 15 : index
    %c0_261 = arith.constant 0 : index
    %643 = vector.load %arg4[%c15_260, %c0_261] : memref<24x32xf32, #tpu.memory_space<vmem>>, vector<1x32xf32>
    %644 = vector.shape_cast %643 : vector<1x32xf32> to vector<32xf32>
    %645 = vector.shape_cast %644 : vector<32xf32> to vector<1x32xf32>
    %646 = vector.broadcast %645 : vector<1x32xf32> to vector<8x32xf32>
    %647 = arith.addf %642, %646 : vector<8x32xf32>
    %cst_262 = arith.constant 5.000000e-01 : f32
    %648 = vector.broadcast %cst_262 : f32 to vector<8x32xf32>
    %649 = arith.mulf %648, %647 : vector<8x32xf32>
    %650 = arith.maximumf %647, %649 : vector<8x32xf32>
    %cst_263 = arith.constant dense<0.000000e+00> : vector<32xf32>
    %651 = vector.multi_reduction <add>, %650, %cst_263 [0] : vector<8x32xf32> to vector<32xf32>
    %652 = vector.shape_cast %651 : vector<32xf32> to vector<1x32xf32>
    %653 = arith.mulf %650, %650 : vector<8x32xf32>
    %cst_264 = arith.constant dense<0.000000e+00> : vector<32xf32>
    %654 = vector.multi_reduction <add>, %653, %cst_264 [0] : vector<8x32xf32> to vector<32xf32>
    %655 = vector.shape_cast %654 : vector<32xf32> to vector<1x32xf32>
    %cst_265 = arith.constant 1.250000e-01 : f32
    %656 = vector.broadcast %cst_265 : f32 to vector<1x32xf32>
    %657 = arith.mulf %652, %656 : vector<1x32xf32>
    %cst_266 = arith.constant 1.250000e-01 : f32
    %658 = vector.broadcast %cst_266 : f32 to vector<1x32xf32>
    %659 = arith.mulf %655, %658 : vector<1x32xf32>
    %660 = arith.mulf %657, %657 : vector<1x32xf32>
    %661 = arith.subf %659, %660 : vector<1x32xf32>
    %cst_267 = arith.constant 0.000000e+00 : f32
    %662 = vector.broadcast %cst_267 : f32 to vector<1x32xf32>
    %663 = arith.maximumf %661, %662 : vector<1x32xf32>
    %c16 = arith.constant 16 : index
    %c0_268 = arith.constant 0 : index
    %664 = vector.load %arg5[%c16, %c0_268] : memref<20x32xf32, #tpu.memory_space<vmem>>, vector<1x32xf32>
    %665 = vector.shape_cast %664 : vector<1x32xf32> to vector<32xf32>
    %cst_269 = arith.constant 9.99999974E-6 : f32
    %666 = vector.broadcast %cst_269 : f32 to vector<1x32xf32>
    %667 = arith.addf %663, %666 : vector<1x32xf32>
    %668 = math.rsqrt %667 : vector<1x32xf32>
    %669 = vector.shape_cast %665 : vector<32xf32> to vector<1x32xf32>
    %670 = arith.mulf %669, %668 : vector<1x32xf32>
    %c16_270 = arith.constant 16 : index
    %c0_271 = arith.constant 0 : index
    %671 = vector.load %arg6[%c16_270, %c0_271] : memref<20x32xf32, #tpu.memory_space<vmem>>, vector<1x32xf32>
    %672 = vector.shape_cast %671 : vector<1x32xf32> to vector<32xf32>
    %673 = arith.mulf %670, %657 : vector<1x32xf32>
    %674 = vector.shape_cast %672 : vector<32xf32> to vector<1x32xf32>
    %675 = arith.subf %674, %673 : vector<1x32xf32>
    %676 = vector.broadcast %670 : vector<1x32xf32> to vector<8x32xf32>
    %677 = arith.mulf %650, %676 : vector<8x32xf32>
    %678 = vector.broadcast %675 : vector<1x32xf32> to vector<8x32xf32>
    %679 = arith.addf %677, %678 : vector<8x32xf32>
    %c16_272 = arith.constant 16 : index
    %c0_273 = arith.constant 0 : index
    %c0_274 = arith.constant 0 : index
    %680 = vector.load %arg3[%c16_272, %c0_273, %c0_274] : memref<24x32x32xf32, #tpu.memory_space<vmem>>, vector<1x32x32xf32>
    %681 = vector.shape_cast %680 : vector<1x32x32xf32> to vector<32x32xf32>
    %cst_275 = arith.constant dense<0.000000e+00> : vector<8x32xf32>
    %682 = tpu.matmul %679, %681, %cst_275 {dimension_numbers = #tpu.dot_dimension_numbers<[1], [0], [0], [1], [0, 0, 1, 1], [], []>} : vector<8x32xf32>, vector<32x32xf32>, vector<8x32xf32> -> vector<8x32xf32>
    %c16_276 = arith.constant 16 : index
    %c0_277 = arith.constant 0 : index
    %683 = vector.load %arg4[%c16_276, %c0_277] : memref<24x32xf32, #tpu.memory_space<vmem>>, vector<1x32xf32>
    %684 = vector.shape_cast %683 : vector<1x32xf32> to vector<32xf32>
    %685 = vector.shape_cast %684 : vector<32xf32> to vector<1x32xf32>
    %686 = vector.broadcast %685 : vector<1x32xf32> to vector<8x32xf32>
    %687 = arith.addf %682, %686 : vector<8x32xf32>
    %cst_278 = arith.constant 5.000000e-01 : f32
    %688 = vector.broadcast %cst_278 : f32 to vector<8x32xf32>
    %689 = arith.mulf %688, %687 : vector<8x32xf32>
    %690 = arith.maximumf %687, %689 : vector<8x32xf32>
    %cst_279 = arith.constant dense<0.000000e+00> : vector<32xf32>
    %691 = vector.multi_reduction <add>, %690, %cst_279 [0] : vector<8x32xf32> to vector<32xf32>
    %692 = vector.shape_cast %691 : vector<32xf32> to vector<1x32xf32>
    %693 = arith.mulf %690, %690 : vector<8x32xf32>
    %cst_280 = arith.constant dense<0.000000e+00> : vector<32xf32>
    %694 = vector.multi_reduction <add>, %693, %cst_280 [0] : vector<8x32xf32> to vector<32xf32>
    %695 = vector.shape_cast %694 : vector<32xf32> to vector<1x32xf32>
    %cst_281 = arith.constant 1.250000e-01 : f32
    %696 = vector.broadcast %cst_281 : f32 to vector<1x32xf32>
    %697 = arith.mulf %692, %696 : vector<1x32xf32>
    %cst_282 = arith.constant 1.250000e-01 : f32
    %698 = vector.broadcast %cst_282 : f32 to vector<1x32xf32>
    %699 = arith.mulf %695, %698 : vector<1x32xf32>
    %700 = arith.mulf %697, %697 : vector<1x32xf32>
    %701 = arith.subf %699, %700 : vector<1x32xf32>
    %cst_283 = arith.constant 0.000000e+00 : f32
    %702 = vector.broadcast %cst_283 : f32 to vector<1x32xf32>
    %703 = arith.maximumf %701, %702 : vector<1x32xf32>
    %c17 = arith.constant 17 : index
    %c0_284 = arith.constant 0 : index
    %704 = vector.load %arg5[%c17, %c0_284] : memref<20x32xf32, #tpu.memory_space<vmem>>, vector<1x32xf32>
    %705 = vector.shape_cast %704 : vector<1x32xf32> to vector<32xf32>
    %cst_285 = arith.constant 9.99999974E-6 : f32
    %706 = vector.broadcast %cst_285 : f32 to vector<1x32xf32>
    %707 = arith.addf %703, %706 : vector<1x32xf32>
    %708 = math.rsqrt %707 : vector<1x32xf32>
    %709 = vector.shape_cast %705 : vector<32xf32> to vector<1x32xf32>
    %710 = arith.mulf %709, %708 : vector<1x32xf32>
    %c17_286 = arith.constant 17 : index
    %c0_287 = arith.constant 0 : index
    %711 = vector.load %arg6[%c17_286, %c0_287] : memref<20x32xf32, #tpu.memory_space<vmem>>, vector<1x32xf32>
    %712 = vector.shape_cast %711 : vector<1x32xf32> to vector<32xf32>
    %713 = arith.mulf %710, %697 : vector<1x32xf32>
    %714 = vector.shape_cast %712 : vector<32xf32> to vector<1x32xf32>
    %715 = arith.subf %714, %713 : vector<1x32xf32>
    %716 = vector.broadcast %710 : vector<1x32xf32> to vector<8x32xf32>
    %717 = arith.mulf %690, %716 : vector<8x32xf32>
    %718 = vector.broadcast %715 : vector<1x32xf32> to vector<8x32xf32>
    %719 = arith.addf %717, %718 : vector<8x32xf32>
    %c17_288 = arith.constant 17 : index
    %c0_289 = arith.constant 0 : index
    %c0_290 = arith.constant 0 : index
    %720 = vector.load %arg3[%c17_288, %c0_289, %c0_290] : memref<24x32x32xf32, #tpu.memory_space<vmem>>, vector<1x32x32xf32>
    %721 = vector.shape_cast %720 : vector<1x32x32xf32> to vector<32x32xf32>
    %cst_291 = arith.constant dense<0.000000e+00> : vector<8x32xf32>
    %722 = tpu.matmul %719, %721, %cst_291 {dimension_numbers = #tpu.dot_dimension_numbers<[1], [0], [0], [1], [0, 0, 1, 1], [], []>} : vector<8x32xf32>, vector<32x32xf32>, vector<8x32xf32> -> vector<8x32xf32>
    %c17_292 = arith.constant 17 : index
    %c0_293 = arith.constant 0 : index
    %723 = vector.load %arg4[%c17_292, %c0_293] : memref<24x32xf32, #tpu.memory_space<vmem>>, vector<1x32xf32>
    %724 = vector.shape_cast %723 : vector<1x32xf32> to vector<32xf32>
    %725 = vector.shape_cast %724 : vector<32xf32> to vector<1x32xf32>
    %726 = vector.broadcast %725 : vector<1x32xf32> to vector<8x32xf32>
    %727 = arith.addf %722, %726 : vector<8x32xf32>
    %cst_294 = arith.constant 5.000000e-01 : f32
    %728 = vector.broadcast %cst_294 : f32 to vector<8x32xf32>
    %729 = arith.mulf %728, %727 : vector<8x32xf32>
    %730 = arith.maximumf %727, %729 : vector<8x32xf32>
    %cst_295 = arith.constant dense<0.000000e+00> : vector<32xf32>
    %731 = vector.multi_reduction <add>, %730, %cst_295 [0] : vector<8x32xf32> to vector<32xf32>
    %732 = vector.shape_cast %731 : vector<32xf32> to vector<1x32xf32>
    %733 = arith.mulf %730, %730 : vector<8x32xf32>
    %cst_296 = arith.constant dense<0.000000e+00> : vector<32xf32>
    %734 = vector.multi_reduction <add>, %733, %cst_296 [0] : vector<8x32xf32> to vector<32xf32>
    %735 = vector.shape_cast %734 : vector<32xf32> to vector<1x32xf32>
    %cst_297 = arith.constant 1.250000e-01 : f32
    %736 = vector.broadcast %cst_297 : f32 to vector<1x32xf32>
    %737 = arith.mulf %732, %736 : vector<1x32xf32>
    %cst_298 = arith.constant 1.250000e-01 : f32
    %738 = vector.broadcast %cst_298 : f32 to vector<1x32xf32>
    %739 = arith.mulf %735, %738 : vector<1x32xf32>
    %740 = arith.mulf %737, %737 : vector<1x32xf32>
    %741 = arith.subf %739, %740 : vector<1x32xf32>
    %cst_299 = arith.constant 0.000000e+00 : f32
    %742 = vector.broadcast %cst_299 : f32 to vector<1x32xf32>
    %743 = arith.maximumf %741, %742 : vector<1x32xf32>
    %c18 = arith.constant 18 : index
    %c0_300 = arith.constant 0 : index
    %744 = vector.load %arg5[%c18, %c0_300] : memref<20x32xf32, #tpu.memory_space<vmem>>, vector<1x32xf32>
    %745 = vector.shape_cast %744 : vector<1x32xf32> to vector<32xf32>
    %cst_301 = arith.constant 9.99999974E-6 : f32
    %746 = vector.broadcast %cst_301 : f32 to vector<1x32xf32>
    %747 = arith.addf %743, %746 : vector<1x32xf32>
    %748 = math.rsqrt %747 : vector<1x32xf32>
    %749 = vector.shape_cast %745 : vector<32xf32> to vector<1x32xf32>
    %750 = arith.mulf %749, %748 : vector<1x32xf32>
    %c18_302 = arith.constant 18 : index
    %c0_303 = arith.constant 0 : index
    %751 = vector.load %arg6[%c18_302, %c0_303] : memref<20x32xf32, #tpu.memory_space<vmem>>, vector<1x32xf32>
    %752 = vector.shape_cast %751 : vector<1x32xf32> to vector<32xf32>
    %753 = arith.mulf %750, %737 : vector<1x32xf32>
    %754 = vector.shape_cast %752 : vector<32xf32> to vector<1x32xf32>
    %755 = arith.subf %754, %753 : vector<1x32xf32>
    %756 = vector.broadcast %750 : vector<1x32xf32> to vector<8x32xf32>
    %757 = arith.mulf %730, %756 : vector<8x32xf32>
    %758 = vector.broadcast %755 : vector<1x32xf32> to vector<8x32xf32>
    %759 = arith.addf %757, %758 : vector<8x32xf32>
    %c18_304 = arith.constant 18 : index
    %c0_305 = arith.constant 0 : index
    %c0_306 = arith.constant 0 : index
    %760 = vector.load %arg3[%c18_304, %c0_305, %c0_306] : memref<24x32x32xf32, #tpu.memory_space<vmem>>, vector<1x32x32xf32>
    %761 = vector.shape_cast %760 : vector<1x32x32xf32> to vector<32x32xf32>
    %cst_307 = arith.constant dense<0.000000e+00> : vector<8x32xf32>
    %762 = tpu.matmul %759, %761, %cst_307 {dimension_numbers = #tpu.dot_dimension_numbers<[1], [0], [0], [1], [0, 0, 1, 1], [], []>} : vector<8x32xf32>, vector<32x32xf32>, vector<8x32xf32> -> vector<8x32xf32>
    %c18_308 = arith.constant 18 : index
    %c0_309 = arith.constant 0 : index
    %763 = vector.load %arg4[%c18_308, %c0_309] : memref<24x32xf32, #tpu.memory_space<vmem>>, vector<1x32xf32>
    %764 = vector.shape_cast %763 : vector<1x32xf32> to vector<32xf32>
    %765 = vector.shape_cast %764 : vector<32xf32> to vector<1x32xf32>
    %766 = vector.broadcast %765 : vector<1x32xf32> to vector<8x32xf32>
    %767 = arith.addf %762, %766 : vector<8x32xf32>
    %cst_310 = arith.constant 5.000000e-01 : f32
    %768 = vector.broadcast %cst_310 : f32 to vector<8x32xf32>
    %769 = arith.mulf %768, %767 : vector<8x32xf32>
    %770 = arith.maximumf %767, %769 : vector<8x32xf32>
    %cst_311 = arith.constant dense<0.000000e+00> : vector<32xf32>
    %771 = vector.multi_reduction <add>, %770, %cst_311 [0] : vector<8x32xf32> to vector<32xf32>
    %772 = vector.shape_cast %771 : vector<32xf32> to vector<1x32xf32>
    %773 = arith.mulf %770, %770 : vector<8x32xf32>
    %cst_312 = arith.constant dense<0.000000e+00> : vector<32xf32>
    %774 = vector.multi_reduction <add>, %773, %cst_312 [0] : vector<8x32xf32> to vector<32xf32>
    %775 = vector.shape_cast %774 : vector<32xf32> to vector<1x32xf32>
    %cst_313 = arith.constant 1.250000e-01 : f32
    %776 = vector.broadcast %cst_313 : f32 to vector<1x32xf32>
    %777 = arith.mulf %772, %776 : vector<1x32xf32>
    %cst_314 = arith.constant 1.250000e-01 : f32
    %778 = vector.broadcast %cst_314 : f32 to vector<1x32xf32>
    %779 = arith.mulf %775, %778 : vector<1x32xf32>
    %780 = arith.mulf %777, %777 : vector<1x32xf32>
    %781 = arith.subf %779, %780 : vector<1x32xf32>
    %cst_315 = arith.constant 0.000000e+00 : f32
    %782 = vector.broadcast %cst_315 : f32 to vector<1x32xf32>
    %783 = arith.maximumf %781, %782 : vector<1x32xf32>
    %c19 = arith.constant 19 : index
    %c0_316 = arith.constant 0 : index
    %784 = vector.load %arg5[%c19, %c0_316] : memref<20x32xf32, #tpu.memory_space<vmem>>, vector<1x32xf32>
    %785 = vector.shape_cast %784 : vector<1x32xf32> to vector<32xf32>
    %cst_317 = arith.constant 9.99999974E-6 : f32
    %786 = vector.broadcast %cst_317 : f32 to vector<1x32xf32>
    %787 = arith.addf %783, %786 : vector<1x32xf32>
    %788 = math.rsqrt %787 : vector<1x32xf32>
    %789 = vector.shape_cast %785 : vector<32xf32> to vector<1x32xf32>
    %790 = arith.mulf %789, %788 : vector<1x32xf32>
    %c19_318 = arith.constant 19 : index
    %c0_319 = arith.constant 0 : index
    %791 = vector.load %arg6[%c19_318, %c0_319] : memref<20x32xf32, #tpu.memory_space<vmem>>, vector<1x32xf32>
    %792 = vector.shape_cast %791 : vector<1x32xf32> to vector<32xf32>
    %793 = arith.mulf %790, %777 : vector<1x32xf32>
    %794 = vector.shape_cast %792 : vector<32xf32> to vector<1x32xf32>
    %795 = arith.subf %794, %793 : vector<1x32xf32>
    %796 = vector.broadcast %790 : vector<1x32xf32> to vector<8x32xf32>
    %797 = arith.mulf %770, %796 : vector<8x32xf32>
    %798 = vector.broadcast %795 : vector<1x32xf32> to vector<8x32xf32>
    %799 = arith.addf %797, %798 : vector<8x32xf32>
    %c19_320 = arith.constant 19 : index
    %c0_321 = arith.constant 0 : index
    %c0_322 = arith.constant 0 : index
    %800 = vector.load %arg3[%c19_320, %c0_321, %c0_322] : memref<24x32x32xf32, #tpu.memory_space<vmem>>, vector<1x32x32xf32>
    %801 = vector.shape_cast %800 : vector<1x32x32xf32> to vector<32x32xf32>
    %cst_323 = arith.constant dense<0.000000e+00> : vector<8x32xf32>
    %802 = tpu.matmul %799, %801, %cst_323 {dimension_numbers = #tpu.dot_dimension_numbers<[1], [0], [0], [1], [0, 0, 1, 1], [], []>} : vector<8x32xf32>, vector<32x32xf32>, vector<8x32xf32> -> vector<8x32xf32>
    %c19_324 = arith.constant 19 : index
    %c0_325 = arith.constant 0 : index
    %803 = vector.load %arg4[%c19_324, %c0_325] : memref<24x32xf32, #tpu.memory_space<vmem>>, vector<1x32xf32>
    %804 = vector.shape_cast %803 : vector<1x32xf32> to vector<32xf32>
    %805 = vector.shape_cast %804 : vector<32xf32> to vector<1x32xf32>
    %806 = vector.broadcast %805 : vector<1x32xf32> to vector<8x32xf32>
    %807 = arith.addf %802, %806 : vector<8x32xf32>
    %cst_326 = arith.constant 5.000000e-01 : f32
    %808 = vector.broadcast %cst_326 : f32 to vector<8x32xf32>
    %809 = arith.mulf %808, %807 : vector<8x32xf32>
    %810 = arith.maximumf %807, %809 : vector<8x32xf32>
    %c20 = arith.constant 20 : index
    %c0_327 = arith.constant 0 : index
    %c0_328 = arith.constant 0 : index
    %811 = vector.load %arg3[%c20, %c0_327, %c0_328] : memref<24x32x32xf32, #tpu.memory_space<vmem>>, vector<1x32x32xf32>
    %812 = vector.shape_cast %811 : vector<1x32x32xf32> to vector<32x32xf32>
    %cst_329 = arith.constant dense<0.000000e+00> : vector<8x32xf32>
    %813 = tpu.matmul %810, %812, %cst_329 {dimension_numbers = #tpu.dot_dimension_numbers<[1], [0], [0], [1], [0, 0, 1, 1], [], []>} : vector<8x32xf32>, vector<32x32xf32>, vector<8x32xf32> -> vector<8x32xf32>
    %c20_330 = arith.constant 20 : index
    %c0_331 = arith.constant 0 : index
    %814 = vector.load %arg4[%c20_330, %c0_331] : memref<24x32xf32, #tpu.memory_space<vmem>>, vector<1x32xf32>
    %815 = vector.shape_cast %814 : vector<1x32xf32> to vector<32xf32>
    %816 = vector.shape_cast %815 : vector<32xf32> to vector<1x32xf32>
    %817 = vector.broadcast %816 : vector<1x32xf32> to vector<8x32xf32>
    %818 = arith.addf %813, %817 : vector<8x32xf32>
    %cst_332 = arith.constant 5.000000e-01 : f32
    %819 = vector.broadcast %cst_332 : f32 to vector<8x32xf32>
    %820 = arith.mulf %819, %818 : vector<8x32xf32>
    %821 = arith.maximumf %818, %820 : vector<8x32xf32>
    %c21 = arith.constant 21 : index
    %c0_333 = arith.constant 0 : index
    %c0_334 = arith.constant 0 : index
    %822 = vector.load %arg3[%c21, %c0_333, %c0_334] : memref<24x32x32xf32, #tpu.memory_space<vmem>>, vector<1x32x32xf32>
    %823 = vector.shape_cast %822 : vector<1x32x32xf32> to vector<32x32xf32>
    %cst_335 = arith.constant dense<0.000000e+00> : vector<8x32xf32>
    %824 = tpu.matmul %821, %823, %cst_335 {dimension_numbers = #tpu.dot_dimension_numbers<[1], [0], [0], [1], [0, 0, 1, 1], [], []>} : vector<8x32xf32>, vector<32x32xf32>, vector<8x32xf32> -> vector<8x32xf32>
    %c21_336 = arith.constant 21 : index
    %c0_337 = arith.constant 0 : index
    %825 = vector.load %arg4[%c21_336, %c0_337] : memref<24x32xf32, #tpu.memory_space<vmem>>, vector<1x32xf32>
    %826 = vector.shape_cast %825 : vector<1x32xf32> to vector<32xf32>
    %827 = vector.shape_cast %826 : vector<32xf32> to vector<1x32xf32>
    %828 = vector.broadcast %827 : vector<1x32xf32> to vector<8x32xf32>
    %829 = arith.addf %824, %828 : vector<8x32xf32>
    %cst_338 = arith.constant 5.000000e-01 : f32
    %830 = vector.broadcast %cst_338 : f32 to vector<8x32xf32>
    %831 = arith.mulf %830, %829 : vector<8x32xf32>
    %832 = arith.maximumf %829, %831 : vector<8x32xf32>
    %c22 = arith.constant 22 : index
    %c0_339 = arith.constant 0 : index
    %c0_340 = arith.constant 0 : index
    %833 = vector.load %arg3[%c22, %c0_339, %c0_340] : memref<24x32x32xf32, #tpu.memory_space<vmem>>, vector<1x32x32xf32>
    %834 = vector.shape_cast %833 : vector<1x32x32xf32> to vector<32x32xf32>
    %cst_341 = arith.constant dense<0.000000e+00> : vector<8x32xf32>
    %835 = tpu.matmul %832, %834, %cst_341 {dimension_numbers = #tpu.dot_dimension_numbers<[1], [0], [0], [1], [0, 0, 1, 1], [], []>} : vector<8x32xf32>, vector<32x32xf32>, vector<8x32xf32> -> vector<8x32xf32>
    %c22_342 = arith.constant 22 : index
    %c0_343 = arith.constant 0 : index
    %836 = vector.load %arg4[%c22_342, %c0_343] : memref<24x32xf32, #tpu.memory_space<vmem>>, vector<1x32xf32>
    %837 = vector.shape_cast %836 : vector<1x32xf32> to vector<32xf32>
    %838 = vector.shape_cast %837 : vector<32xf32> to vector<1x32xf32>
    %839 = vector.broadcast %838 : vector<1x32xf32> to vector<8x32xf32>
    %840 = arith.addf %835, %839 : vector<8x32xf32>
    %cst_344 = arith.constant 5.000000e-01 : f32
    %841 = vector.broadcast %cst_344 : f32 to vector<8x32xf32>
    %842 = arith.mulf %841, %840 : vector<8x32xf32>
    %843 = arith.maximumf %840, %842 : vector<8x32xf32>
    %c23 = arith.constant 23 : index
    %c0_345 = arith.constant 0 : index
    %c0_346 = arith.constant 0 : index
    %844 = vector.load %arg3[%c23, %c0_345, %c0_346] : memref<24x32x32xf32, #tpu.memory_space<vmem>>, vector<1x32x32xf32>
    %845 = vector.shape_cast %844 : vector<1x32x32xf32> to vector<32x32xf32>
    %cst_347 = arith.constant dense<0.000000e+00> : vector<8x32xf32>
    %846 = tpu.matmul %843, %845, %cst_347 {dimension_numbers = #tpu.dot_dimension_numbers<[1], [0], [0], [1], [0, 0, 1, 1], [], []>} : vector<8x32xf32>, vector<32x32xf32>, vector<8x32xf32> -> vector<8x32xf32>
    %c23_348 = arith.constant 23 : index
    %c0_349 = arith.constant 0 : index
    %847 = vector.load %arg4[%c23_348, %c0_349] : memref<24x32xf32, #tpu.memory_space<vmem>>, vector<1x32xf32>
    %848 = vector.shape_cast %847 : vector<1x32xf32> to vector<32xf32>
    %849 = vector.shape_cast %848 : vector<32xf32> to vector<1x32xf32>
    %850 = vector.broadcast %849 : vector<1x32xf32> to vector<8x32xf32>
    %851 = arith.addf %846, %850 : vector<8x32xf32>
    %cst_350 = arith.constant 5.000000e-01 : f32
    %852 = vector.broadcast %cst_350 : f32 to vector<8x32xf32>
    %853 = arith.mulf %852, %851 : vector<8x32xf32>
    %854 = arith.maximumf %851, %853 : vector<8x32xf32>
    %c0_351 = arith.constant 0 : index
    %c0_352 = arith.constant 0 : index
    %855 = vector.load %arg7[%c0_351, %c0_352] : memref<32x16xf32, #tpu.memory_space<vmem>>, vector<32x16xf32>
    %cst_353 = arith.constant dense<0.000000e+00> : vector<8x16xf32>
    %856 = tpu.matmul %854, %855, %cst_353 {dimension_numbers = #tpu.dot_dimension_numbers<[1], [0], [0], [1], [0, 0, 1, 1], [], []>} : vector<8x32xf32>, vector<32x16xf32>, vector<8x16xf32> -> vector<8x16xf32>
    %c0_354 = arith.constant 0 : index
    %c0_355 = arith.constant 0 : index
    %857 = vector.load %arg8[%c0_354, %c0_355] : memref<1x16xf32, #tpu.memory_space<vmem>>, vector<1x16xf32>
    %858 = vector.shape_cast %857 : vector<1x16xf32> to vector<16xf32>
    %859 = vector.shape_cast %858 : vector<16xf32> to vector<1x16xf32>
    %860 = vector.broadcast %859 : vector<1x16xf32> to vector<8x16xf32>
    %861 = arith.addf %856, %860 : vector<8x16xf32>
    %c0_356 = arith.constant 0 : index
    %c0_357 = arith.constant 0 : index
    %862 = vector.load %arg9[%c0_356, %c0_357] : memref<8x16xf32, #tpu.memory_space<vmem>>, vector<8x16xf32>
    tpu.vector_store %arg9[%c0_356, %c0_357], %861 {strides = array<i32>} : memref<8x16xf32, #tpu.memory_space<vmem>>, vector<8x16xf32>,
    return
  }
}

</mosaic_0001>

<llo_original>
// kernel: h_hat_forward.1
$region0: #{h_hat_forward.1}
  #allocation0 [shape = 'u32[]', space=smem, size = 0x4, offset = 0x4, fixed_abs, tag = 'smem constant byte address 0x4 - core index']
  #allocation1 [shape = 'u32[144,128]{1,0:T(1,128)}', space=vmem, size = 0x12000, scoped, tag = 'internal scratch']
  %s0 = inlined_call_operand.hbm [shape: f32[8,16], index: 0, kind: input, shape index: {}]
  %s1 = inlined_call_operand.vmem [shape: f32[16,32], index: 1, kind: input, shape index: {}]
  %s2 = inlined_call_operand.vmem [shape: f32[1,32], index: 2, kind: input, shape index: {}]
  %s3 = inlined_call_operand.hbm [shape: f32[24,32,32], index: 3, kind: input, shape index: {}]
  %s4 = inlined_call_operand.vmem [shape: f32[24,32], index: 4, kind: input, shape index: {}]
  %s5 = inlined_call_operand.vmem [shape: f32[20,32], index: 5, kind: input, shape index: {}]
  %s6 = inlined_call_operand.hbm [shape: f32[20,32], index: 6, kind: input, shape index: {}]
  %s7 = inlined_call_operand.vmem [shape: f32[32,16], index: 7, kind: input, shape index: {}]
  %s8 = inlined_call_operand.vmem [shape: f32[1,16], index: 8, kind: input, shape index: {}]
  %s9 = inlined_call_operand.hbm [shape: f32[8,16], index: 9, kind: output, shape index: {}]
  %s10 = sld [smem:[#allocation0]]
  $region58: #{h_hat_forward.1} parent=0
    _
  %s12 = ssub.s32 1, %s10
  %s13 = scalar_select 0, %s12, %s10
  $region1: #{h_hat_forward.1} parent=0
    #allocation2 [shape = 'u8[4096]{0}', space=vmem, size = 0x1000, scoped, tag = 'input window, operand 0, single buffered']
    #allocation3 [shape = 's32[1]{0}', space=sflag, size = 0x4, scoped, tag = 'scoped memory for h_hat_forward.1']
    #allocation4 [shape = 's32[1]{0}', space=sflag, size = 0x4, scoped, tag = 'scoped memory for h_hat_forward.1']
    #allocation5 [shape = 'u8[393216]{0}', space=vmem, size = 0x60000, scoped, tag = 'input window, operand 3, single buffered']
    #allocation6 [shape = 's32[1]{0}', space=sflag, size = 0x4, scoped, tag = 'scoped memory for h_hat_forward.1']
    #allocation7 [shape = 'u8[12288]{0}', space=vmem, size = 0x3000, scoped, tag = 'input window, operand 6, single buffered']
    #allocation8 [shape = 'u8[4096]{0}', space=vmem, size = 0x1000, scoped, tag = 'output window, operand 0, single buffered']
    %14 = vsyncpa [#allocation3], 0
    %15 = vsyncpa [#allocation6], 0
    %16 = vsyncpa [#allocation4], 0
    // Predicated region
    $region2: #{h_hat_forward.1} parent=1 // pred_check
      _
    $region3: #{h_hat_forward.1} parent=1 // pred_check_branch
      %18 = sbr.rel (0) target = $region5
    $region4: #{h_hat_forward.1} parent=1 // pred_region
      %s20 = ssub.s32 128, 128
      %21 = vsyncadd [#allocation3], %s20
      %s23 = sshll.u32 [#allocation2], 4
      %s24 = int_to_ptr.vmem [resolvable:$true] %s23
      %26 = dma.hbm_to_vmem [thread:$0]  %s0, 128, %s24, [#allocation3]
    $region5: #{h_hat_forward.1} parent=1 // pred_fallthru
      _
    // Predicated region
    $region6: #{h_hat_forward.1} parent=1 // pred_check
      _
    $region7: #{h_hat_forward.1} parent=1 // pred_check_branch
      %28 = sbr.rel (0) target = $region9
    $region8: #{h_hat_forward.1} parent=1 // pred_region
      _
    $region9: #{h_hat_forward.1} parent=1 // pred_fallthru
      _
    // Predicated region
    $region10: #{h_hat_forward.1} parent=1 // pred_check
      _
    $region11: #{h_hat_forward.1} parent=1 // pred_check_branch
      %30 = sbr.rel (0) target = $region13
    $region12: #{h_hat_forward.1} parent=1 // pred_region
      _
    $region13: #{h_hat_forward.1} parent=1 // pred_fallthru
      _
    // Predicated region
    $region14: #{h_hat_forward.1} parent=1 // pred_check
      _
    $region15: #{h_hat_forward.1} parent=1 // pred_check_branch
      %32 = sbr.rel (0) target = $region17
    $region16: #{h_hat_forward.1} parent=1 // pred_region
      %s34 = ssub.s32 12288, 12288
      %35 = vsyncadd [#allocation6], %s34
      %s36 = sshll.u32 [#allocation5], 4
      %s37 = int_to_ptr.vmem [resolvable:$true] %s36
      %42 = dma.hbm_to_vmem [thread:$0]  %s3, 12288, %s37, [#allocation6], 128, 128, 8
    $region17: #{h_hat_forward.1} parent=1 // pred_fallthru
      _
    // Predicated region
    $region18: #{h_hat_forward.1} parent=1 // pred_check
      _
    $region19: #{h_hat_forward.1} parent=1 // pred_check_branch
      %44 = sbr.rel (0) target = $region21
    $region20: #{h_hat_forward.1} parent=1 // pred_region
      _
    $region21: #{h_hat_forward.1} parent=1 // pred_fallthru
      _
    // Predicated region
    $region22: #{h_hat_forward.1} parent=1 // pred_check
      _
    $region23: #{h_hat_forward.1} parent=1 // pred_check_branch
      %46 = sbr.rel (0) target = $region25
    $region24: #{h_hat_forward.1} parent=1 // pred_region
      _
    $region25: #{h_hat_forward.1} parent=1 // pred_fallthru
      _
    // Predicated region
    $region26: #{h_hat_forward.1} parent=1 // pred_check
      _
    $region27: #{h_hat_forward.1} parent=1 // pred_check_branch
      %48 = sbr.rel (0) target = $region29
    $region28: #{h_hat_forward.1} parent=1 // pred_region
      %s50 = ssub.s32 384, 384
      %51 = vsyncadd [#allocation6], %s50
      %s52 = sshll.u32 [#allocation7], 4
      %s53 = int_to_ptr.vmem [resolvable:$true] %s52
      %58 = dma.hbm_to_vmem [thread:$0]  %s6, 384, %s53, [#allocation6], 128, 128, 8
    $region29: #{h_hat_forward.1} parent=1 // pred_fallthru
      _
    // Predicated region
    $region30: #{h_hat_forward.1} parent=1 // pred_check
      _
    $region31: #{h_hat_forward.1} parent=1 // pred_check_branch
      %60 = sbr.rel (0) target = $region33
    $region32: #{h_hat_forward.1} parent=1 // pred_region
      _
    $region33: #{h_hat_forward.1} parent=1 // pred_fallthru
      _
    // Predicated region
    $region34: #{h_hat_forward.1} parent=1 // pred_check
      _
    $region35: #{h_hat_forward.1} parent=1 // pred_check_branch
      %62 = sbr.rel (0) target = $region37
    $region36: #{h_hat_forward.1} parent=1 // pred_region
      _
    $region37: #{h_hat_forward.1} parent=1 // pred_fallthru
      _
    // Predicated region
    $region38: #{h_hat_forward.1} parent=1 // pred_check
      _
    $region39: #{h_hat_forward.1} parent=1 // pred_check_branch
      %64 = sbr.rel (0) target = $region41
    $region40: #{h_hat_forward.1} parent=1 // pred_region
      %65 = dma.done [#allocation3], 128
    $region41: #{h_hat_forward.1} parent=1 // pred_fallthru
      _
    // Predicated region
    $region42: #{h_hat_forward.1} parent=1 // pred_check
      _
    $region43: #{h_hat_forward.1} parent=1 // pred_check_branch
      %67 = sbr.rel (0) target = $region45
    $region44: #{h_hat_forward.1} parent=1 // pred_region
      %68 = dma.done [#allocation6], 12288
    $region45: #{h_hat_forward.1} parent=1 // pred_fallthru
      _
    // Predicated region
    $region46: #{h_hat_forward.1} parent=1 // pred_check
      _
    $region47: #{h_hat_forward.1} parent=1 // pred_check_branch
      %70 = sbr.rel (0) target = $region49
    $region48: #{h_hat_forward.1} parent=1 // pred_region
      %71 = dma.done [#allocation6], 384
    $region49: #{h_hat_forward.1} parent=1 // pred_fallthru
      _
    %v72 = vld [vmem:[#allocation2] sm:$0xff]
    %v73 = vld [vmem:[%s1] sm:$0xff]
    %v74 = vld [vmem:[%s1 + $0x8] sm:$0xff]
    %v75 = vld [vmem:[%s2] sm:$0x1]
    %v77 = vlaneseq
    %v78 = vshrl.u32 %v77, 7
    %v79 = vsub.s32 0, %v78
    %v80 = vrot.slane %v75, %v79
    %vm82 = vcmask 130048
    %v84 = vsel %vm82, %v72, 0
    %86 = vmatprep.subr.mxu0 0.0
    %87 = vmatpush1.msra.mxu0 %v73
    %88 = vmatprep.subr.mxu0 0.0
    %89 = vmatpush1.msra.mxu0 %v74
    %90 = vmatprep.subr.mxu0 0.0
    %91 = vmatpush1.msra.mxu0 0.0
    %92 = vmatprep.subr.mxu0 0.0
    %93 = vmatpush1.msra.mxu0 0.0
    %94 = vmatprep.subr.mxu0 0.0
    %95 = vmatpush1.msra.mxu0 0.0
    %96 = vmatprep.subr.mxu0 0.0
    %97 = vmatpush1.msra.mxu0 0.0
    %98 = vmatprep.subr.mxu0 0.0
    %99 = vmatpush1.msra.mxu0 0.0
    %100 = vmatprep.subr.mxu0 0.0
    %101 = vmatpush1.msra.mxu0 0.0
    %102 = vmatprep.subr.mxu0 0.0
    %103 = vmatpush1.msra.mxu0 0.0
    %104 = vmatprep.subr.mxu0 0.0
    %105 = vmatpush1.msra.mxu0 0.0
    %106 = vmatprep.subr.mxu0 0.0
    %107 = vmatpush1.msra.mxu0 0.0
    %108 = vmatprep.subr.mxu0 0.0
    %109 = vmatpush1.msra.mxu0 0.0
    %110 = vmatprep.subr.mxu0 0.0
    %111 = vmatpush1.msra.mxu0 0.0
    %112 = vmatprep.subr.mxu0 0.0
    %113 = vmatpush1.msra.mxu0 0.0
    %114 = vmatprep.subr.mxu0 0.0
    %115 = vmatpush1.msra.mxu0 0.0
    %116 = vmatprep.subr.mxu0 0.0
    %117 = vmatpush1.msra.mxu0 0.0
    %118 = vmatprep.subr.mxu0 0.0
    %119 = vmatpush1.msra.mxu0 0.0
    %120 = vmatprep.subr.mxu0 0.0
    %121 = vmatpush1.msra.mxu0 0.0
    %122 = vmatprep.subr.mxu0 0.0
    %123 = vmatpush1.msra.mxu0 0.0
    %124 = vmatprep.subr.mxu0 0.0
    %125 = vmatpush1.msra.mxu0 0.0
    %126 = vmatprep.subr.mxu0 0.0
    %127 = vmatpush1.msra.mxu0 0.0
    %128 = vmatprep.subr.mxu0 0.0
    %129 = vmatpush1.msra.mxu0 0.0
    %130 = vmatprep.subr.mxu0 0.0
    %131 = vmatpush1.msra.mxu0 0.0
    %132 = vmatprep.subr.mxu0 0.0
    %133 = vmatpush1.msra.mxu0 0.0
    %134 = vmatprep.subr.mxu0 0.0
    %135 = vmatpush1.msra.mxu0 0.0
    %136 = vmatprep.subr.mxu0 0.0
    %137 = vmatpush1.msra.mxu0 0.0
    %138 = vmatprep.subr.mxu0 0.0
    %139 = vmatpush1.msra.mxu0 0.0
    %140 = vmatprep.subr.mxu0 0.0
    %141 = vmatpush1.msra.mxu0 0.0
    %142 = vmatprep.subr.mxu0 0.0
    %143 = vmatpush1.msra.mxu0 0.0
    %144 = vmatprep.subr.mxu0 0.0
    %145 = vmatpush1.msra.mxu0 0.0
    %146 = vmatprep.subr.mxu0 0.0
    %147 = vmatpush1.msra.mxu0 0.0
    %148 = vmatprep.subr.mxu0 0.0
    %149 = vmatpush1.msra.mxu0 0.0
    %150 = vmatprep.mubr.f32.mxu0 0.0
    %151 = vmatmul.mubr.f32.gmra.mrb[0].mxu0 %v84
    %v152 = vpop.f32.mrb[0].mxu0
    %v153 = vadd.f32 %v80, %v152
    %v154 = vpop.f32.mrb[0].mxu0
    %155 = vdwg.mxu0
    %v156 = vmul.f32 %v153, 0.5
    %v157 = vmax.f32 %v153, %v156
    %vm158 = vcmask 261120
    %v159 = vsel %vm158, %v157, 0.0
    %v160 = vrot.slane %v159, 4
    %v161 = vadd.f32 %v159, %v160
    %v162 = vrot.slane %v161, 2
    %v163 = vadd.f32 %v161, %v162
    %v164 = vrot.slane %v163, 1
    %v165 = vadd.f32 %v163, %v164
    %v166 = vmul.f32 %v157, %v157
    %v167 = vsel %vm158, %v166, 0.0
    %v168 = vrot.slane %v167, 4
    %v169 = vadd.f32 %v167, %v168
    %v170 = vrot.slane %v169, 2
    %v171 = vadd.f32 %v169, %v170
    %v172 = vrot.slane %v171, 1
    %v173 = vadd.f32 %v171, %v172
    %v174 = vmul.f32 %v165, 0.125
    %v175 = vmul.f32 %v173, 0.125
    %v176 = vmul.f32 %v174, %v174
    %v177 = vsub.f32 %v175, %v176
    %v178 = vmax.f32 %v177, 0.0
    %v179 = vld [vmem:[%s5] sm:$0x1]
    %v180 = vadd.f32 %v178, 1e-05
    %v181 = vrsqrt.pop %v180
    %v182 = vmul.f32 %v179, %v181
    %v183 = vld [vmem:[#allocation7] sm:$0x1]
    %v184 = vmul.f32 %v182, %v174
    %v185 = vsub.f32 %v183, %v184
    %v186 = vlaneseq
    %v187 = vshrl.u32 %v186, 7
    %v188 = vsub.s32 0, %v187
    %v189 = vrot.slane %v182, %v188
    %v190 = vmul.f32 %v157, %v189
    %v191 = vlaneseq
    %v192 = vshrl.u32 %v191, 7
    %v193 = vsub.s32 0, %v192
    %v194 = vrot.slane %v185, %v193
    %v195 = vadd.f32 %v190, %v194
    %v196 = vld [vmem:[#allocation5] sm:$0xff]
    %v197 = vld [vmem:[#allocation5 + $0x8] sm:$0xff]
    %v198 = vld [vmem:[#allocation5 + $0x10] sm:$0xff]
    %v199 = vld [vmem:[#allocation5 + $0x18] sm:$0xff]
    %v200 = vld [vmem:[%s4] sm:$0x1]
    %v201 = vlaneseq
    %v202 = vshrl.u32 %v201, 7
    %v203 = vsub.s32 0, %v202
    %v204 = vrot.slane %v200, %v203
    %v206 = vsel %vm158, %v195, 0
    %208 = vmatprep.subr.mxu0 0.0
    %209 = vmatpush1.msra.mxu0 %v196
    %210 = vmatprep.subr.mxu0 0.0
    %211 = vmatpush1.msra.mxu0 %v197
    %212 = vmatprep.subr.mxu0 0.0
    %213 = vmatpush1.msra.mxu0 %v198
    %214 = vmatprep.subr.mxu0 0.0
    %215 = vmatpush1.msra.mxu0 %v199
    %216 = vmatprep.subr.mxu0 0.0
    %217 = vmatpush1.msra.mxu0 0.0
    %218 = vmatprep.subr.mxu0 0.0
    %219 = vmatpush1.msra.mxu0 0.0
    %220 = vmatprep.subr.mxu0 0.0
    %221 = vmatpush1.msra.mxu0 0.0
    %222 = vmatprep.subr.mxu0 0.0
    %223 = vmatpush1.msra.mxu0 0.0
    %224 = vmatprep.subr.mxu0 0.0
    %225 = vmatpush1.msra.mxu0 0.0
    %226 = vmatprep.subr.mxu0 0.0
    %227 = vmatpush1.msra.mxu0 0.0
    %228 = vmatprep.subr.mxu0 0.0
    %229 = vmatpush1.msra.mxu0 0.0
    %230 = vmatprep.subr.mxu0 0.0
    %231 = vmatpush1.msra.mxu0 0.0
    %232 = vmatprep.subr.mxu0 0.0
    %233 = vmatpush1.msra.mxu0 0.0
    %234 = vmatprep.subr.mxu0 0.0
    %235 = vmatpush1.msra.mxu0 0.0
    %236 = vmatprep.subr.mxu0 0.0
    %237 = vmatpush1.msra.mxu0 0.0
    %238 = vmatprep.subr.mxu0 0.0
    %239 = vmatpush1.msra.mxu0 0.0
    %240 = vmatprep.subr.mxu0 0.0
    %241 = vmatpush1.msra.mxu0 0.0
    %242 = vmatprep.subr.mxu0 0.0
    %243 = vmatpush1.msra.mxu0 0.0
    %244 = vmatprep.subr.mxu0 0.0
    %245 = vmatpush1.msra.mxu0 0.0
    %246 = vmatprep.subr.mxu0 0.0
    %247 = vmatpush1.msra.mxu0 0.0
    %248 = vmatprep.subr.mxu0 0.0
    %249 = vmatpush1.msra.mxu0 0.0
    %250 = vmatprep.subr.mxu0 0.0
    %251 = vmatpush1.msra.mxu0 0.0
    %252 = vmatprep.subr.mxu0 0.0
    %253 = vmatpush1.msra.mxu0 0.0
    %254 = vmatprep.subr.mxu0 0.0
    %255 = vmatpush1.msra.mxu0 0.0
    %256 = vmatprep.subr.mxu0 0.0
    %257 = vmatpush1.msra.mxu0 0.0
    %258 = vmatprep.subr.mxu0 0.0
    %259 = vmatpush1.msra.mxu0 0.0
    %260 = vmatprep.subr.mxu0 0.0
    %261 = vmatpush1.msra.mxu0 0.0
    %262 = vmatprep.subr.mxu0 0.0
    %263 = vmatpush1.msra.mxu0 0.0
    %264 = vmatprep.subr.mxu0 0.0
    %265 = vmatpush1.msra.mxu0 0.0
    %266 = vmatprep.subr.mxu0 0.0
    %267 = vmatpush1.msra.mxu0 0.0
    %268 = vmatprep.subr.mxu0 0.0
    %269 = vmatpush1.msra.mxu0 0.0
    %270 = vmatprep.subr.mxu0 0.0
    %271 = vmatpush1.msra.mxu0 0.0
    %272 = vmatprep.mubr.f32.mxu0 0.0
    %273 = vmatmul.mubr.f32.gmra.mrb[0].mxu0 %v206
    %v274 = vpop.f32.mrb[0].mxu0
    %v275 = vadd.f32 %v204, %v274
    %v276 = vpop.f32.mrb[0].mxu0
    %277 = vdwg.mxu0
    %v278 = vmul.f32 %v275, 0.5
    %v279 = vmax.f32 %v275, %v278
    %v280 = vsel %vm158, %v279, 0.0
    %v281 = vrot.slane %v280, 4
    %v282 = vadd.f32 %v280, %v281
    %v283 = vrot.slane %v282, 2
    %v284 = vadd.f32 %v282, %v283
    %v285 = vrot.slane %v284, 1
    %v286 = vadd.f32 %v284, %v285
    %v287 = vmul.f32 %v279, %v279
    %v288 = vsel %vm158, %v287, 0.0
    %v289 = vrot.slane %v288, 4
    %v290 = vadd.f32 %v288, %v289
    %v291 = vrot.slane %v290, 2
    %v292 = vadd.f32 %v290, %v291
    %v293 = vrot.slane %v292, 1
    %v294 = vadd.f32 %v292, %v293
    %v295 = vmul.f32 %v286, 0.125
    %v296 = vmul.f32 %v294, 0.125
    %v297 = vmul.f32 %v295, %v295
    %v298 = vsub.f32 %v296, %v297
    %v299 = vmax.f32 %v298, 0.0
    %v300 = vld [vmem:[%s5 + $0x1] sm:$0x1]
    %v301 = vadd.f32 %v299, 1e-05
    %v302 = vrsqrt.pop %v301
    %v303 = vmul.f32 %v300, %v302
    %v304 = vld [vmem:[#allocation7 + $0x1] sm:$0x1]
    %v305 = vmul.f32 %v303, %v295
    %v306 = vsub.f32 %v304, %v305
    %v307 = vlaneseq
    %v308 = vshrl.u32 %v307, 7
    %v309 = vsub.s32 0, %v308
    %v310 = vrot.slane %v303, %v309
    %v311 = vmul.f32 %v279, %v310
    %v312 = vlaneseq
    %v313 = vshrl.u32 %v312, 7
    %v314 = vsub.s32 0, %v313
    %v315 = vrot.slane %v306, %v314
    %v316 = vadd.f32 %v311, %v315
    %s317 = scalar_lea.vmem [#allocation5], 32
    %v318 = vld [vmem:[%s317] sm:$0xff]
    %v319 = vld [vmem:[%s317 + $0x8] sm:$0xff]
    %v320 = vld [vmem:[%s317 + $0x10] sm:$0xff]
    %v321 = vld [vmem:[%s317 + $0x18] sm:$0xff]
    %v322 = vld [vmem:[%s4 + $0x1] sm:$0x1]
    %v323 = vlaneseq
    %v324 = vshrl.u32 %v323, 7
    %v325 = vsub.s32 0, %v324
    %v326 = vrot.slane %v322, %v325
    %v328 = vsel %vm158, %v316, 0
    %330 = vmatprep.subr.mxu0 0.0
    %331 = vmatpush1.msra.mxu0 %v318
    %332 = vmatprep.subr.mxu0 0.0
    %333 = vmatpush1.msra.mxu0 %v319
    %334 = vmatprep.subr.mxu0 0.0
    %335 = vmatpush1.msra.mxu0 %v320
    %336 = vmatprep.subr.mxu0 0.0
    %337 = vmatpush1.msra.mxu0 %v321
    %338 = vmatprep.subr.mxu0 0.0
    %339 = vmatpush1.msra.mxu0 0.0
    %340 = vmatprep.subr.mxu0 0.0
    %341 = vmatpush1.msra.mxu0 0.0
    %342 = vmatprep.subr.mxu0 0.0
    %343 = vmatpush1.msra.mxu0 0.0
    %344 = vmatprep.subr.mxu0 0.0
    %345 = vmatpush1.msra.mxu0 0.0
    %346 = vmatprep.subr.mxu0 0.0
    %347 = vmatpush1.msra.mxu0 0.0
    %348 = vmatprep.subr.mxu0 0.0
    %349 = vmatpush1.msra.mxu0 0.0
    %350 = vmatprep.subr.mxu0 0.0
    %351 = vmatpush1.msra.mxu0 0.0
    %352 = vmatprep.subr.mxu0 0.0
    %353 = vmatpush1.msra.mxu0 0.0
    %354 = vmatprep.subr.mxu0 0.0
    %355 = vmatpush1.msra.mxu0 0.0
    %356 = vmatprep.subr.mxu0 0.0
    %357 = vmatpush1.msra.mxu0 0.0
    %358 = vmatprep.subr.mxu0 0.0
    %359 = vmatpush1.msra.mxu0 0.0
    %360 = vmatprep.subr.mxu0 0.0
    %361 = vmatpush1.msra.mxu0 0.0
    %362 = vmatprep.subr.mxu0 0.0
    %363 = vmatpush1.msra.mxu0 0.0
    %364 = vmatprep.subr.mxu0 0.0
    %365 = vmatpush1.msra.mxu0 0.0
    %366 = vmatprep.subr.mxu0 0.0
    %367 = vmatpush1.msra.mxu0 0.0
    %368 = vmatprep.subr.mxu0 0.0
    %369 = vmatpush1.msra.mxu0 0.0
    %370 = vmatprep.subr.mxu0 0.0
    %371 = vmatpush1.msra.mxu0 0.0
    %372 = vmatprep.subr.mxu0 0.0
    %373 = vmatpush1.msra.mxu0 0.0
    %374 = vmatprep.subr.mxu0 0.0
    %375 = vmatpush1.msra.mxu0 0.0
    %376 = vmatprep.subr.mxu0 0.0
    %377 = vmatpush1.msra.mxu0 0.0
    %378 = vmatprep.subr.mxu0 0.0
    %379 = vmatpush1.msra.mxu0 0.0
    %380 = vmatprep.subr.mxu0 0.0
    %381 = vmatpush1.msra.mxu0 0.0
    %382 = vmatprep.subr.mxu0 0.0
    %383 = vmatpush1.msra.mxu0 0.0
    %384 = vmatprep.subr.mxu0 0.0
    %385 = vmatpush1.msra.mxu0 0.0
    %386 = vmatprep.subr.mxu0 0.0
    %387 = vmatpush1.msra.mxu0 0.0
    %388 = vmatprep.subr.mxu0 0.0
    %389 = vmatpush1.msra.mxu0 0.0
    %390 = vmatprep.subr.mxu0 0.0
    %391 = vmatpush1.msra.mxu0 0.0
    %392 = vmatprep.subr.mxu0 0.0
    %393 = vmatpush1.msra.mxu0 0.0
    %394 = vmatprep.mubr.f32.mxu0 0.0
    %395 = vmatmul.mubr.f32.gmra.mrb[0].mxu0 %v328
    %v396 = vpop.f32.mrb[0].mxu0
    %v397 = vadd.f32 %v326, %v396
    %v398 = vpop.f32.mrb[0].mxu0
    %399 = vdwg.mxu0
    %v400 = vmul.f32 %v397, 0.5
    %v401 = vmax.f32 %v397, %v400
    %v402 = vsel %vm158, %v401, 0.0
    %v403 = vrot.slane %v402, 4
    %v404 = vadd.f32 %v402, %v403
    %v405 = vrot.slane %v404, 2
    %v406 = vadd.f32 %v404, %v405
    %v407 = vrot.slane %v406, 1
    %v408 = vadd.f32 %v406, %v407
    %v409 = vmul.f32 %v401, %v401
    %v410 = vsel %vm158, %v409, 0.0
    %v411 = vrot.slane %v410, 4
    %v412 = vadd.f32 %v410, %v411
    %v413 = vrot.slane %v412, 2
    %v414 = vadd.f32 %v412, %v413
    %v415 = vrot.slane %v414, 1
    %v416 = vadd.f32 %v414, %v415
    %v417 = vmul.f32 %v408, 0.125
    %v418 = vmul.f32 %v416, 0.125
    %v419 = vmul.f32 %v417, %v417
    %v420 = vsub.f32 %v418, %v419
    %v421 = vmax.f32 %v420, 0.0
    %v422 = vld [vmem:[%s5 + $0x2] sm:$0x1]
    %v423 = vadd.f32 %v421, 1e-05
    %v424 = vrsqrt.pop %v423
    %v425 = vmul.f32 %v422, %v424
    %v426 = vld [vmem:[#allocation7 + $0x2] sm:$0x1]
    %v427 = vmul.f32 %v425, %v417
    %v428 = vsub.f32 %v426, %v427
    %v429 = vlaneseq
    %v430 = vshrl.u32 %v429, 7
    %v431 = vsub.s32 0, %v430
    %v432 = vrot.slane %v425, %v431
    %v433 = vmul.f32 %v401, %v432
    %v434 = vlaneseq
    %v435 = vshrl.u32 %v434, 7
    %v436 = vsub.s32 0, %v435
    %v437 = vrot.slane %v428, %v436
    %v438 = vadd.f32 %v433, %v437
    %s439 = scalar_lea.vmem [#allocation5], 64
    %v440 = vld [vmem:[%s439] sm:$0xff]
    %v441 = vld [vmem:[%s439 + $0x8] sm:$0xff]
    %v442 = vld [vmem:[%s439 + $0x10] sm:$0xff]
    %v443 = vld [vmem:[%s439 + $0x18] sm:$0xff]
    %v444 = vld [vmem:[%s4 + $0x2] sm:$0x1]
    %v445 = vlaneseq
    %v446 = vshrl.u32 %v445, 7
    %v447 = vsub.s32 0, %v446
    %v448 = vrot.slane %v444, %v447
    %v450 = vsel %vm158, %v438, 0
    %452 = vmatprep.subr.mxu0 0.0
    %453 = vmatpush1.msra.mxu0 %v440
    %454 = vmatprep.subr.mxu0 0.0
    %455 = vmatpush1.msra.mxu0 %v441
    %456 = vmatprep.subr.mxu0 0.0
    %457 = vmatpush1.msra.mxu0 %v442
    %458 = vmatprep.subr.mxu0 0.0
    %459 = vmatpush1.msra.mxu0 %v443
    %460 = vmatprep.subr.mxu0 0.0
    %461 = vmatpush1.msra.mxu0 0.0
    %462 = vmatprep.subr.mxu0 0.0
    %463 = vmatpush1.msra.mxu0 0.0
    %464 = vmatprep.subr.mxu0 0.0
    %465 = vmatpush1.msra.mxu0 0.0
    %466 = vmatprep.subr.mxu0 0.0
    %467 = vmatpush1.msra.mxu0 0.0
    %468 = vmatprep.subr.mxu0 0.0
    %469 = vmatpush1.msra.mxu0 0.0
    %470 = vmatprep.subr.mxu0 0.0
    %471 = vmatpush1.msra.mxu0 0.0
    %472 = vmatprep.subr.mxu0 0.0
    %473 = vmatpush1.msra.mxu0 0.0
    %474 = vmatprep.subr.mxu0 0.0
    %475 = vmatpush1.msra.mxu0 0.0
    %476 = vmatprep.subr.mxu0 0.0
    %477 = vmatpush1.msra.mxu0 0.0
    %478 = vmatprep.subr.mxu0 0.0
    %479 = vmatpush1.msra.mxu0 0.0
    %480 = vmatprep.subr.mxu0 0.0
    %481 = vmatpush1.msra.mxu0 0.0
    %482 = vmatprep.subr.mxu0 0.0
    %483 = vmatpush1.msra.mxu0 0.0
    %484 = vmatprep.subr.mxu0 0.0
    %485 = vmatpush1.msra.mxu0 0.0
    %486 = vmatprep.subr.mxu0 0.0
    %487 = vmatpush1.msra.mxu0 0.0
    %488 = vmatprep.subr.mxu0 0.0
    %489 = vmatpush1.msra.mxu0 0.0
    %490 = vmatprep.subr.mxu0 0.0
    %491 = vmatpush1.msra.mxu0 0.0
    %492 = vmatprep.subr.mxu0 0.0
    %493 = vmatpush1.msra.mxu0 0.0
    %494 = vmatprep.subr.mxu0 0.0
    %495 = vmatpush1.msra.mxu0 0.0
    %496 = vmatprep.subr.mxu0 0.0
    %497 = vmatpush1.msra.mxu0 0.0
    %498 = vmatprep.subr.mxu0 0.0
    %499 = vmatpush1.msra.mxu0 0.0
    %500 = vmatprep.subr.mxu0 0.0
    %501 = vmatpush1.msra.mxu0 0.0
    %502 = vmatprep.subr.mxu0 0.0
    %503 = vmatpush1.msra.mxu0 0.0
    %504 = vmatprep.subr.mxu0 0.0
    %505 = vmatpush1.msra.mxu0 0.0
    %506 = vmatprep.subr.mxu0 0.0
    %507 = vmatpush1.msra.mxu0 0.0
    %508 = vmatprep.subr.mxu0 0.0
    %509 = vmatpush1.msra.mxu0 0.0
    %510 = vmatprep.subr.mxu0 0.0
    %511 = vmatpush1.msra.mxu0 0.0
    %512 = vmatprep.subr.mxu0 0.0
    %513 = vmatpush1.msra.mxu0 0.0
    %514 = vmatprep.subr.mxu0 0.0
    %515 = vmatpush1.msra.mxu0 0.0
    %516 = vmatprep.mubr.f32.mxu0 0.0
    %517 = vmatmul.mubr.f32.gmra.mrb[0].mxu0 %v450
    %v518 = vpop.f32.mrb[0].mxu0
    %v519 = vadd.f32 %v448, %v518
    %v520 = vpop.f32.mrb[0].mxu0
    %521 = vdwg.mxu0
    %v522 = vmul.f32 %v519, 0.5
    %v523 = vmax.f32 %v519, %v522
    %v524 = vsel %vm158, %v523, 0.0
    %v525 = vrot.slane %v524, 4
    %v526 = vadd.f32 %v524, %v525
    %v527 = vrot.slane %v526, 2
    %v528 = vadd.f32 %v526, %v527
    %v529 = vrot.slane %v528, 1
    %v530 = vadd.f32 %v528, %v529
    %v531 = vmul.f32 %v523, %v523
    %v532 = vsel %vm158, %v531, 0.0
    %v533 = vrot.slane %v532, 4
    %v534 = vadd.f32 %v532, %v533
    %v535 = vrot.slane %v534, 2
    %v536 = vadd.f32 %v534, %v535
    %v537 = vrot.slane %v536, 1
    %v538 = vadd.f32 %v536, %v537
    %v539 = vmul.f32 %v530, 0.125
    %v540 = vmul.f32 %v538, 0.125
    %v541 = vmul.f32 %v539, %v539
    %v542 = vsub.f32 %v540, %v541
    %v543 = vmax.f32 %v542, 0.0
    %v544 = vld [vmem:[%s5 + $0x3] sm:$0x1]
    %v545 = vadd.f32 %v543, 1e-05
    %v546 = vrsqrt.pop %v545
    %v547 = vmul.f32 %v544, %v546
    %v548 = vld [vmem:[#allocation7 + $0x3] sm:$0x1]
    %v549 = vmul.f32 %v547, %v539
    %v550 = vsub.f32 %v548, %v549
    %v551 = vlaneseq
    %v552 = vshrl.u32 %v551, 7
    %v553 = vsub.s32 0, %v552
    %v554 = vrot.slane %v547, %v553
    %v555 = vmul.f32 %v523, %v554
    %v556 = vlaneseq
    %v557 = vshrl.u32 %v556, 7
    %v558 = vsub.s32 0, %v557
    %v559 = vrot.slane %v550, %v558
    %v560 = vadd.f32 %v555, %v559
    %s561 = scalar_lea.vmem [#allocation5], 96
    %v562 = vld [vmem:[%s561] sm:$0xff]
    %v563 = vld [vmem:[%s561 + $0x8] sm:$0xff]
    %v564 = vld [vmem:[%s561 + $0x10] sm:$0xff]
    %v565 = vld [vmem:[%s561 + $0x18] sm:$0xff]
    %v566 = vld [vmem:[%s4 + $0x3] sm:$0x1]
    %v567 = vlaneseq
    %v568 = vshrl.u32 %v567, 7
    %v569 = vsub.s32 0, %v568
    %v570 = vrot.slane %v566, %v569
    %v572 = vsel %vm158, %v560, 0
    %574 = vmatprep.subr.mxu0 0.0
    %575 = vmatpush1.msra.mxu0 %v562
    %576 = vmatprep.subr.mxu0 0.0
    %577 = vmatpush1.msra.mxu0 %v563
    %578 = vmatprep.subr.mxu0 0.0
    %579 = vmatpush1.msra.mxu0 %v564
    %580 = vmatprep.subr.mxu0 0.0
    %581 = vmatpush1.msra.mxu0 %v565
    %582 = vmatprep.subr.mxu0 0.0
    %583 = vmatpush1.msra.mxu0 0.0
    %584 = vmatprep.subr.mxu0 0.0
    %585 = vmatpush1.msra.mxu0 0.0
    %586 = vmatprep.subr.mxu0 0.0
    %587 = vmatpush1.msra.mxu0 0.0
    %588 = vmatprep.subr.mxu0 0.0
    %589 = vmatpush1.msra.mxu0 0.0
    %590 = vmatprep.subr.mxu0 0.0
    %591 = vmatpush1.msra.mxu0 0.0
    %592 = vmatprep.subr.mxu0 0.0
    %593 = vmatpush1.msra.mxu0 0.0
    %594 = vmatprep.subr.mxu0 0.0
    %595 = vmatpush1.msra.mxu0 0.0
    %596 = vmatprep.subr.mxu0 0.0
    %597 = vmatpush1.msra.mxu0 0.0
    %598 = vmatprep.subr.mxu0 0.0
    %599 = vmatpush1.msra.mxu0 0.0
    %600 = vmatprep.subr.mxu0 0.0
    %601 = vmatpush1.msra.mxu0 0.0
    %602 = vmatprep.subr.mxu0 0.0
    %603 = vmatpush1.msra.mxu0 0.0
    %604 = vmatprep.subr.mxu0 0.0
    %605 = vmatpush1.msra.mxu0 0.0
    %606 = vmatprep.subr.mxu0 0.0
    %607 = vmatpush1.msra.mxu0 0.0
    %608 = vmatprep.subr.mxu0 0.0
    %609 = vmatpush1.msra.mxu0 0.0
    %610 = vmatprep.subr.mxu0 0.0
    %611 = vmatpush1.msra.mxu0 0.0
    %612 = vmatprep.subr.mxu0 0.0
    %613 = vmatpush1.msra.mxu0 0.0
    %614 = vmatprep.subr.mxu0 0.0
    %615 = vmatpush1.msra.mxu0 0.0
    %616 = vmatprep.subr.mxu0 0.0
    %617 = vmatpush1.msra.mxu0 0.0
    %618 = vmatprep.subr.mxu0 0.0
    %619 = vmatpush1.msra.mxu0 0.0
    %620 = vmatprep.subr.mxu0 0.0
    %621 = vmatpush1.msra.mxu0 0.0
    %622 = vmatprep.subr.mxu0 0.0
    %623 = vmatpush1.msra.mxu0 0.0
    %624 = vmatprep.subr.mxu0 0.0
    %625 = vmatpush1.msra.mxu0 0.0
    %626 = vmatprep.subr.mxu0 0.0
    %627 = vmatpush1.msra.mxu0 0.0
    %628 = vmatprep.subr.mxu0 0.0
    %629 = vmatpush1.msra.mxu0 0.0
    %630 = vmatprep.subr.mxu0 0.0
    %631 = vmatpush1.msra.mxu0 0.0
    %632 = vmatprep.subr.mxu0 0.0
    %633 = vmatpush1.msra.mxu0 0.0
    %634 = vmatprep.subr.mxu0 0.0
    %635 = vmatpush1.msra.mxu0 0.0
    %636 = vmatprep.subr.mxu0 0.0
    %637 = vmatpush1.msra.mxu0 0.0
    %638 = vmatprep.mubr.f32.mxu0 0.0
    %639 = vmatmul.mubr.f32.gmra.mrb[0].mxu0 %v572
    %v640 = vpop.f32.mrb[0].mxu0
    %v641 = vadd.f32 %v570, %v640
    %v642 = vpop.f32.mrb[0].mxu0
    %643 = vdwg.mxu0
    %v644 = vmul.f32 %v641, 0.5
    %v645 = vmax.f32 %v641, %v644
    %v646 = vsel %vm158, %v645, 0.0
    %v647 = vrot.slane %v646, 4
    %v648 = vadd.f32 %v646, %v647
    %v649 = vrot.slane %v648, 2
    %v650 = vadd.f32 %v648, %v649
    %v651 = vrot.slane %v650, 1
    %v652 = vadd.f32 %v650, %v651
    %v653 = vmul.f32 %v645, %v645
    %v654 = vsel %vm158, %v653, 0.0
    %v655 = vrot.slane %v654, 4
    %v656 = vadd.f32 %v654, %v655
    %v657 = vrot.slane %v656, 2
    %v658 = vadd.f32 %v656, %v657
    %v659 = vrot.slane %v658, 1
    %v660 = vadd.f32 %v658, %v659
    %v661 = vmul.f32 %v652, 0.125
    %v662 = vmul.f32 %v660, 0.125
    %v663 = vmul.f32 %v661, %v661
    %v664 = vsub.f32 %v662, %v663
    %v665 = vmax.f32 %v664, 0.0
    %v666 = vld [vmem:[%s5 + $0x4] sm:$0x1]
    %v667 = vadd.f32 %v665, 1e-05
    %v668 = vrsqrt.pop %v667
    %v669 = vmul.f32 %v666, %v668
    %v670 = vld [vmem:[#allocation7 + $0x4] sm:$0x1]
    %v671 = vmul.f32 %v669, %v661
    %v672 = vsub.f32 %v670, %v671
    %v673 = vlaneseq
    %v674 = vshrl.u32 %v673, 7
    %v675 = vsub.s32 0, %v674
    %v676 = vrot.slane %v669, %v675
    %v677 = vmul.f32 %v645, %v676
    %v678 = vlaneseq
    %v679 = vshrl.u32 %v678, 7
    %v680 = vsub.s32 0, %v679
    %v681 = vrot.slane %v672, %v680
    %v682 = vadd.f32 %v677, %v681
    %s683 = scalar_lea.vmem [#allocation5], 128
    %v684 = vld [vmem:[%s683] sm:$0xff]
    %v685 = vld [vmem:[%s683 + $0x8] sm:$0xff]
    %v686 = vld [vmem:[%s683 + $0x10] sm:$0xff]
    %v687 = vld [vmem:[%s683 + $0x18] sm:$0xff]
    %v688 = vld [vmem:[%s4 + $0x4] sm:$0x1]
    %v689 = vlaneseq
    %v690 = vshrl.u32 %v689, 7
    %v691 = vsub.s32 0, %v690
    %v692 = vrot.slane %v688, %v691
    %v694 = vsel %vm158, %v682, 0
    %696 = vmatprep.subr.mxu0 0.0
    %697 = vmatpush1.msra.mxu0 %v684
    %698 = vmatprep.subr.mxu0 0.0
    %699 = vmatpush1.msra.mxu0 %v685
    %700 = vmatprep.subr.mxu0 0.0
    %701 = vmatpush1.msra.mxu0 %v686
    %702 = vmatprep.subr.mxu0 0.0
    %703 = vmatpush1.msra.mxu0 %v687
    %704 = vmatprep.subr.mxu0 0.0
    %705 = vmatpush1.msra.mxu0 0.0
    %706 = vmatprep.subr.mxu0 0.0
    %707 = vmatpush1.msra.mxu0 0.0
    %708 = vmatprep.subr.mxu0 0.0
    %709 = vmatpush1.msra.mxu0 0.0
    %710 = vmatprep.subr.mxu0 0.0
    %711 = vmatpush1.msra.mxu0 0.0
    %712 = vmatprep.subr.mxu0 0.0
    %713 = vmatpush1.msra.mxu0 0.0
    %714 = vmatprep.subr.mxu0 0.0
    %715 = vmatpush1.msra.mxu0 0.0
    %716 = vmatprep.subr.mxu0 0.0
    %717 = vmatpush1.msra.mxu0 0.0
    %718 = vmatprep.subr.mxu0 0.0
    %719 = vmatpush1.msra.mxu0 0.0
    %720 = vmatprep.subr.mxu0 0.0
    %721 = vmatpush1.msra.mxu0 0.0
    %722 = vmatprep.subr.mxu0 0.0
    %723 = vmatpush1.msra.mxu0 0.0
    %724 = vmatprep.subr.mxu0 0.0
    %725 = vmatpush1.msra.mxu0 0.0
    %726 = vmatprep.subr.mxu0 0.0
    %727 = vmatpush1.msra.mxu0 0.0
    %728 = vmatprep.subr.mxu0 0.0
    %729 = vmatpush1.msra.mxu0 0.0
    %730 = vmatprep.subr.mxu0 0.0
    %731 = vmatpush1.msra.mxu0 0.0
    %732 = vmatprep.subr.mxu0 0.0
    %733 = vmatpush1.msra.mxu0 0.0
    %734 = vmatprep.subr.mxu0 0.0
    %735 = vmatpush1.msra.mxu0 0.0
    %736 = vmatprep.subr.mxu0 0.0
    %737 = vmatpush1.msra.mxu0 0.0
    %738 = vmatprep.subr.mxu0 0.0
    %739 = vmatpush1.msra.mxu0 0.0
    %740 = vmatprep.subr.mxu0 0.0
    %741 = vmatpush1.msra.mxu0 0.0
    %742 = vmatprep.subr.mxu0 0.0
    %743 = vmatpush1.msra.mxu0 0.0
    %744 = vmatprep.subr.mxu0 0.0
    %745 = vmatpush1.msra.mxu0 0.0
    %746 = vmatprep.subr.mxu0 0.0
    %747 = vmatpush1.msra.mxu0 0.0
    %748 = vmatprep.subr.mxu0 0.0
    %749 = vmatpush1.msra.mxu0 0.0
    %750 = vmatprep.subr.mxu0 0.0
    %751 = vmatpush1.msra.mxu0 0.0
    %752 = vmatprep.subr.mxu0 0.0
    %753 = vmatpush1.msra.mxu0 0.0
    %754 = vmatprep.subr.mxu0 0.0
    %755 = vmatpush1.msra.mxu0 0.0
    %756 = vmatprep.subr.mxu0 0.0
    %757 = vmatpush1.msra.mxu0 0.0
    %758 = vmatprep.subr.mxu0 0.0
    %759 = vmatpush1.msra.mxu0 0.0
    %760 = vmatprep.mubr.f32.mxu0 0.0
    %761 = vmatmul.mubr.f32.gmra.mrb[0].mxu0 %v694
    %v762 = vpop.f32.mrb[0].mxu0
    %v763 = vadd.f32 %v692, %v762
    %v764 = vpop.f32.mrb[0].mxu0
    %765 = vdwg.mxu0
    %v766 = vmul.f32 %v763, 0.5
    %v767 = vmax.f32 %v763, %v766
    %v768 = vsel %vm158, %v767, 0.0
    %v769 = vrot.slane %v768, 4
    %v770 = vadd.f32 %v768, %v769
    %v771 = vrot.slane %v770, 2
    %v772 = vadd.f32 %v770, %v771
    %v773 = vrot.slane %v772, 1
    %v774 = vadd.f32 %v772, %v773
    %v775 = vmul.f32 %v767, %v767
    %v776 = vsel %vm158, %v775, 0.0
    %v777 = vrot.slane %v776, 4
    %v778 = vadd.f32 %v776, %v777
    %v779 = vrot.slane %v778, 2
    %v780 = vadd.f32 %v778, %v779
    %v781 = vrot.slane %v780, 1
    %v782 = vadd.f32 %v780, %v781
    %v783 = vmul.f32 %v774, 0.125
    %v784 = vmul.f32 %v782, 0.125
    %v785 = vmul.f32 %v783, %v783
    %v786 = vsub.f32 %v784, %v785
    %v787 = vmax.f32 %v786, 0.0
    %v788 = vld [vmem:[%s5 + $0x5] sm:$0x1]
    %v789 = vadd.f32 %v787, 1e-05
    %v790 = vrsqrt.pop %v789
    %v791 = vmul.f32 %v788, %v790
    %v792 = vld [vmem:[#allocation7 + $0x5] sm:$0x1]
    %v793 = vmul.f32 %v791, %v783
    %v794 = vsub.f32 %v792, %v793
    %v795 = vlaneseq
    %v796 = vshrl.u32 %v795, 7
    %v797 = vsub.s32 0, %v796
    %v798 = vrot.slane %v791, %v797
    %v799 = vmul.f32 %v767, %v798
    %v800 = vlaneseq
    %v801 = vshrl.u32 %v800, 7
    %v802 = vsub.s32 0, %v801
    %v803 = vrot.slane %v794, %v802
    %v804 = vadd.f32 %v799, %v803
    %s805 = scalar_lea.vmem [#allocation5], 160
    %v806 = vld [vmem:[%s805] sm:$0xff]
    %v807 = vld [vmem:[%s805 + $0x8] sm:$0xff]
    %v808 = vld [vmem:[%s805 + $0x10] sm:$0xff]
    %v809 = vld [vmem:[%s805 + $0x18] sm:$0xff]
    %v810 = vld [vmem:[%s4 + $0x5] sm:$0x1]
    %v811 = vlaneseq
    %v812 = vshrl.u32 %v811, 7
    %v813 = vsub.s32 0, %v812
    %v814 = vrot.slane %v810, %v813
    %v816 = vsel %vm158, %v804, 0
    %818 = vmatprep.subr.mxu0 0.0
    %819 = vmatpush1.msra.mxu0 %v806
    %820 = vmatprep.subr.mxu0 0.0
    %821 = vmatpush1.msra.mxu0 %v807
    %822 = vmatprep.subr.mxu0 0.0
    %823 = vmatpush1.msra.mxu0 %v808
    %824 = vmatprep.subr.mxu0 0.0
    %825 = vmatpush1.msra.mxu0 %v809
    %826 = vmatprep.subr.mxu0 0.0
    %827 = vmatpush1.msra.mxu0 0.0
    %828 = vmatprep.subr.mxu0 0.0
    %829 = vmatpush1.msra.mxu0 0.0
    %830 = vmatprep.subr.mxu0 0.0
    %831 = vmatpush1.msra.mxu0 0.0
    %832 = vmatprep.subr.mxu0 0.0
    %833 = vmatpush1.msra.mxu0 0.0
    %834 = vmatprep.subr.mxu0 0.0
    %835 = vmatpush1.msra.mxu0 0.0
    %836 = vmatprep.subr.mxu0 0.0
    %837 = vmatpush1.msra.mxu0 0.0
    %838 = vmatprep.subr.mxu0 0.0
    %839 = vmatpush1.msra.mxu0 0.0
    %840 = vmatprep.subr.mxu0 0.0
    %841 = vmatpush1.msra.mxu0 0.0
    %842 = vmatprep.subr.mxu0 0.0
    %843 = vmatpush1.msra.mxu0 0.0
    %844 = vmatprep.subr.mxu0 0.0
    %845 = vmatpush1.msra.mxu0 0.0
    %846 = vmatprep.subr.mxu0 0.0
    %847 = vmatpush1.msra.mxu0 0.0
    %848 = vmatprep.subr.mxu0 0.0
    %849 = vmatpush1.msra.mxu0 0.0
    %850 = vmatprep.subr.mxu0 0.0
    %851 = vmatpush1.msra.mxu0 0.0
    %852 = vmatprep.subr.mxu0 0.0
    %853 = vmatpush1.msra.mxu0 0.0
    %854 = vmatprep.subr.mxu0 0.0
    %855 = vmatpush1.msra.mxu0 0.0
    %856 = vmatprep.subr.mxu0 0.0
    %857 = vmatpush1.msra.mxu0 0.0
    %858 = vmatprep.subr.mxu0 0.0
    %859 = vmatpush1.msra.mxu0 0.0
    %860 = vmatprep.subr.mxu0 0.0
    %861 = vmatpush1.msra.mxu0 0.0
    %862 = vmatprep.subr.mxu0 0.0
    %863 = vmatpush1.msra.mxu0 0.0
    %864 = vmatprep.subr.mxu0 0.0
    %865 = vmatpush1.msra.mxu0 0.0
    %866 = vmatprep.subr.mxu0 0.0
    %867 = vmatpush1.msra.mxu0 0.0
    %868 = vmatprep.subr.mxu0 0.0
    %869 = vmatpush1.msra.mxu0 0.0
    %870 = vmatprep.subr.mxu0 0.0
    %871 = vmatpush1.msra.mxu0 0.0
    %872 = vmatprep.subr.mxu0 0.0
    %873 = vmatpush1.msra.mxu0 0.0
    %874 = vmatprep.subr.mxu0 0.0
    %875 = vmatpush1.msra.mxu0 0.0
    %876 = vmatprep.subr.mxu0 0.0
    %877 = vmatpush1.msra.mxu0 0.0
    %878 = vmatprep.subr.mxu0 0.0
    %879 = vmatpush1.msra.mxu0 0.0
    %880 = vmatprep.subr.mxu0 0.0
    %881 = vmatpush1.msra.mxu0 0.0
    %882 = vmatprep.mubr.f32.mxu0 0.0
    %883 = vmatmul.mubr.f32.gmra.mrb[0].mxu0 %v816
    %v884 = vpop.f32.mrb[0].mxu0
    %v885 = vadd.f32 %v814, %v884
    %v886 = vpop.f32.mrb[0].mxu0
    %887 = vdwg.mxu0
    %v888 = vmul.f32 %v885, 0.5
    %v889 = vmax.f32 %v885, %v888
    %v890 = vsel %vm158, %v889, 0.0
    %v891 = vrot.slane %v890, 4
    %v892 = vadd.f32 %v890, %v891
    %v893 = vrot.slane %v892, 2
    %v894 = vadd.f32 %v892, %v893
    %v895 = vrot.slane %v894, 1
    %v896 = vadd.f32 %v894, %v895
    %v897 = vmul.f32 %v889, %v889
    %v898 = vsel %vm158, %v897, 0.0
    %v899 = vrot.slane %v898, 4
    %v900 = vadd.f32 %v898, %v899
    %v901 = vrot.slane %v900, 2
    %v902 = vadd.f32 %v900, %v901
    %v903 = vrot.slane %v902, 1
    %v904 = vadd.f32 %v902, %v903
    %v905 = vmul.f32 %v896, 0.125
    %v906 = vmul.f32 %v904, 0.125
    %v907 = vmul.f32 %v905, %v905
    %v908 = vsub.f32 %v906, %v907
    %v909 = vmax.f32 %v908, 0.0
    %v910 = vld [vmem:[%s5 + $0x6] sm:$0x1]
    %v911 = vadd.f32 %v909, 1e-05
    %v912 = vrsqrt.pop %v911
    %v913 = vmul.f32 %v910, %v912
    %v914 = vld [vmem:[#allocation7 + $0x6] sm:$0x1]
    %v915 = vmul.f32 %v913, %v905
    %v916 = vsub.f32 %v914, %v915
    %v917 = vlaneseq
    %v918 = vshrl.u32 %v917, 7
    %v919 = vsub.s32 0, %v918
    %v920 = vrot.slane %v913, %v919
    %v921 = vmul.f32 %v889, %v920
    %v922 = vlaneseq
    %v923 = vshrl.u32 %v922, 7
    %v924 = vsub.s32 0, %v923
    %v925 = vrot.slane %v916, %v924
    %v926 = vadd.f32 %v921, %v925
    %s927 = scalar_lea.vmem [#allocation5], 192
    %v928 = vld [vmem:[%s927] sm:$0xff]
    %v929 = vld [vmem:[%s927 + $0x8] sm:$0xff]
    %v930 = vld [vmem:[%s927 + $0x10] sm:$0xff]
    %v931 = vld [vmem:[%s927 + $0x18] sm:$0xff]
    %v932 = vld [vmem:[%s4 + $0x6] sm:$0x1]
    %v933 = vlaneseq
    %v934 = vshrl.u32 %v933, 7
    %v935 = vsub.s32 0, %v934
    %v936 = vrot.slane %v932, %v935
    %v938 = vsel %vm158, %v926, 0
    %940 = vmatprep.subr.mxu0 0.0
    %941 = vmatpush1.msra.mxu0 %v928
    %942 = vmatprep.subr.mxu0 0.0
    %943 = vmatpush1.msra.mxu0 %v929
    %944 = vmatprep.subr.mxu0 0.0
    %945 = vmatpush1.msra.mxu0 %v930
    %946 = vmatprep.subr.mxu0 0.0
    %947 = vmatpush1.msra.mxu0 %v931
    %948 = vmatprep.subr.mxu0 0.0
    %949 = vmatpush1.msra.mxu0 0.0
    %950 = vmatprep.subr.mxu0 0.0
    %951 = vmatpush1.msra.mxu0 0.0
    %952 = vmatprep.subr.mxu0 0.0
    %953 = vmatpush1.msra.mxu0 0.0
    %954 = vmatprep.subr.mxu0 0.0
    %955 = vmatpush1.msra.mxu0 0.0
    %956 = vmatprep.subr.mxu0 0.0
    %957 = vmatpush1.msra.mxu0 0.0
    %958 = vmatprep.subr.mxu0 0.0
    %959 = vmatpush1.msra.mxu0 0.0
    %960 = vmatprep.subr.mxu0 0.0
    %961 = vmatpush1.msra.mxu0 0.0
    %962 = vmatprep.subr.mxu0 0.0
    %963 = vmatpush1.msra.mxu0 0.0
    %964 = vmatprep.subr.mxu0 0.0
    %965 = vmatpush1.msra.mxu0 0.0
    %966 = vmatprep.subr.mxu0 0.0
    %967 = vmatpush1.msra.mxu0 0.0
    %968 = vmatprep.subr.mxu0 0.0
    %969 = vmatpush1.msra.mxu0 0.0
    %970 = vmatprep.subr.mxu0 0.0
    %971 = vmatpush1.msra.mxu0 0.0
    %972 = vmatprep.subr.mxu0 0.0
    %973 = vmatpush1.msra.mxu0 0.0
    %974 = vmatprep.subr.mxu0 0.0
    %975 = vmatpush1.msra.mxu0 0.0
    %976 = vmatprep.subr.mxu0 0.0
    %977 = vmatpush1.msra.mxu0 0.0
    %978 = vmatprep.subr.mxu0 0.0
    %979 = vmatpush1.msra.mxu0 0.0
    %980 = vmatprep.subr.mxu0 0.0
    %981 = vmatpush1.msra.mxu0 0.0
    %982 = vmatprep.subr.mxu0 0.0
    %983 = vmatpush1.msra.mxu0 0.0
    %984 = vmatprep.subr.mxu0 0.0
    %985 = vmatpush1.msra.mxu0 0.0
    %986 = vmatprep.subr.mxu0 0.0
    %987 = vmatpush1.msra.mxu0 0.0
    %988 = vmatprep.subr.mxu0 0.0
    %989 = vmatpush1.msra.mxu0 0.0
    %990 = vmatprep.subr.mxu0 0.0
    %991 = vmatpush1.msra.mxu0 0.0
    %992 = vmatprep.subr.mxu0 0.0
    %993 = vmatpush1.msra.mxu0 0.0
    %994 = vmatprep.subr.mxu0 0.0
    %995 = vmatpush1.msra.mxu0 0.0
    %996 = vmatprep.subr.mxu0 0.0
    %997 = vmatpush1.msra.mxu0 0.0
    %998 = vmatprep.subr.mxu0 0.0
    %999 = vmatpush1.msra.mxu0 0.0
    %1000 = vmatprep.subr.mxu0 0.0
    %1001 = vmatpush1.msra.mxu0 0.0
    %1002 = vmatprep.subr.mxu0 0.0
    %1003 = vmatpush1.msra.mxu0 0.0
    %1004 = vmatprep.mubr.f32.mxu0 0.0
    %1005 = vmatmul.mubr.f32.gmra.mrb[0].mxu0 %v938
    %v1006 = vpop.f32.mrb[0].mxu0
    %v1007 = vadd.f32 %v936, %v1006
    %v1008 = vpop.f32.mrb[0].mxu0
    %1009 = vdwg.mxu0
    %v1010 = vmul.f32 %v1007, 0.5
    %v1011 = vmax.f32 %v1007, %v1010
    %v1012 = vsel %vm158, %v1011, 0.0
    %v1013 = vrot.slane %v1012, 4
    %v1014 = vadd.f32 %v1012, %v1013
    %v1015 = vrot.slane %v1014, 2
    %v1016 = vadd.f32 %v1014, %v1015
    %v1017 = vrot.slane %v1016, 1
    %v1018 = vadd.f32 %v1016, %v1017
    %v1019 = vmul.f32 %v1011, %v1011
    %v1020 = vsel %vm158, %v1019, 0.0
    %v1021 = vrot.slane %v1020, 4
    %v1022 = vadd.f32 %v1020, %v1021
    %v1023 = vrot.slane %v1022, 2
    %v1024 = vadd.f32 %v1022, %v1023
    %v1025 = vrot.slane %v1024, 1
    %v1026 = vadd.f32 %v1024, %v1025
    %v1027 = vmul.f32 %v1018, 0.125
    %v1028 = vmul.f32 %v1026, 0.125
    %v1029 = vmul.f32 %v1027, %v1027
    %v1030 = vsub.f32 %v1028, %v1029
    %v1031 = vmax.f32 %v1030, 0.0
    %v1032 = vld [vmem:[%s5 + $0x7] sm:$0x1]
    %v1033 = vadd.f32 %v1031, 1e-05
    %v1034 = vrsqrt.pop %v1033
    %v1035 = vmul.f32 %v1032, %v1034
    %v1036 = vld [vmem:[#allocation7 + $0x7] sm:$0x1]
    %v1037 = vmul.f32 %v1035, %v1027
    %v1038 = vsub.f32 %v1036, %v1037
    %v1039 = vlaneseq
    %v1040 = vshrl.u32 %v1039, 7
    %v1041 = vsub.s32 0, %v1040
    %v1042 = vrot.slane %v1035, %v1041
    %v1043 = vmul.f32 %v1011, %v1042
    %v1044 = vlaneseq
    %v1045 = vshrl.u32 %v1044, 7
    %v1046 = vsub.s32 0, %v1045
    %v1047 = vrot.slane %v1038, %v1046
    %v1048 = vadd.f32 %v1043, %v1047
    %s1049 = scalar_lea.vmem [#allocation5], 224
    %v1050 = vld [vmem:[%s1049] sm:$0xff]
    %v1051 = vld [vmem:[%s1049 + $0x8] sm:$0xff]
    %v1052 = vld [vmem:[%s1049 + $0x10] sm:$0xff]
    %v1053 = vld [vmem:[%s1049 + $0x18] sm:$0xff]
    %v1054 = vld [vmem:[%s4 + $0x7] sm:$0x1]
    %v1055 = vlaneseq
    %v1056 = vshrl.u32 %v1055, 7
    %v1057 = vsub.s32 0, %v1056
    %v1058 = vrot.slane %v1054, %v1057
    %v1060 = vsel %vm158, %v1048, 0
    %1062 = vmatprep.subr.mxu0 0.0
    %1063 = vmatpush1.msra.mxu0 %v1050
    %1064 = vmatprep.subr.mxu0 0.0
    %1065 = vmatpush1.msra.mxu0 %v1051
    %1066 = vmatprep.subr.mxu0 0.0
    %1067 = vmatpush1.msra.mxu0 %v1052
    %1068 = vmatprep.subr.mxu0 0.0
    %1069 = vmatpush1.msra.mxu0 %v1053
    %1070 = vmatprep.subr.mxu0 0.0
    %1071 = vmatpush1.msra.mxu0 0.0
    %1072 = vmatprep.subr.mxu0 0.0
    %1073 = vmatpush1.msra.mxu0 0.0
    %1074 = vmatprep.subr.mxu0 0.0
    %1075 = vmatpush1.msra.mxu0 0.0
    %1076 = vmatprep.subr.mxu0 0.0
    %1077 = vmatpush1.msra.mxu0 0.0
    %1078 = vmatprep.subr.mxu0 0.0
    %1079 = vmatpush1.msra.mxu0 0.0
    %1080 = vmatprep.subr.mxu0 0.0
    %1081 = vmatpush1.msra.mxu0 0.0
    %1082 = vmatprep.subr.mxu0 0.0
    %1083 = vmatpush1.msra.mxu0 0.0
    %1084 = vmatprep.subr.mxu0 0.0
    %1085 = vmatpush1.msra.mxu0 0.0
    %1086 = vmatprep.subr.mxu0 0.0
    %1087 = vmatpush1.msra.mxu0 0.0
    %1088 = vmatprep.subr.mxu0 0.0
    %1089 = vmatpush1.msra.mxu0 0.0
    %1090 = vmatprep.subr.mxu0 0.0
    %1091 = vmatpush1.msra.mxu0 0.0
    %1092 = vmatprep.subr.mxu0 0.0
    %1093 = vmatpush1.msra.mxu0 0.0
    %1094 = vmatprep.subr.mxu0 0.0
    %1095 = vmatpush1.msra.mxu0 0.0
    %1096 = vmatprep.subr.mxu0 0.0
    %1097 = vmatpush1.msra.mxu0 0.0
    %1098 = vmatprep.subr.mxu0 0.0
    %1099 = vmatpush1.msra.mxu0 0.0
    %1100 = vmatprep.subr.mxu0 0.0
    %1101 = vmatpush1.msra.mxu0 0.0
    %1102 = vmatprep.subr.mxu0 0.0
    %1103 = vmatpush1.msra.mxu0 0.0
    %1104 = vmatprep.subr.mxu0 0.0
    %1105 = vmatpush1.msra.mxu0 0.0
    %1106 = vmatprep.subr.mxu0 0.0
    %1107 = vmatpush1.msra.mxu0 0.0
    %1108 = vmatprep.subr.mxu0 0.0
    %1109 = vmatpush1.msra.mxu0 0.0
    %1110 = vmatprep.subr.mxu0 0.0
    %1111 = vmatpush1.msra.mxu0 0.0
    %1112 = vmatprep.subr.mxu0 0.0
    %1113 = vmatpush1.msra.mxu0 0.0
    %1114 = vmatprep.subr.mxu0 0.0
    %1115 = vmatpush1.msra.mxu0 0.0
    %1116 = vmatprep.subr.mxu0 0.0
    %1117 = vmatpush1.msra.mxu0 0.0
    %1118 = vmatprep.subr.mxu0 0.0
    %1119 = vmatpush1.msra.mxu0 0.0
    %1120 = vmatprep.subr.mxu0 0.0
    %1121 = vmatpush1.msra.mxu0 0.0
    %1122 = vmatprep.subr.mxu0 0.0
    %1123 = vmatpush1.msra.mxu0 0.0
    %1124 = vmatprep.subr.mxu0 0.0
    %1125 = vmatpush1.msra.mxu0 0.0
    %1126 = vmatprep.mubr.f32.mxu0 0.0
    %1127 = vmatmul.mubr.f32.gmra.mrb[0].mxu0 %v1060
    %v1128 = vpop.f32.mrb[0].mxu0
    %v1129 = vadd.f32 %v1058, %v1128
    %v1130 = vpop.f32.mrb[0].mxu0
    %1131 = vdwg.mxu0
    %v1132 = vmul.f32 %v1129, 0.5
    %v1133 = vmax.f32 %v1129, %v1132
    %v1134 = vsel %vm158, %v1133, 0.0
    %v1135 = vrot.slane %v1134, 4
    %v1136 = vadd.f32 %v1134, %v1135
    %v1137 = vrot.slane %v1136, 2
    %v1138 = vadd.f32 %v1136, %v1137
    %v1139 = vrot.slane %v1138, 1
    %v1140 = vadd.f32 %v1138, %v1139
    %v1141 = vmul.f32 %v1133, %v1133
    %v1142 = vsel %vm158, %v1141, 0.0
    %v1143 = vrot.slane %v1142, 4
    %v1144 = vadd.f32 %v1142, %v1143
    %v1145 = vrot.slane %v1144, 2
    %v1146 = vadd.f32 %v1144, %v1145
    %v1147 = vrot.slane %v1146, 1
    %v1148 = vadd.f32 %v1146, %v1147
    %v1149 = vmul.f32 %v1140, 0.125
    %v1150 = vmul.f32 %v1148, 0.125
    %v1151 = vmul.f32 %v1149, %v1149
    %v1152 = vsub.f32 %v1150, %v1151
    %v1153 = vmax.f32 %v1152, 0.0
    %v1154 = vld [vmem:[%s5 + $0x8] sm:$0x1]
    %v1155 = vadd.f32 %v1153, 1e-05
    %v1156 = vrsqrt.pop %v1155
    %v1157 = vmul.f32 %v1154, %v1156
    %v1158 = vld [vmem:[#allocation7 + $0x8] sm:$0x1]
    %v1159 = vmul.f32 %v1157, %v1149
    %v1160 = vsub.f32 %v1158, %v1159
    %v1161 = vlaneseq
    %v1162 = vshrl.u32 %v1161, 7
    %v1163 = vsub.s32 0, %v1162
    %v1164 = vrot.slane %v1157, %v1163
    %v1165 = vmul.f32 %v1133, %v1164
    %v1166 = vlaneseq
    %v1167 = vshrl.u32 %v1166, 7
    %v1168 = vsub.s32 0, %v1167
    %v1169 = vrot.slane %v1160, %v1168
    %v1170 = vadd.f32 %v1165, %v1169
    %s1171 = scalar_lea.vmem [#allocation5], 256
    %v1172 = vld [vmem:[%s1171] sm:$0xff]
    %v1173 = vld [vmem:[%s1171 + $0x8] sm:$0xff]
    %v1174 = vld [vmem:[%s1171 + $0x10] sm:$0xff]
    %v1175 = vld [vmem:[%s1171 + $0x18] sm:$0xff]
    %v1176 = vld [vmem:[%s4 + $0x8] sm:$0x1]
    %v1177 = vlaneseq
    %v1178 = vshrl.u32 %v1177, 7
    %v1179 = vsub.s32 0, %v1178
    %v1180 = vrot.slane %v1176, %v1179
    %v1182 = vsel %vm158, %v1170, 0
    %1184 = vmatprep.subr.mxu0 0.0
    %1185 = vmatpush1.msra.mxu0 %v1172
    %1186 = vmatprep.subr.mxu0 0.0
    %1187 = vmatpush1.msra.mxu0 %v1173
    %1188 = vmatprep.subr.mxu0 0.0
    %1189 = vmatpush1.msra.mxu0 %v1174
    %1190 = vmatprep.subr.mxu0 0.0
    %1191 = vmatpush1.msra.mxu0 %v1175
    %1192 = vmatprep.subr.mxu0 0.0
    %1193 = vmatpush1.msra.mxu0 0.0
    %1194 = vmatprep.subr.mxu0 0.0
    %1195 = vmatpush1.msra.mxu0 0.0
    %1196 = vmatprep.subr.mxu0 0.0
    %1197 = vmatpush1.msra.mxu0 0.0
    %1198 = vmatprep.subr.mxu0 0.0
    %1199 = vmatpush1.msra.mxu0 0.0
    %1200 = vmatprep.subr.mxu0 0.0
    %1201 = vmatpush1.msra.mxu0 0.0
    %1202 = vmatprep.subr.mxu0 0.0
    %1203 = vmatpush1.msra.mxu0 0.0
    %1204 = vmatprep.subr.mxu0 0.0
    %1205 = vmatpush1.msra.mxu0 0.0
    %1206 = vmatprep.subr.mxu0 0.0
    %1207 = vmatpush1.msra.mxu0 0.0
    %1208 = vmatprep.subr.mxu0 0.0
    %1209 = vmatpush1.msra.mxu0 0.0
    %1210 = vmatprep.subr.mxu0 0.0
    %1211 = vmatpush1.msra.mxu0 0.0
    %1212 = vmatprep.subr.mxu0 0.0
    %1213 = vmatpush1.msra.mxu0 0.0
    %1214 = vmatprep.subr.mxu0 0.0
    %1215 = vmatpush1.msra.mxu0 0.0
    %1216 = vmatprep.subr.mxu0 0.0
    %1217 = vmatpush1.msra.mxu0 0.0
    %1218 = vmatprep.subr.mxu0 0.0
    %1219 = vmatpush1.msra.mxu0 0.0
    %1220 = vmatprep.subr.mxu0 0.0
    %1221 = vmatpush1.msra.mxu0 0.0
    %1222 = vmatprep.subr.mxu0 0.0
    %1223 = vmatpush1.msra.mxu0 0.0
    %1224 = vmatprep.subr.mxu0 0.0
    %1225 = vmatpush1.msra.mxu0 0.0
    %1226 = vmatprep.subr.mxu0 0.0
    %1227 = vmatpush1.msra.mxu0 0.0
    %1228 = vmatprep.subr.mxu0 0.0
    %1229 = vmatpush1.msra.mxu0 0.0
    %1230 = vmatprep.subr.mxu0 0.0
    %1231 = vmatpush1.msra.mxu0 0.0
    %1232 = vmatprep.subr.mxu0 0.0
    %1233 = vmatpush1.msra.mxu0 0.0
    %1234 = vmatprep.subr.mxu0 0.0
    %1235 = vmatpush1.msra.mxu0 0.0
    %1236 = vmatprep.subr.mxu0 0.0
    %1237 = vmatpush1.msra.mxu0 0.0
    %1238 = vmatprep.subr.mxu0 0.0
    %1239 = vmatpush1.msra.mxu0 0.0
    %1240 = vmatprep.subr.mxu0 0.0
    %1241 = vmatpush1.msra.mxu0 0.0
    %1242 = vmatprep.subr.mxu0 0.0
    %1243 = vmatpush1.msra.mxu0 0.0
    %1244 = vmatprep.subr.mxu0 0.0
    %1245 = vmatpush1.msra.mxu0 0.0
    %1246 = vmatprep.subr.mxu0 0.0
    %1247 = vmatpush1.msra.mxu0 0.0
    %1248 = vmatprep.mubr.f32.mxu0 0.0
    %1249 = vmatmul.mubr.f32.gmra.mrb[0].mxu0 %v1182
    %v1250 = vpop.f32.mrb[0].mxu0
    %v1251 = vadd.f32 %v1180, %v1250
    %v1252 = vpop.f32.mrb[0].mxu0
    %1253 = vdwg.mxu0
    %v1254 = vmul.f32 %v1251, 0.5
    %v1255 = vmax.f32 %v1251, %v1254
    %v1256 = vsel %vm158, %v1255, 0.0
    %v1257 = vrot.slane %v1256, 4
    %v1258 = vadd.f32 %v1256, %v1257
    %v1259 = vrot.slane %v1258, 2
    %v1260 = vadd.f32 %v1258, %v1259
    %v1261 = vrot.slane %v1260, 1
    %v1262 = vadd.f32 %v1260, %v1261
    %v1263 = vmul.f32 %v1255, %v1255
    %v1264 = vsel %vm158, %v1263, 0.0
    %v1265 = vrot.slane %v1264, 4
    %v1266 = vadd.f32 %v1264, %v1265
    %v1267 = vrot.slane %v1266, 2
    %v1268 = vadd.f32 %v1266, %v1267
    %v1269 = vrot.slane %v1268, 1
    %v1270 = vadd.f32 %v1268, %v1269
    %v1271 = vmul.f32 %v1262, 0.125
    %v1272 = vmul.f32 %v1270, 0.125
    %v1273 = vmul.f32 %v1271, %v1271
    %v1274 = vsub.f32 %v1272, %v1273
    %v1275 = vmax.f32 %v1274, 0.0
    %v1276 = vld [vmem:[%s5 + $0x9] sm:$0x1]
    %v1277 = vadd.f32 %v1275, 1e-05
    %v1278 = vrsqrt.pop %v1277
    %v1279 = vmul.f32 %v1276, %v1278
    %v1280 = vld [vmem:[#allocation7 + $0x9] sm:$0x1]
    %v1281 = vmul.f32 %v1279, %v1271
    %v1282 = vsub.f32 %v1280, %v1281
    %v1283 = vlaneseq
    %v1284 = vshrl.u32 %v1283, 7
    %v1285 = vsub.s32 0, %v1284
    %v1286 = vrot.slane %v1279, %v1285
    %v1287 = vmul.f32 %v1255, %v1286
    %v1288 = vlaneseq
    %v1289 = vshrl.u32 %v1288, 7
    %v1290 = vsub.s32 0, %v1289
    %v1291 = vrot.slane %v1282, %v1290
    %v1292 = vadd.f32 %v1287, %v1291
    %s1293 = scalar_lea.vmem [#allocation5], 288
    %v1294 = vld [vmem:[%s1293] sm:$0xff]
    %v1295 = vld [vmem:[%s1293 + $0x8] sm:$0xff]
    %v1296 = vld [vmem:[%s1293 + $0x10] sm:$0xff]
    %v1297 = vld [vmem:[%s1293 + $0x18] sm:$0xff]
    %v1298 = vld [vmem:[%s4 + $0x9] sm:$0x1]
    %v1299 = vlaneseq
    %v1300 = vshrl.u32 %v1299, 7
    %v1301 = vsub.s32 0, %v1300
    %v1302 = vrot.slane %v1298, %v1301
    %v1304 = vsel %vm158, %v1292, 0
    %1306 = vmatprep.subr.mxu0 0.0
    %1307 = vmatpush1.msra.mxu0 %v1294
    %1308 = vmatprep.subr.mxu0 0.0
    %1309 = vmatpush1.msra.mxu0 %v1295
    %1310 = vmatprep.subr.mxu0 0.0
    %1311 = vmatpush1.msra.mxu0 %v1296
    %1312 = vmatprep.subr.mxu0 0.0
    %1313 = vmatpush1.msra.mxu0 %v1297
    %1314 = vmatprep.subr.mxu0 0.0
    %1315 = vmatpush1.msra.mxu0 0.0
    %1316 = vmatprep.subr.mxu0 0.0
    %1317 = vmatpush1.msra.mxu0 0.0
    %1318 = vmatprep.subr.mxu0 0.0
    %1319 = vmatpush1.msra.mxu0 0.0
    %1320 = vmatprep.subr.mxu0 0.0
    %1321 = vmatpush1.msra.mxu0 0.0
    %1322 = vmatprep.subr.mxu0 0.0
    %1323 = vmatpush1.msra.mxu0 0.0
    %1324 = vmatprep.subr.mxu0 0.0
    %1325 = vmatpush1.msra.mxu0 0.0
    %1326 = vmatprep.subr.mxu0 0.0
    %1327 = vmatpush1.msra.mxu0 0.0
    %1328 = vmatprep.subr.mxu0 0.0
    %1329 = vmatpush1.msra.mxu0 0.0
    %1330 = vmatprep.subr.mxu0 0.0
    %1331 = vmatpush1.msra.mxu0 0.0
    %1332 = vmatprep.subr.mxu0 0.0
    %1333 = vmatpush1.msra.mxu0 0.0
    %1334 = vmatprep.subr.mxu0 0.0
    %1335 = vmatpush1.msra.mxu0 0.0
    %1336 = vmatprep.subr.mxu0 0.0
    %1337 = vmatpush1.msra.mxu0 0.0
    %1338 = vmatprep.subr.mxu0 0.0
    %1339 = vmatpush1.msra.mxu0 0.0
    %1340 = vmatprep.subr.mxu0 0.0
    %1341 = vmatpush1.msra.mxu0 0.0
    %1342 = vmatprep.subr.mxu0 0.0
    %1343 = vmatpush1.msra.mxu0 0.0
    %1344 = vmatprep.subr.mxu0 0.0
    %1345 = vmatpush1.msra.mxu0 0.0
    %1346 = vmatprep.subr.mxu0 0.0
    %1347 = vmatpush1.msra.mxu0 0.0
    %1348 = vmatprep.subr.mxu0 0.0
    %1349 = vmatpush1.msra.mxu0 0.0
    %1350 = vmatprep.subr.mxu0 0.0
    %1351 = vmatpush1.msra.mxu0 0.0
    %1352 = vmatprep.subr.mxu0 0.0
    %1353 = vmatpush1.msra.mxu0 0.0
    %1354 = vmatprep.subr.mxu0 0.0
    %1355 = vmatpush1.msra.mxu0 0.0
    %1356 = vmatprep.subr.mxu0 0.0
    %1357 = vmatpush1.msra.mxu0 0.0
    %1358 = vmatprep.subr.mxu0 0.0
    %1359 = vmatpush1.msra.mxu0 0.0
    %1360 = vmatprep.subr.mxu0 0.0
    %1361 = vmatpush1.msra.mxu0 0.0
    %1362 = vmatprep.subr.mxu0 0.0
    %1363 = vmatpush1.msra.mxu0 0.0
    %1364 = vmatprep.subr.mxu0 0.0
    %1365 = vmatpush1.msra.mxu0 0.0
    %1366 = vmatprep.subr.mxu0 0.0
    %1367 = vmatpush1.msra.mxu0 0.0
    %1368 = vmatprep.subr.mxu0 0.0
    %1369 = vmatpush1.msra.mxu0 0.0
    %1370 = vmatprep.mubr.f32.mxu0 0.0
    %1371 = vmatmul.mubr.f32.gmra.mrb[0].mxu0 %v1304
    %v1372 = vpop.f32.mrb[0].mxu0
    %v1373 = vadd.f32 %v1302, %v1372
    %v1374 = vpop.f32.mrb[0].mxu0
    %1375 = vdwg.mxu0
    %v1376 = vmul.f32 %v1373, 0.5
    %v1377 = vmax.f32 %v1373, %v1376
    %v1378 = vsel %vm158, %v1377, 0.0
    %v1379 = vrot.slane %v1378, 4
    %v1380 = vadd.f32 %v1378, %v1379
    %v1381 = vrot.slane %v1380, 2
    %v1382 = vadd.f32 %v1380, %v1381
    %v1383 = vrot.slane %v1382, 1
    %v1384 = vadd.f32 %v1382, %v1383
    %v1385 = vmul.f32 %v1377, %v1377
    %v1386 = vsel %vm158, %v1385, 0.0
    %v1387 = vrot.slane %v1386, 4
    %v1388 = vadd.f32 %v1386, %v1387
    %v1389 = vrot.slane %v1388, 2
    %v1390 = vadd.f32 %v1388, %v1389
    %v1391 = vrot.slane %v1390, 1
    %v1392 = vadd.f32 %v1390, %v1391
    %v1393 = vmul.f32 %v1384, 0.125
    %v1394 = vmul.f32 %v1392, 0.125
    %v1395 = vmul.f32 %v1393, %v1393
    %v1396 = vsub.f32 %v1394, %v1395
    %v1397 = vmax.f32 %v1396, 0.0
    %v1398 = vld [vmem:[%s5 + $0xa] sm:$0x1]
    %v1399 = vadd.f32 %v1397, 1e-05
    %v1400 = vrsqrt.pop %v1399
    %v1401 = vmul.f32 %v1398, %v1400
    %v1402 = vld [vmem:[#allocation7 + $0xa] sm:$0x1]
    %v1403 = vmul.f32 %v1401, %v1393
    %v1404 = vsub.f32 %v1402, %v1403
    %v1405 = vlaneseq
    %v1406 = vshrl.u32 %v1405, 7
    %v1407 = vsub.s32 0, %v1406
    %v1408 = vrot.slane %v1401, %v1407
    %v1409 = vmul.f32 %v1377, %v1408
    %v1410 = vlaneseq
    %v1411 = vshrl.u32 %v1410, 7
    %v1412 = vsub.s32 0, %v1411
    %v1413 = vrot.slane %v1404, %v1412
    %v1414 = vadd.f32 %v1409, %v1413
    %s1415 = scalar_lea.vmem [#allocation5], 320
    %v1416 = vld [vmem:[%s1415] sm:$0xff]
    %v1417 = vld [vmem:[%s1415 + $0x8] sm:$0xff]
    %v1418 = vld [vmem:[%s1415 + $0x10] sm:$0xff]
    %v1419 = vld [vmem:[%s1415 + $0x18] sm:$0xff]
    %v1420 = vld [vmem:[%s4 + $0xa] sm:$0x1]
    %v1421 = vlaneseq
    %v1422 = vshrl.u32 %v1421, 7
    %v1423 = vsub.s32 0, %v1422
    %v1424 = vrot.slane %v1420, %v1423
    %v1426 = vsel %vm158, %v1414, 0
    %1428 = vmatprep.subr.mxu0 0.0
    %1429 = vmatpush1.msra.mxu0 %v1416
    %1430 = vmatprep.subr.mxu0 0.0
    %1431 = vmatpush1.msra.mxu0 %v1417
    %1432 = vmatprep.subr.mxu0 0.0
    %1433 = vmatpush1.msra.mxu0 %v1418
    %1434 = vmatprep.subr.mxu0 0.0
    %1435 = vmatpush1.msra.mxu0 %v1419
    %1436 = vmatprep.subr.mxu0 0.0
    %1437 = vmatpush1.msra.mxu0 0.0
    %1438 = vmatprep.subr.mxu0 0.0
    %1439 = vmatpush1.msra.mxu0 0.0
    %1440 = vmatprep.subr.mxu0 0.0
    %1441 = vmatpush1.msra.mxu0 0.0
    %1442 = vmatprep.subr.mxu0 0.0
    %1443 = vmatpush1.msra.mxu0 0.0
    %1444 = vmatprep.subr.mxu0 0.0
    %1445 = vmatpush1.msra.mxu0 0.0
    %1446 = vmatprep.subr.mxu0 0.0
    %1447 = vmatpush1.msra.mxu0 0.0
    %1448 = vmatprep.subr.mxu0 0.0
    %1449 = vmatpush1.msra.mxu0 0.0
    %1450 = vmatprep.subr.mxu0 0.0
    %1451 = vmatpush1.msra.mxu0 0.0
    %1452 = vmatprep.subr.mxu0 0.0
    %1453 = vmatpush1.msra.mxu0 0.0
    %1454 = vmatprep.subr.mxu0 0.0
    %1455 = vmatpush1.msra.mxu0 0.0
    %1456 = vmatprep.subr.mxu0 0.0
    %1457 = vmatpush1.msra.mxu0 0.0
    %1458 = vmatprep.subr.mxu0 0.0
    %1459 = vmatpush1.msra.mxu0 0.0
    %1460 = vmatprep.subr.mxu0 0.0
    %1461 = vmatpush1.msra.mxu0 0.0
    %1462 = vmatprep.subr.mxu0 0.0
    %1463 = vmatpush1.msra.mxu0 0.0
    %1464 = vmatprep.subr.mxu0 0.0
    %1465 = vmatpush1.msra.mxu0 0.0
    %1466 = vmatprep.subr.mxu0 0.0
    %1467 = vmatpush1.msra.mxu0 0.0
    %1468 = vmatprep.subr.mxu0 0.0
    %1469 = vmatpush1.msra.mxu0 0.0
    %1470 = vmatprep.subr.mxu0 0.0
    %1471 = vmatpush1.msra.mxu0 0.0
    %1472 = vmatprep.subr.mxu0 0.0
    %1473 = vmatpush1.msra.mxu0 0.0
    %1474 = vmatprep.subr.mxu0 0.0
    %1475 = vmatpush1.msra.mxu0 0.0
    %1476 = vmatprep.subr.mxu0 0.0
    %1477 = vmatpush1.msra.mxu0 0.0
    %1478 = vmatprep.subr.mxu0 0.0
    %1479 = vmatpush1.msra.mxu0 0.0
    %1480 = vmatprep.subr.mxu0 0.0
    %1481 = vmatpush1.msra.mxu0 0.0
    %1482 = vmatprep.subr.mxu0 0.0
    %1483 = vmatpush1.msra.mxu0 0.0
    %1484 = vmatprep.subr.mxu0 0.0
    %1485 = vmatpush1.msra.mxu0 0.0
    %1486 = vmatprep.subr.mxu0 0.0
    %1487 = vmatpush1.msra.mxu0 0.0
    %1488 = vmatprep.subr.mxu0 0.0
    %1489 = vmatpush1.msra.mxu0 0.0
    %1490 = vmatprep.subr.mxu0 0.0
    %1491 = vmatpush1.msra.mxu0 0.0
    %1492 = vmatprep.mubr.f32.mxu0 0.0
    %1493 = vmatmul.mubr.f32.gmra.mrb[0].mxu0 %v1426
    %v1494 = vpop.f32.mrb[0].mxu0
    %v1495 = vadd.f32 %v1424, %v1494
    %v1496 = vpop.f32.mrb[0].mxu0
    %1497 = vdwg.mxu0
    %v1498 = vmul.f32 %v1495, 0.5
    %v1499 = vmax.f32 %v1495, %v1498
    %v1500 = vsel %vm158, %v1499, 0.0
    %v1501 = vrot.slane %v1500, 4
    %v1502 = vadd.f32 %v1500, %v1501
    %v1503 = vrot.slane %v1502, 2
    %v1504 = vadd.f32 %v1502, %v1503
    %v1505 = vrot.slane %v1504, 1
    %v1506 = vadd.f32 %v1504, %v1505
    %v1507 = vmul.f32 %v1499, %v1499
    %v1508 = vsel %vm158, %v1507, 0.0
    %v1509 = vrot.slane %v1508, 4
    %v1510 = vadd.f32 %v1508, %v1509
    %v1511 = vrot.slane %v1510, 2
    %v1512 = vadd.f32 %v1510, %v1511
    %v1513 = vrot.slane %v1512, 1
    %v1514 = vadd.f32 %v1512, %v1513
    %v1515 = vmul.f32 %v1506, 0.125
    %v1516 = vmul.f32 %v1514, 0.125
    %v1517 = vmul.f32 %v1515, %v1515
    %v1518 = vsub.f32 %v1516, %v1517
    %v1519 = vmax.f32 %v1518, 0.0
    %v1520 = vld [vmem:[%s5 + $0xb] sm:$0x1]
    %v1521 = vadd.f32 %v1519, 1e-05
    %v1522 = vrsqrt.pop %v1521
    %v1523 = vmul.f32 %v1520, %v1522
    %v1524 = vld [vmem:[#allocation7 + $0xb] sm:$0x1]
    %v1525 = vmul.f32 %v1523, %v1515
    %v1526 = vsub.f32 %v1524, %v1525
    %v1527 = vlaneseq
    %v1528 = vshrl.u32 %v1527, 7
    %v1529 = vsub.s32 0, %v1528
    %v1530 = vrot.slane %v1523, %v1529
    %v1531 = vmul.f32 %v1499, %v1530
    %v1532 = vlaneseq
    %v1533 = vshrl.u32 %v1532, 7
    %v1534 = vsub.s32 0, %v1533
    %v1535 = vrot.slane %v1526, %v1534
    %v1536 = vadd.f32 %v1531, %v1535
    %s1537 = scalar_lea.vmem [#allocation5], 352
    %v1538 = vld [vmem:[%s1537] sm:$0xff]
    %v1539 = vld [vmem:[%s1537 + $0x8] sm:$0xff]
    %v1540 = vld [vmem:[%s1537 + $0x10] sm:$0xff]
    %v1541 = vld [vmem:[%s1537 + $0x18] sm:$0xff]
    %v1542 = vld [vmem:[%s4 + $0xb] sm:$0x1]
    %v1543 = vlaneseq
    %v1544 = vshrl.u32 %v1543, 7
    %v1545 = vsub.s32 0, %v1544
    %v1546 = vrot.slane %v1542, %v1545
    %v1548 = vsel %vm158, %v1536, 0
    %1550 = vmatprep.subr.mxu0 0.0
    %1551 = vmatpush1.msra.mxu0 %v1538
    %1552 = vmatprep.subr.mxu0 0.0
    %1553 = vmatpush1.msra.mxu0 %v1539
    %1554 = vmatprep.subr.mxu0 0.0
    %1555 = vmatpush1.msra.mxu0 %v1540
    %1556 = vmatprep.subr.mxu0 0.0
    %1557 = vmatpush1.msra.mxu0 %v1541
    %1558 = vmatprep.subr.mxu0 0.0
    %1559 = vmatpush1.msra.mxu0 0.0
    %1560 = vmatprep.subr.mxu0 0.0
    %1561 = vmatpush1.msra.mxu0 0.0
    %1562 = vmatprep.subr.mxu0 0.0
    %1563 = vmatpush1.msra.mxu0 0.0
    %1564 = vmatprep.subr.mxu0 0.0
    %1565 = vmatpush1.msra.mxu0 0.0
    %1566 = vmatprep.subr.mxu0 0.0
    %1567 = vmatpush1.msra.mxu0 0.0
    %1568 = vmatprep.subr.mxu0 0.0
    %1569 = vmatpush1.msra.mxu0 0.0
    %1570 = vmatprep.subr.mxu0 0.0
    %1571 = vmatpush1.msra.mxu0 0.0
    %1572 = vmatprep.subr.mxu0 0.0
    %1573 = vmatpush1.msra.mxu0 0.0
    %1574 = vmatprep.subr.mxu0 0.0
    %1575 = vmatpush1.msra.mxu0 0.0
    %1576 = vmatprep.subr.mxu0 0.0
    %1577 = vmatpush1.msra.mxu0 0.0
    %1578 = vmatprep.subr.mxu0 0.0
    %1579 = vmatpush1.msra.mxu0 0.0
    %1580 = vmatprep.subr.mxu0 0.0
    %1581 = vmatpush1.msra.mxu0 0.0
    %1582 = vmatprep.subr.mxu0 0.0
    %1583 = vmatpush1.msra.mxu0 0.0
    %1584 = vmatprep.subr.mxu0 0.0
    %1585 = vmatpush1.msra.mxu0 0.0
    %1586 = vmatprep.subr.mxu0 0.0
    %1587 = vmatpush1.msra.mxu0 0.0
    %1588 = vmatprep.subr.mxu0 0.0
    %1589 = vmatpush1.msra.mxu0 0.0
    %1590 = vmatprep.subr.mxu0 0.0
    %1591 = vmatpush1.msra.mxu0 0.0
    %1592 = vmatprep.subr.mxu0 0.0
    %1593 = vmatpush1.msra.mxu0 0.0
    %1594 = vmatprep.subr.mxu0 0.0
    %1595 = vmatpush1.msra.mxu0 0.0
    %1596 = vmatprep.subr.mxu0 0.0
    %1597 = vmatpush1.msra.mxu0 0.0
    %1598 = vmatprep.subr.mxu0 0.0
    %1599 = vmatpush1.msra.mxu0 0.0
    %1600 = vmatprep.subr.mxu0 0.0
    %1601 = vmatpush1.msra.mxu0 0.0
    %1602 = vmatprep.subr.mxu0 0.0
    %1603 = vmatpush1.msra.mxu0 0.0
    %1604 = vmatprep.subr.mxu0 0.0
    %1605 = vmatpush1.msra.mxu0 0.0
    %1606 = vmatprep.subr.mxu0 0.0
    %1607 = vmatpush1.msra.mxu0 0.0
    %1608 = vmatprep.subr.mxu0 0.0
    %1609 = vmatpush1.msra.mxu0 0.0
    %1610 = vmatprep.subr.mxu0 0.0
    %1611 = vmatpush1.msra.mxu0 0.0
    %1612 = vmatprep.subr.mxu0 0.0
    %1613 = vmatpush1.msra.mxu0 0.0
    %1614 = vmatprep.mubr.f32.mxu0 0.0
    %1615 = vmatmul.mubr.f32.gmra.mrb[0].mxu0 %v1548
    %v1616 = vpop.f32.mrb[0].mxu0
    %v1617 = vadd.f32 %v1546, %v1616
    %v1618 = vpop.f32.mrb[0].mxu0
    %1619 = vdwg.mxu0
    %v1620 = vmul.f32 %v1617, 0.5
    %v1621 = vmax.f32 %v1617, %v1620
    %v1622 = vsel %vm158, %v1621, 0.0
    %v1623 = vrot.slane %v1622, 4
    %v1624 = vadd.f32 %v1622, %v1623
    %v1625 = vrot.slane %v1624, 2
    %v1626 = vadd.f32 %v1624, %v1625
    %v1627 = vrot.slane %v1626, 1
    %v1628 = vadd.f32 %v1626, %v1627
    %v1629 = vmul.f32 %v1621, %v1621
    %v1630 = vsel %vm158, %v1629, 0.0
    %v1631 = vrot.slane %v1630, 4
    %v1632 = vadd.f32 %v1630, %v1631
    %v1633 = vrot.slane %v1632, 2
    %v1634 = vadd.f32 %v1632, %v1633
    %v1635 = vrot.slane %v1634, 1
    %v1636 = vadd.f32 %v1634, %v1635
    %v1637 = vmul.f32 %v1628, 0.125
    %v1638 = vmul.f32 %v1636, 0.125
    %v1639 = vmul.f32 %v1637, %v1637
    %v1640 = vsub.f32 %v1638, %v1639
    %v1641 = vmax.f32 %v1640, 0.0
    %v1642 = vld [vmem:[%s5 + $0xc] sm:$0x1]
    %v1643 = vadd.f32 %v1641, 1e-05
    %v1644 = vrsqrt.pop %v1643
    %v1645 = vmul.f32 %v1642, %v1644
    %v1646 = vld [vmem:[#allocation7 + $0xc] sm:$0x1]
    %v1647 = vmul.f32 %v1645, %v1637
    %v1648 = vsub.f32 %v1646, %v1647
    %v1649 = vlaneseq
    %v1650 = vshrl.u32 %v1649, 7
    %v1651 = vsub.s32 0, %v1650
    %v1652 = vrot.slane %v1645, %v1651
    %v1653 = vmul.f32 %v1621, %v1652
    %v1654 = vlaneseq
    %v1655 = vshrl.u32 %v1654, 7
    %v1656 = vsub.s32 0, %v1655
    %v1657 = vrot.slane %v1648, %v1656
    %v1658 = vadd.f32 %v1653, %v1657
    %s1659 = scalar_lea.vmem [#allocation5], 384
    %v1660 = vld [vmem:[%s1659] sm:$0xff]
    %v1661 = vld [vmem:[%s1659 + $0x8] sm:$0xff]
    %v1662 = vld [vmem:[%s1659 + $0x10] sm:$0xff]
    %v1663 = vld [vmem:[%s1659 + $0x18] sm:$0xff]
    %v1664 = vld [vmem:[%s4 + $0xc] sm:$0x1]
    %v1665 = vlaneseq
    %v1666 = vshrl.u32 %v1665, 7
    %v1667 = vsub.s32 0, %v1666
    %v1668 = vrot.slane %v1664, %v1667
    %v1670 = vsel %vm158, %v1658, 0
    %1672 = vmatprep.subr.mxu0 0.0
    %1673 = vmatpush1.msra.mxu0 %v1660
    %1674 = vmatprep.subr.mxu0 0.0
    %1675 = vmatpush1.msra.mxu0 %v1661
    %1676 = vmatprep.subr.mxu0 0.0
    %1677 = vmatpush1.msra.mxu0 %v1662
    %1678 = vmatprep.subr.mxu0 0.0
    %1679 = vmatpush1.msra.mxu0 %v1663
    %1680 = vmatprep.subr.mxu0 0.0
    %1681 = vmatpush1.msra.mxu0 0.0
    %1682 = vmatprep.subr.mxu0 0.0
    %1683 = vmatpush1.msra.mxu0 0.0
    %1684 = vmatprep.subr.mxu0 0.0
    %1685 = vmatpush1.msra.mxu0 0.0
    %1686 = vmatprep.subr.mxu0 0.0
    %1687 = vmatpush1.msra.mxu0 0.0
    %1688 = vmatprep.subr.mxu0 0.0
    %1689 = vmatpush1.msra.mxu0 0.0
    %1690 = vmatprep.subr.mxu0 0.0
    %1691 = vmatpush1.msra.mxu0 0.0
    %1692 = vmatprep.subr.mxu0 0.0
    %1693 = vmatpush1.msra.mxu0 0.0
    %1694 = vmatprep.subr.mxu0 0.0
    %1695 = vmatpush1.msra.mxu0 0.0
    %1696 = vmatprep.subr.mxu0 0.0
    %1697 = vmatpush1.msra.mxu0 0.0
    %1698 = vmatprep.subr.mxu0 0.0
    %1699 = vmatpush1.msra.mxu0 0.0
    %1700 = vmatprep.subr.mxu0 0.0
    %1701 = vmatpush1.msra.mxu0 0.0
    %1702 = vmatprep.subr.mxu0 0.0
    %1703 = vmatpush1.msra.mxu0 0.0
    %1704 = vmatprep.subr.mxu0 0.0
    %1705 = vmatpush1.msra.mxu0 0.0
    %1706 = vmatprep.subr.mxu0 0.0
    %1707 = vmatpush1.msra.mxu0 0.0
    %1708 = vmatprep.subr.mxu0 0.0
    %1709 = vmatpush1.msra.mxu0 0.0
    %1710 = vmatprep.subr.mxu0 0.0
    %1711 = vmatpush1.msra.mxu0 0.0
    %1712 = vmatprep.subr.mxu0 0.0
    %1713 = vmatpush1.msra.mxu0 0.0
    %1714 = vmatprep.subr.mxu0 0.0
    %1715 = vmatpush1.msra.mxu0 0.0
    %1716 = vmatprep.subr.mxu0 0.0
    %1717 = vmatpush1.msra.mxu0 0.0
    %1718 = vmatprep.subr.mxu0 0.0
    %1719 = vmatpush1.msra.mxu0 0.0
    %1720 = vmatprep.subr.mxu0 0.0
    %1721 = vmatpush1.msra.mxu0 0.0
    %1722 = vmatprep.subr.mxu0 0.0
    %1723 = vmatpush1.msra.mxu0 0.0
    %1724 = vmatprep.subr.mxu0 0.0
    %1725 = vmatpush1.msra.mxu0 0.0
    %1726 = vmatprep.subr.mxu0 0.0
    %1727 = vmatpush1.msra.mxu0 0.0
    %1728 = vmatprep.subr.mxu0 0.0
    %1729 = vmatpush1.msra.mxu0 0.0
    %1730 = vmatprep.subr.mxu0 0.0
    %1731 = vmatpush1.msra.mxu0 0.0
    %1732 = vmatprep.subr.mxu0 0.0
    %1733 = vmatpush1.msra.mxu0 0.0
    %1734 = vmatprep.subr.mxu0 0.0
    %1735 = vmatpush1.msra.mxu0 0.0
    %1736 = vmatprep.mubr.f32.mxu0 0.0
    %1737 = vmatmul.mubr.f32.gmra.mrb[0].mxu0 %v1670
    %v1738 = vpop.f32.mrb[0].mxu0
    %v1739 = vadd.f32 %v1668, %v1738
    %v1740 = vpop.f32.mrb[0].mxu0
    %1741 = vdwg.mxu0
    %v1742 = vmul.f32 %v1739, 0.5
    %v1743 = vmax.f32 %v1739, %v1742
    %v1744 = vsel %vm158, %v1743, 0.0
    %v1745 = vrot.slane %v1744, 4
    %v1746 = vadd.f32 %v1744, %v1745
    %v1747 = vrot.slane %v1746, 2
    %v1748 = vadd.f32 %v1746, %v1747
    %v1749 = vrot.slane %v1748, 1
    %v1750 = vadd.f32 %v1748, %v1749
    %v1751 = vmul.f32 %v1743, %v1743
    %v1752 = vsel %vm158, %v1751, 0.0
    %v1753 = vrot.slane %v1752, 4
    %v1754 = vadd.f32 %v1752, %v1753
    %v1755 = vrot.slane %v1754, 2
    %v1756 = vadd.f32 %v1754, %v1755
    %v1757 = vrot.slane %v1756, 1
    %v1758 = vadd.f32 %v1756, %v1757
    %v1759 = vmul.f32 %v1750, 0.125
    %v1760 = vmul.f32 %v1758, 0.125
    %v1761 = vmul.f32 %v1759, %v1759
    %v1762 = vsub.f32 %v1760, %v1761
    %v1763 = vmax.f32 %v1762, 0.0
    %v1764 = vld [vmem:[%s5 + $0xd] sm:$0x1]
    %v1765 = vadd.f32 %v1763, 1e-05
    %v1766 = vrsqrt.pop %v1765
    %v1767 = vmul.f32 %v1764, %v1766
    %v1768 = vld [vmem:[#allocation7 + $0xd] sm:$0x1]
    %v1769 = vmul.f32 %v1767, %v1759
    %v1770 = vsub.f32 %v1768, %v1769
    %v1771 = vlaneseq
    %v1772 = vshrl.u32 %v1771, 7
    %v1773 = vsub.s32 0, %v1772
    %v1774 = vrot.slane %v1767, %v1773
    %v1775 = vmul.f32 %v1743, %v1774
    %v1776 = vlaneseq
    %v1777 = vshrl.u32 %v1776, 7
    %v1778 = vsub.s32 0, %v1777
    %v1779 = vrot.slane %v1770, %v1778
    %v1780 = vadd.f32 %v1775, %v1779
    %s1781 = scalar_lea.vmem [#allocation5], 416
    %v1782 = vld [vmem:[%s1781] sm:$0xff]
    %v1783 = vld [vmem:[%s1781 + $0x8] sm:$0xff]
    %v1784 = vld [vmem:[%s1781 + $0x10] sm:$0xff]
    %v1785 = vld [vmem:[%s1781 + $0x18] sm:$0xff]
    %v1786 = vld [vmem:[%s4 + $0xd] sm:$0x1]
    %v1787 = vlaneseq
    %v1788 = vshrl.u32 %v1787, 7
    %v1789 = vsub.s32 0, %v1788
    %v1790 = vrot.slane %v1786, %v1789
    %v1792 = vsel %vm158, %v1780, 0
    %1794 = vmatprep.subr.mxu0 0.0
    %1795 = vmatpush1.msra.mxu0 %v1782
    %1796 = vmatprep.subr.mxu0 0.0
    %1797 = vmatpush1.msra.mxu0 %v1783
    %1798 = vmatprep.subr.mxu0 0.0
    %1799 = vmatpush1.msra.mxu0 %v1784
    %1800 = vmatprep.subr.mxu0 0.0
    %1801 = vmatpush1.msra.mxu0 %v1785
    %1802 = vmatprep.subr.mxu0 0.0
    %1803 = vmatpush1.msra.mxu0 0.0
    %1804 = vmatprep.subr.mxu0 0.0
    %1805 = vmatpush1.msra.mxu0 0.0
    %1806 = vmatprep.subr.mxu0 0.0
    %1807 = vmatpush1.msra.mxu0 0.0
    %1808 = vmatprep.subr.mxu0 0.0
    %1809 = vmatpush1.msra.mxu0 0.0
    %1810 = vmatprep.subr.mxu0 0.0
    %1811 = vmatpush1.msra.mxu0 0.0
    %1812 = vmatprep.subr.mxu0 0.0
    %1813 = vmatpush1.msra.mxu0 0.0
    %1814 = vmatprep.subr.mxu0 0.0
    %1815 = vmatpush1.msra.mxu0 0.0
    %1816 = vmatprep.subr.mxu0 0.0
    %1817 = vmatpush1.msra.mxu0 0.0
    %1818 = vmatprep.subr.mxu0 0.0
    %1819 = vmatpush1.msra.mxu0 0.0
    %1820 = vmatprep.subr.mxu0 0.0
    %1821 = vmatpush1.msra.mxu0 0.0
    %1822 = vmatprep.subr.mxu0 0.0
    %1823 = vmatpush1.msra.mxu0 0.0
    %1824 = vmatprep.subr.mxu0 0.0
    %1825 = vmatpush1.msra.mxu0 0.0
    %1826 = vmatprep.subr.mxu0 0.0
    %1827 = vmatpush1.msra.mxu0 0.0
    %1828 = vmatprep.subr.mxu0 0.0
    %1829 = vmatpush1.msra.mxu0 0.0
    %1830 = vmatprep.subr.mxu0 0.0
    %1831 = vmatpush1.msra.mxu0 0.0
    %1832 = vmatprep.subr.mxu0 0.0
    %1833 = vmatpush1.msra.mxu0 0.0
    %1834 = vmatprep.subr.mxu0 0.0
    %1835 = vmatpush1.msra.mxu0 0.0
    %1836 = vmatprep.subr.mxu0 0.0
    %1837 = vmatpush1.msra.mxu0 0.0
    %1838 = vmatprep.subr.mxu0 0.0
    %1839 = vmatpush1.msra.mxu0 0.0
    %1840 = vmatprep.subr.mxu0 0.0
    %1841 = vmatpush1.msra.mxu0 0.0
    %1842 = vmatprep.subr.mxu0 0.0
    %1843 = vmatpush1.msra.mxu0 0.0
    %1844 = vmatprep.subr.mxu0 0.0
    %1845 = vmatpush1.msra.mxu0 0.0
    %1846 = vmatprep.subr.mxu0 0.0
    %1847 = vmatpush1.msra.mxu0 0.0
    %1848 = vmatprep.subr.mxu0 0.0
    %1849 = vmatpush1.msra.mxu0 0.0
    %1850 = vmatprep.subr.mxu0 0.0
    %1851 = vmatpush1.msra.mxu0 0.0
    %1852 = vmatprep.subr.mxu0 0.0
    %1853 = vmatpush1.msra.mxu0 0.0
    %1854 = vmatprep.subr.mxu0 0.0
    %1855 = vmatpush1.msra.mxu0 0.0
    %1856 = vmatprep.subr.mxu0 0.0
    %1857 = vmatpush1.msra.mxu0 0.0
    %1858 = vmatprep.mubr.f32.mxu0 0.0
    %1859 = vmatmul.mubr.f32.gmra.mrb[0].mxu0 %v1792
    %v1860 = vpop.f32.mrb[0].mxu0
    %v1861 = vadd.f32 %v1790, %v1860
    %v1862 = vpop.f32.mrb[0].mxu0
    %1863 = vdwg.mxu0
    %v1864 = vmul.f32 %v1861, 0.5
    %v1865 = vmax.f32 %v1861, %v1864
    %v1866 = vsel %vm158, %v1865, 0.0
    %v1867 = vrot.slane %v1866, 4
    %v1868 = vadd.f32 %v1866, %v1867
    %v1869 = vrot.slane %v1868, 2
    %v1870 = vadd.f32 %v1868, %v1869
    %v1871 = vrot.slane %v1870, 1
    %v1872 = vadd.f32 %v1870, %v1871
    %v1873 = vmul.f32 %v1865, %v1865
    %v1874 = vsel %vm158, %v1873, 0.0
    %v1875 = vrot.slane %v1874, 4
    %v1876 = vadd.f32 %v1874, %v1875
    %v1877 = vrot.slane %v1876, 2
    %v1878 = vadd.f32 %v1876, %v1877
    %v1879 = vrot.slane %v1878, 1
    %v1880 = vadd.f32 %v1878, %v1879
    %v1881 = vmul.f32 %v1872, 0.125
    %v1882 = vmul.f32 %v1880, 0.125
    %v1883 = vmul.f32 %v1881, %v1881
    %v1884 = vsub.f32 %v1882, %v1883
    %v1885 = vmax.f32 %v1884, 0.0
    %v1886 = vld [vmem:[%s5 + $0xe] sm:$0x1]
    %v1887 = vadd.f32 %v1885, 1e-05
    %v1888 = vrsqrt.pop %v1887
    %v1889 = vmul.f32 %v1886, %v1888
    %v1890 = vld [vmem:[#allocation7 + $0xe] sm:$0x1]
    %v1891 = vmul.f32 %v1889, %v1881
    %v1892 = vsub.f32 %v1890, %v1891
    %v1893 = vlaneseq
    %v1894 = vshrl.u32 %v1893, 7
    %v1895 = vsub.s32 0, %v1894
    %v1896 = vrot.slane %v1889, %v1895
    %v1897 = vmul.f32 %v1865, %v1896
    %v1898 = vlaneseq
    %v1899 = vshrl.u32 %v1898, 7
    %v1900 = vsub.s32 0, %v1899
    %v1901 = vrot.slane %v1892, %v1900
    %v1902 = vadd.f32 %v1897, %v1901
    %s1903 = scalar_lea.vmem [#allocation5], 448
    %v1904 = vld [vmem:[%s1903] sm:$0xff]
    %v1905 = vld [vmem:[%s1903 + $0x8] sm:$0xff]
    %v1906 = vld [vmem:[%s1903 + $0x10] sm:$0xff]
    %v1907 = vld [vmem:[%s1903 + $0x18] sm:$0xff]
    %v1908 = vld [vmem:[%s4 + $0xe] sm:$0x1]
    %v1909 = vlaneseq
    %v1910 = vshrl.u32 %v1909, 7
    %v1911 = vsub.s32 0, %v1910
    %v1912 = vrot.slane %v1908, %v1911
    %v1914 = vsel %vm158, %v1902, 0
    %1916 = vmatprep.subr.mxu0 0.0
    %1917 = vmatpush1.msra.mxu0 %v1904
    %1918 = vmatprep.subr.mxu0 0.0
    %1919 = vmatpush1.msra.mxu0 %v1905
    %1920 = vmatprep.subr.mxu0 0.0
    %1921 = vmatpush1.msra.mxu0 %v1906
    %1922 = vmatprep.subr.mxu0 0.0
    %1923 = vmatpush1.msra.mxu0 %v1907
    %1924 = vmatprep.subr.mxu0 0.0
    %1925 = vmatpush1.msra.mxu0 0.0
    %1926 = vmatprep.subr.mxu0 0.0
    %1927 = vmatpush1.msra.mxu0 0.0
    %1928 = vmatprep.subr.mxu0 0.0
    %1929 = vmatpush1.msra.mxu0 0.0
    %1930 = vmatprep.subr.mxu0 0.0
    %1931 = vmatpush1.msra.mxu0 0.0
    %1932 = vmatprep.subr.mxu0 0.0
    %1933 = vmatpush1.msra.mxu0 0.0
    %1934 = vmatprep.subr.mxu0 0.0
    %1935 = vmatpush1.msra.mxu0 0.0
    %1936 = vmatprep.subr.mxu0 0.0
    %1937 = vmatpush1.msra.mxu0 0.0
    %1938 = vmatprep.subr.mxu0 0.0
    %1939 = vmatpush1.msra.mxu0 0.0
    %1940 = vmatprep.subr.mxu0 0.0
    %1941 = vmatpush1.msra.mxu0 0.0
    %1942 = vmatprep.subr.mxu0 0.0
    %1943 = vmatpush1.msra.mxu0 0.0
    %1944 = vmatprep.subr.mxu0 0.0
    %1945 = vmatpush1.msra.mxu0 0.0
    %1946 = vmatprep.subr.mxu0 0.0
    %1947 = vmatpush1.msra.mxu0 0.0
    %1948 = vmatprep.subr.mxu0 0.0
    %1949 = vmatpush1.msra.mxu0 0.0
    %1950 = vmatprep.subr.mxu0 0.0
    %1951 = vmatpush1.msra.mxu0 0.0
    %1952 = vmatprep.subr.mxu0 0.0
    %1953 = vmatpush1.msra.mxu0 0.0
    %1954 = vmatprep.subr.mxu0 0.0
    %1955 = vmatpush1.msra.mxu0 0.0
    %1956 = vmatprep.subr.mxu0 0.0
    %1957 = vmatpush1.msra.mxu0 0.0
    %1958 = vmatprep.subr.mxu0 0.0
    %1959 = vmatpush1.msra.mxu0 0.0
    %1960 = vmatprep.subr.mxu0 0.0
    %1961 = vmatpush1.msra.mxu0 0.0
    %1962 = vmatprep.subr.mxu0 0.0
    %1963 = vmatpush1.msra.mxu0 0.0
    %1964 = vmatprep.subr.mxu0 0.0
    %1965 = vmatpush1.msra.mxu0 0.0
    %1966 = vmatprep.subr.mxu0 0.0
    %1967 = vmatpush1.msra.mxu0 0.0
    %1968 = vmatprep.subr.mxu0 0.0
    %1969 = vmatpush1.msra.mxu0 0.0
    %1970 = vmatprep.subr.mxu0 0.0
    %1971 = vmatpush1.msra.mxu0 0.0
    %1972 = vmatprep.subr.mxu0 0.0
    %1973 = vmatpush1.msra.mxu0 0.0
    %1974 = vmatprep.subr.mxu0 0.0
    %1975 = vmatpush1.msra.mxu0 0.0
    %1976 = vmatprep.subr.mxu0 0.0
    %1977 = vmatpush1.msra.mxu0 0.0
    %1978 = vmatprep.subr.mxu0 0.0
    %1979 = vmatpush1.msra.mxu0 0.0
    %1980 = vmatprep.mubr.f32.mxu0 0.0
    %1981 = vmatmul.mubr.f32.gmra.mrb[0].mxu0 %v1914
    %v1982 = vpop.f32.mrb[0].mxu0
    %v1983 = vadd.f32 %v1912, %v1982
    %v1984 = vpop.f32.mrb[0].mxu0
    %1985 = vdwg.mxu0
    %v1986 = vmul.f32 %v1983, 0.5
    %v1987 = vmax.f32 %v1983, %v1986
    %v1988 = vsel %vm158, %v1987, 0.0
    %v1989 = vrot.slane %v1988, 4
    %v1990 = vadd.f32 %v1988, %v1989
    %v1991 = vrot.slane %v1990, 2
    %v1992 = vadd.f32 %v1990, %v1991
    %v1993 = vrot.slane %v1992, 1
    %v1994 = vadd.f32 %v1992, %v1993
    %v1995 = vmul.f32 %v1987, %v1987
    %v1996 = vsel %vm158, %v1995, 0.0
    %v1997 = vrot.slane %v1996, 4
    %v1998 = vadd.f32 %v1996, %v1997
    %v1999 = vrot.slane %v1998, 2
    %v2000 = vadd.f32 %v1998, %v1999
    %v2001 = vrot.slane %v2000, 1
    %v2002 = vadd.f32 %v2000, %v2001
    %v2003 = vmul.f32 %v1994, 0.125
    %v2004 = vmul.f32 %v2002, 0.125
    %v2005 = vmul.f32 %v2003, %v2003
    %v2006 = vsub.f32 %v2004, %v2005
    %v2007 = vmax.f32 %v2006, 0.0
    %v2008 = vld [vmem:[%s5 + $0xf] sm:$0x1]
    %v2009 = vadd.f32 %v2007, 1e-05
    %v2010 = vrsqrt.pop %v2009
    %v2011 = vmul.f32 %v2008, %v2010
    %v2012 = vld [vmem:[#allocation7 + $0xf] sm:$0x1]
    %v2013 = vmul.f32 %v2011, %v2003
    %v2014 = vsub.f32 %v2012, %v2013
    %v2015 = vlaneseq
    %v2016 = vshrl.u32 %v2015, 7
    %v2017 = vsub.s32 0, %v2016
    %v2018 = vrot.slane %v2011, %v2017
    %v2019 = vmul.f32 %v1987, %v2018
    %v2020 = vlaneseq
    %v2021 = vshrl.u32 %v2020, 7
    %v2022 = vsub.s32 0, %v2021
    %v2023 = vrot.slane %v2014, %v2022
    %v2024 = vadd.f32 %v2019, %v2023
    %s2025 = scalar_lea.vmem [#allocation5], 480
    %v2026 = vld [vmem:[%s2025] sm:$0xff]
    %v2027 = vld [vmem:[%s2025 + $0x8] sm:$0xff]
    %v2028 = vld [vmem:[%s2025 + $0x10] sm:$0xff]
    %v2029 = vld [vmem:[%s2025 + $0x18] sm:$0xff]
    %v2030 = vld [vmem:[%s4 + $0xf] sm:$0x1]
    %v2031 = vlaneseq
    %v2032 = vshrl.u32 %v2031, 7
    %v2033 = vsub.s32 0, %v2032
    %v2034 = vrot.slane %v2030, %v2033
    %v2036 = vsel %vm158, %v2024, 0
    %2038 = vmatprep.subr.mxu0 0.0
    %2039 = vmatpush1.msra.mxu0 %v2026
    %2040 = vmatprep.subr.mxu0 0.0
    %2041 = vmatpush1.msra.mxu0 %v2027
    %2042 = vmatprep.subr.mxu0 0.0
    %2043 = vmatpush1.msra.mxu0 %v2028
    %2044 = vmatprep.subr.mxu0 0.0
    %2045 = vmatpush1.msra.mxu0 %v2029
    %2046 = vmatprep.subr.mxu0 0.0
    %2047 = vmatpush1.msra.mxu0 0.0
    %2048 = vmatprep.subr.mxu0 0.0
    %2049 = vmatpush1.msra.mxu0 0.0
    %2050 = vmatprep.subr.mxu0 0.0
    %2051 = vmatpush1.msra.mxu0 0.0
    %2052 = vmatprep.subr.mxu0 0.0
    %2053 = vmatpush1.msra.mxu0 0.0
    %2054 = vmatprep.subr.mxu0 0.0
    %2055 = vmatpush1.msra.mxu0 0.0
    %2056 = vmatprep.subr.mxu0 0.0
    %2057 = vmatpush1.msra.mxu0 0.0
    %2058 = vmatprep.subr.mxu0 0.0
    %2059 = vmatpush1.msra.mxu0 0.0
    %2060 = vmatprep.subr.mxu0 0.0
    %2061 = vmatpush1.msra.mxu0 0.0
    %2062 = vmatprep.subr.mxu0 0.0
    %2063 = vmatpush1.msra.mxu0 0.0
    %2064 = vmatprep.subr.mxu0 0.0
    %2065 = vmatpush1.msra.mxu0 0.0
    %2066 = vmatprep.subr.mxu0 0.0
    %2067 = vmatpush1.msra.mxu0 0.0
    %2068 = vmatprep.subr.mxu0 0.0
    %2069 = vmatpush1.msra.mxu0 0.0
    %2070 = vmatprep.subr.mxu0 0.0
    %2071 = vmatpush1.msra.mxu0 0.0
    %2072 = vmatprep.subr.mxu0 0.0
    %2073 = vmatpush1.msra.mxu0 0.0
    %2074 = vmatprep.subr.mxu0 0.0
    %2075 = vmatpush1.msra.mxu0 0.0
    %2076 = vmatprep.subr.mxu0 0.0
    %2077 = vmatpush1.msra.mxu0 0.0
    %2078 = vmatprep.subr.mxu0 0.0
    %2079 = vmatpush1.msra.mxu0 0.0
    %2080 = vmatprep.subr.mxu0 0.0
    %2081 = vmatpush1.msra.mxu0 0.0
    %2082 = vmatprep.subr.mxu0 0.0
    %2083 = vmatpush1.msra.mxu0 0.0
    %2084 = vmatprep.subr.mxu0 0.0
    %2085 = vmatpush1.msra.mxu0 0.0
    %2086 = vmatprep.subr.mxu0 0.0
    %2087 = vmatpush1.msra.mxu0 0.0
    %2088 = vmatprep.subr.mxu0 0.0
    %2089 = vmatpush1.msra.mxu0 0.0
    %2090 = vmatprep.subr.mxu0 0.0
    %2091 = vmatpush1.msra.mxu0 0.0
    %2092 = vmatprep.subr.mxu0 0.0
    %2093 = vmatpush1.msra.mxu0 0.0
    %2094 = vmatprep.subr.mxu0 0.0
    %2095 = vmatpush1.msra.mxu0 0.0
    %2096 = vmatprep.subr.mxu0 0.0
    %2097 = vmatpush1.msra.mxu0 0.0
    %2098 = vmatprep.subr.mxu0 0.0
    %2099 = vmatpush1.msra.mxu0 0.0
    %2100 = vmatprep.subr.mxu0 0.0
    %2101 = vmatpush1.msra.mxu0 0.0
    %2102 = vmatprep.mubr.f32.mxu0 0.0
    %2103 = vmatmul.mubr.f32.gmra.mrb[0].mxu0 %v2036
    %v2104 = vpop.f32.mrb[0].mxu0
    %v2105 = vadd.f32 %v2034, %v2104
    %v2106 = vpop.f32.mrb[0].mxu0
    %2107 = vdwg.mxu0
    %v2108 = vmul.f32 %v2105, 0.5
    %v2109 = vmax.f32 %v2105, %v2108
    %v2110 = vsel %vm158, %v2109, 0.0
    %v2111 = vrot.slane %v2110, 4
    %v2112 = vadd.f32 %v2110, %v2111
    %v2113 = vrot.slane %v2112, 2
    %v2114 = vadd.f32 %v2112, %v2113
    %v2115 = vrot.slane %v2114, 1
    %v2116 = vadd.f32 %v2114, %v2115
    %v2117 = vmul.f32 %v2109, %v2109
    %v2118 = vsel %vm158, %v2117, 0.0
    %v2119 = vrot.slane %v2118, 4
    %v2120 = vadd.f32 %v2118, %v2119
    %v2121 = vrot.slane %v2120, 2
    %v2122 = vadd.f32 %v2120, %v2121
    %v2123 = vrot.slane %v2122, 1
    %v2124 = vadd.f32 %v2122, %v2123
    %v2125 = vmul.f32 %v2116, 0.125
    %v2126 = vmul.f32 %v2124, 0.125
    %v2127 = vmul.f32 %v2125, %v2125
    %v2128 = vsub.f32 %v2126, %v2127
    %v2129 = vmax.f32 %v2128, 0.0
    %v2130 = vld [vmem:[%s5 + $0x10] sm:$0x1]
    %v2131 = vadd.f32 %v2129, 1e-05
    %v2132 = vrsqrt.pop %v2131
    %v2133 = vmul.f32 %v2130, %v2132
    %v2134 = vld [vmem:[#allocation7 + $0x10] sm:$0x1]
    %v2135 = vmul.f32 %v2133, %v2125
    %v2136 = vsub.f32 %v2134, %v2135
    %v2137 = vlaneseq
    %v2138 = vshrl.u32 %v2137, 7
    %v2139 = vsub.s32 0, %v2138
    %v2140 = vrot.slane %v2133, %v2139
    %v2141 = vmul.f32 %v2109, %v2140
    %v2142 = vlaneseq
    %v2143 = vshrl.u32 %v2142, 7
    %v2144 = vsub.s32 0, %v2143
    %v2145 = vrot.slane %v2136, %v2144
    %v2146 = vadd.f32 %v2141, %v2145
    %s2147 = scalar_lea.vmem [#allocation5], 512
    %v2148 = vld [vmem:[%s2147] sm:$0xff]
    %v2149 = vld [vmem:[%s2147 + $0x8] sm:$0xff]
    %v2150 = vld [vmem:[%s2147 + $0x10] sm:$0xff]
    %v2151 = vld [vmem:[%s2147 + $0x18] sm:$0xff]
    %v2152 = vld [vmem:[%s4 + $0x10] sm:$0x1]
    %v2153 = vlaneseq
    %v2154 = vshrl.u32 %v2153, 7
    %v2155 = vsub.s32 0, %v2154
    %v2156 = vrot.slane %v2152, %v2155
    %v2158 = vsel %vm158, %v2146, 0
    %2160 = vmatprep.subr.mxu0 0.0
    %2161 = vmatpush1.msra.mxu0 %v2148
    %2162 = vmatprep.subr.mxu0 0.0
    %2163 = vmatpush1.msra.mxu0 %v2149
    %2164 = vmatprep.subr.mxu0 0.0
    %2165 = vmatpush1.msra.mxu0 %v2150
    %2166 = vmatprep.subr.mxu0 0.0
    %2167 = vmatpush1.msra.mxu0 %v2151
    %2168 = vmatprep.subr.mxu0 0.0
    %2169 = vmatpush1.msra.mxu0 0.0
    %2170 = vmatprep.subr.mxu0 0.0
    %2171 = vmatpush1.msra.mxu0 0.0
    %2172 = vmatprep.subr.mxu0 0.0
    %2173 = vmatpush1.msra.mxu0 0.0
    %2174 = vmatprep.subr.mxu0 0.0
    %2175 = vmatpush1.msra.mxu0 0.0
    %2176 = vmatprep.subr.mxu0 0.0
    %2177 = vmatpush1.msra.mxu0 0.0
    %2178 = vmatprep.subr.mxu0 0.0
    %2179 = vmatpush1.msra.mxu0 0.0
    %2180 = vmatprep.subr.mxu0 0.0
    %2181 = vmatpush1.msra.mxu0 0.0
    %2182 = vmatprep.subr.mxu0 0.0
    %2183 = vmatpush1.msra.mxu0 0.0
    %2184 = vmatprep.subr.mxu0 0.0
    %2185 = vmatpush1.msra.mxu0 0.0
    %2186 = vmatprep.subr.mxu0 0.0
    %2187 = vmatpush1.msra.mxu0 0.0
    %2188 = vmatprep.subr.mxu0 0.0
    %2189 = vmatpush1.msra.mxu0 0.0
    %2190 = vmatprep.subr.mxu0 0.0
    %2191 = vmatpush1.msra.mxu0 0.0
    %2192 = vmatprep.subr.mxu0 0.0
    %2193 = vmatpush1.msra.mxu0 0.0
    %2194 = vmatprep.subr.mxu0 0.0
    %2195 = vmatpush1.msra.mxu0 0.0
    %2196 = vmatprep.subr.mxu0 0.0
    %2197 = vmatpush1.msra.mxu0 0.0
    %2198 = vmatprep.subr.mxu0 0.0
    %2199 = vmatpush1.msra.mxu0 0.0
    %2200 = vmatprep.subr.mxu0 0.0
    %2201 = vmatpush1.msra.mxu0 0.0
    %2202 = vmatprep.subr.mxu0 0.0
    %2203 = vmatpush1.msra.mxu0 0.0
    %2204 = vmatprep.subr.mxu0 0.0
    %2205 = vmatpush1.msra.mxu0 0.0
    %2206 = vmatprep.subr.mxu0 0.0
    %2207 = vmatpush1.msra.mxu0 0.0
    %2208 = vmatprep.subr.mxu0 0.0
    %2209 = vmatpush1.msra.mxu0 0.0
    %2210 = vmatprep.subr.mxu0 0.0
    %2211 = vmatpush1.msra.mxu0 0.0
    %2212 = vmatprep.subr.mxu0 0.0
    %2213 = vmatpush1.msra.mxu0 0.0
    %2214 = vmatprep.subr.mxu0 0.0
    %2215 = vmatpush1.msra.mxu0 0.0
    %2216 = vmatprep.subr.mxu0 0.0
    %2217 = vmatpush1.msra.mxu0 0.0
    %2218 = vmatprep.subr.mxu0 0.0
    %2219 = vmatpush1.msra.mxu0 0.0
    %2220 = vmatprep.subr.mxu0 0.0
    %2221 = vmatpush1.msra.mxu0 0.0
    %2222 = vmatprep.subr.mxu0 0.0
    %2223 = vmatpush1.msra.mxu0 0.0
    %2224 = vmatprep.mubr.f32.mxu0 0.0
    %2225 = vmatmul.mubr.f32.gmra.mrb[0].mxu0 %v2158
    %v2226 = vpop.f32.mrb[0].mxu0
    %v2227 = vadd.f32 %v2156, %v2226
    %v2228 = vpop.f32.mrb[0].mxu0
    %2229 = vdwg.mxu0
    %v2230 = vmul.f32 %v2227, 0.5
    %v2231 = vmax.f32 %v2227, %v2230
    %v2232 = vsel %vm158, %v2231, 0.0
    %v2233 = vrot.slane %v2232, 4
    %v2234 = vadd.f32 %v2232, %v2233
    %v2235 = vrot.slane %v2234, 2
    %v2236 = vadd.f32 %v2234, %v2235
    %v2237 = vrot.slane %v2236, 1
    %v2238 = vadd.f32 %v2236, %v2237
    %v2239 = vmul.f32 %v2231, %v2231
    %v2240 = vsel %vm158, %v2239, 0.0
    %v2241 = vrot.slane %v2240, 4
    %v2242 = vadd.f32 %v2240, %v2241
    %v2243 = vrot.slane %v2242, 2
    %v2244 = vadd.f32 %v2242, %v2243
    %v2245 = vrot.slane %v2244, 1
    %v2246 = vadd.f32 %v2244, %v2245
    %v2247 = vmul.f32 %v2238, 0.125
    %v2248 = vmul.f32 %v2246, 0.125
    %v2249 = vmul.f32 %v2247, %v2247
    %v2250 = vsub.f32 %v2248, %v2249
    %v2251 = vmax.f32 %v2250, 0.0
    %v2252 = vld [vmem:[%s5 + $0x11] sm:$0x1]
    %v2253 = vadd.f32 %v2251, 1e-05
    %v2254 = vrsqrt.pop %v2253
    %v2255 = vmul.f32 %v2252, %v2254
    %v2256 = vld [vmem:[#allocation7 + $0x11] sm:$0x1]
    %v2257 = vmul.f32 %v2255, %v2247
    %v2258 = vsub.f32 %v2256, %v2257
    %v2259 = vlaneseq
    %v2260 = vshrl.u32 %v2259, 7
    %v2261 = vsub.s32 0, %v2260
    %v2262 = vrot.slane %v2255, %v2261
    %v2263 = vmul.f32 %v2231, %v2262
    %v2264 = vlaneseq
    %v2265 = vshrl.u32 %v2264, 7
    %v2266 = vsub.s32 0, %v2265
    %v2267 = vrot.slane %v2258, %v2266
    %v2268 = vadd.f32 %v2263, %v2267
    %s2269 = scalar_lea.vmem [#allocation5], 544
    %v2270 = vld [vmem:[%s2269] sm:$0xff]
    %v2271 = vld [vmem:[%s2269 + $0x8] sm:$0xff]
    %v2272 = vld [vmem:[%s2269 + $0x10] sm:$0xff]
    %v2273 = vld [vmem:[%s2269 + $0x18] sm:$0xff]
    %v2274 = vld [vmem:[%s4 + $0x11] sm:$0x1]
    %v2275 = vlaneseq
    %v2276 = vshrl.u32 %v2275, 7
    %v2277 = vsub.s32 0, %v2276
    %v2278 = vrot.slane %v2274, %v2277
    %v2280 = vsel %vm158, %v2268, 0
    %2282 = vmatprep.subr.mxu0 0.0
    %2283 = vmatpush1.msra.mxu0 %v2270
    %2284 = vmatprep.subr.mxu0 0.0
    %2285 = vmatpush1.msra.mxu0 %v2271
    %2286 = vmatprep.subr.mxu0 0.0
    %2287 = vmatpush1.msra.mxu0 %v2272
    %2288 = vmatprep.subr.mxu0 0.0
    %2289 = vmatpush1.msra.mxu0 %v2273
    %2290 = vmatprep.subr.mxu0 0.0
    %2291 = vmatpush1.msra.mxu0 0.0
    %2292 = vmatprep.subr.mxu0 0.0
    %2293 = vmatpush1.msra.mxu0 0.0
    %2294 = vmatprep.subr.mxu0 0.0
    %2295 = vmatpush1.msra.mxu0 0.0
    %2296 = vmatprep.subr.mxu0 0.0
    %2297 = vmatpush1.msra.mxu0 0.0
    %2298 = vmatprep.subr.mxu0 0.0
    %2299 = vmatpush1.msra.mxu0 0.0
    %2300 = vmatprep.subr.mxu0 0.0
    %2301 = vmatpush1.msra.mxu0 0.0
    %2302 = vmatprep.subr.mxu0 0.0
    %2303 = vmatpush1.msra.mxu0 0.0
    %2304 = vmatprep.subr.mxu0 0.0
    %2305 = vmatpush1.msra.mxu0 0.0
    %2306 = vmatprep.subr.mxu0 0.0
    %2307 = vmatpush1.msra.mxu0 0.0
    %2308 = vmatprep.subr.mxu0 0.0
    %2309 = vmatpush1.msra.mxu0 0.0
    %2310 = vmatprep.subr.mxu0 0.0
    %2311 = vmatpush1.msra.mxu0 0.0
    %2312 = vmatprep.subr.mxu0 0.0
    %2313 = vmatpush1.msra.mxu0 0.0
    %2314 = vmatprep.subr.mxu0 0.0
    %2315 = vmatpush1.msra.mxu0 0.0
    %2316 = vmatprep.subr.mxu0 0.0
    %2317 = vmatpush1.msra.mxu0 0.0
    %2318 = vmatprep.subr.mxu0 0.0
    %2319 = vmatpush1.msra.mxu0 0.0
    %2320 = vmatprep.subr.mxu0 0.0
    %2321 = vmatpush1.msra.mxu0 0.0
    %2322 = vmatprep.subr.mxu0 0.0
    %2323 = vmatpush1.msra.mxu0 0.0
    %2324 = vmatprep.subr.mxu0 0.0
    %2325 = vmatpush1.msra.mxu0 0.0
    %2326 = vmatprep.subr.mxu0 0.0
    %2327 = vmatpush1.msra.mxu0 0.0
    %2328 = vmatprep.subr.mxu0 0.0
    %2329 = vmatpush1.msra.mxu0 0.0
    %2330 = vmatprep.subr.mxu0 0.0
    %2331 = vmatpush1.msra.mxu0 0.0
    %2332 = vmatprep.subr.mxu0 0.0
    %2333 = vmatpush1.msra.mxu0 0.0
    %2334 = vmatprep.subr.mxu0 0.0
    %2335 = vmatpush1.msra.mxu0 0.0
    %2336 = vmatprep.subr.mxu0 0.0
    %2337 = vmatpush1.msra.mxu0 0.0
    %2338 = vmatprep.subr.mxu0 0.0
    %2339 = vmatpush1.msra.mxu0 0.0
    %2340 = vmatprep.subr.mxu0 0.0
    %2341 = vmatpush1.msra.mxu0 0.0
    %2342 = vmatprep.subr.mxu0 0.0
    %2343 = vmatpush1.msra.mxu0 0.0
    %2344 = vmatprep.subr.mxu0 0.0
    %2345 = vmatpush1.msra.mxu0 0.0
    %2346 = vmatprep.mubr.f32.mxu0 0.0
    %2347 = vmatmul.mubr.f32.gmra.mrb[0].mxu0 %v2280
    %v2348 = vpop.f32.mrb[0].mxu0
    %v2349 = vadd.f32 %v2278, %v2348
    %v2350 = vpop.f32.mrb[0].mxu0
    %2351 = vdwg.mxu0
    %v2352 = vmul.f32 %v2349, 0.5
    %v2353 = vmax.f32 %v2349, %v2352
    %v2354 = vsel %vm158, %v2353, 0.0
    %v2355 = vrot.slane %v2354, 4
    %v2356 = vadd.f32 %v2354, %v2355
    %v2357 = vrot.slane %v2356, 2
    %v2358 = vadd.f32 %v2356, %v2357
    %v2359 = vrot.slane %v2358, 1
    %v2360 = vadd.f32 %v2358, %v2359
    %v2361 = vmul.f32 %v2353, %v2353
    %v2362 = vsel %vm158, %v2361, 0.0
    %v2363 = vrot.slane %v2362, 4
    %v2364 = vadd.f32 %v2362, %v2363
    %v2365 = vrot.slane %v2364, 2
    %v2366 = vadd.f32 %v2364, %v2365
    %v2367 = vrot.slane %v2366, 1
    %v2368 = vadd.f32 %v2366, %v2367
    %v2369 = vmul.f32 %v2360, 0.125
    %v2370 = vmul.f32 %v2368, 0.125
    %v2371 = vmul.f32 %v2369, %v2369
    %v2372 = vsub.f32 %v2370, %v2371
    %v2373 = vmax.f32 %v2372, 0.0
    %v2374 = vld [vmem:[%s5 + $0x12] sm:$0x1]
    %v2375 = vadd.f32 %v2373, 1e-05
    %v2376 = vrsqrt.pop %v2375
    %v2377 = vmul.f32 %v2374, %v2376
    %v2378 = vld [vmem:[#allocation7 + $0x12] sm:$0x1]
    %v2379 = vmul.f32 %v2377, %v2369
    %v2380 = vsub.f32 %v2378, %v2379
    %v2381 = vlaneseq
    %v2382 = vshrl.u32 %v2381, 7
    %v2383 = vsub.s32 0, %v2382
    %v2384 = vrot.slane %v2377, %v2383
    %v2385 = vmul.f32 %v2353, %v2384
    %v2386 = vlaneseq
    %v2387 = vshrl.u32 %v2386, 7
    %v2388 = vsub.s32 0, %v2387
    %v2389 = vrot.slane %v2380, %v2388
    %v2390 = vadd.f32 %v2385, %v2389
    %s2391 = scalar_lea.vmem [#allocation5], 576
    %v2392 = vld [vmem:[%s2391] sm:$0xff]
    %v2393 = vld [vmem:[%s2391 + $0x8] sm:$0xff]
    %v2394 = vld [vmem:[%s2391 + $0x10] sm:$0xff]
    %v2395 = vld [vmem:[%s2391 + $0x18] sm:$0xff]
    %v2396 = vld [vmem:[%s4 + $0x12] sm:$0x1]
    %v2397 = vlaneseq
    %v2398 = vshrl.u32 %v2397, 7
    %v2399 = vsub.s32 0, %v2398
    %v2400 = vrot.slane %v2396, %v2399
    %v2402 = vsel %vm158, %v2390, 0
    %2404 = vmatprep.subr.mxu0 0.0
    %2405 = vmatpush1.msra.mxu0 %v2392
    %2406 = vmatprep.subr.mxu0 0.0
    %2407 = vmatpush1.msra.mxu0 %v2393
    %2408 = vmatprep.subr.mxu0 0.0
    %2409 = vmatpush1.msra.mxu0 %v2394
    %2410 = vmatprep.subr.mxu0 0.0
    %2411 = vmatpush1.msra.mxu0 %v2395
    %2412 = vmatprep.subr.mxu0 0.0
    %2413 = vmatpush1.msra.mxu0 0.0
    %2414 = vmatprep.subr.mxu0 0.0
    %2415 = vmatpush1.msra.mxu0 0.0
    %2416 = vmatprep.subr.mxu0 0.0
    %2417 = vmatpush1.msra.mxu0 0.0
    %2418 = vmatprep.subr.mxu0 0.0
    %2419 = vmatpush1.msra.mxu0 0.0
    %2420 = vmatprep.subr.mxu0 0.0
    %2421 = vmatpush1.msra.mxu0 0.0
    %2422 = vmatprep.subr.mxu0 0.0
    %2423 = vmatpush1.msra.mxu0 0.0
    %2424 = vmatprep.subr.mxu0 0.0
    %2425 = vmatpush1.msra.mxu0 0.0
    %2426 = vmatprep.subr.mxu0 0.0
    %2427 = vmatpush1.msra.mxu0 0.0
    %2428 = vmatprep.subr.mxu0 0.0
    %2429 = vmatpush1.msra.mxu0 0.0
    %2430 = vmatprep.subr.mxu0 0.0
    %2431 = vmatpush1.msra.mxu0 0.0
    %2432 = vmatprep.subr.mxu0 0.0
    %2433 = vmatpush1.msra.mxu0 0.0
    %2434 = vmatprep.subr.mxu0 0.0
    %2435 = vmatpush1.msra.mxu0 0.0
    %2436 = vmatprep.subr.mxu0 0.0
    %2437 = vmatpush1.msra.mxu0 0.0
    %2438 = vmatprep.subr.mxu0 0.0
    %2439 = vmatpush1.msra.mxu0 0.0
    %2440 = vmatprep.subr.mxu0 0.0
    %2441 = vmatpush1.msra.mxu0 0.0
    %2442 = vmatprep.subr.mxu0 0.0
    %2443 = vmatpush1.msra.mxu0 0.0
    %2444 = vmatprep.subr.mxu0 0.0
    %2445 = vmatpush1.msra.mxu0 0.0
    %2446 = vmatprep.subr.mxu0 0.0
    %2447 = vmatpush1.msra.mxu0 0.0
    %2448 = vmatprep.subr.mxu0 0.0
    %2449 = vmatpush1.msra.mxu0 0.0
    %2450 = vmatprep.subr.mxu0 0.0
    %2451 = vmatpush1.msra.mxu0 0.0
    %2452 = vmatprep.subr.mxu0 0.0
    %2453 = vmatpush1.msra.mxu0 0.0
    %2454 = vmatprep.subr.mxu0 0.0
    %2455 = vmatpush1.msra.mxu0 0.0
    %2456 = vmatprep.subr.mxu0 0.0
    %2457 = vmatpush1.msra.mxu0 0.0
    %2458 = vmatprep.subr.mxu0 0.0
    %2459 = vmatpush1.msra.mxu0 0.0
    %2460 = vmatprep.subr.mxu0 0.0
    %2461 = vmatpush1.msra.mxu0 0.0
    %2462 = vmatprep.subr.mxu0 0.0
    %2463 = vmatpush1.msra.mxu0 0.0
    %2464 = vmatprep.subr.mxu0 0.0
    %2465 = vmatpush1.msra.mxu0 0.0
    %2466 = vmatprep.subr.mxu0 0.0
    %2467 = vmatpush1.msra.mxu0 0.0
    %2468 = vmatprep.mubr.f32.mxu0 0.0
    %2469 = vmatmul.mubr.f32.gmra.mrb[0].mxu0 %v2402
    %v2470 = vpop.f32.mrb[0].mxu0
    %v2471 = vadd.f32 %v2400, %v2470
    %v2472 = vpop.f32.mrb[0].mxu0
    %2473 = vdwg.mxu0
    %v2474 = vmul.f32 %v2471, 0.5
    %v2475 = vmax.f32 %v2471, %v2474
    %v2476 = vsel %vm158, %v2475, 0.0
    %v2477 = vrot.slane %v2476, 4
    %v2478 = vadd.f32 %v2476, %v2477
    %v2479 = vrot.slane %v2478, 2
    %v2480 = vadd.f32 %v2478, %v2479
    %v2481 = vrot.slane %v2480, 1
    %v2482 = vadd.f32 %v2480, %v2481
    %v2483 = vmul.f32 %v2475, %v2475
    %v2484 = vsel %vm158, %v2483, 0.0
    %v2485 = vrot.slane %v2484, 4
    %v2486 = vadd.f32 %v2484, %v2485
    %v2487 = vrot.slane %v2486, 2
    %v2488 = vadd.f32 %v2486, %v2487
    %v2489 = vrot.slane %v2488, 1
    %v2490 = vadd.f32 %v2488, %v2489
    %v2491 = vmul.f32 %v2482, 0.125
    %v2492 = vmul.f32 %v2490, 0.125
    %v2493 = vmul.f32 %v2491, %v2491
    %v2494 = vsub.f32 %v2492, %v2493
    %v2495 = vmax.f32 %v2494, 0.0
    %v2496 = vld [vmem:[%s5 + $0x13] sm:$0x1]
    %v2497 = vadd.f32 %v2495, 1e-05
    %v2498 = vrsqrt.pop %v2497
    %v2499 = vmul.f32 %v2496, %v2498
    %v2500 = vld [vmem:[#allocation7 + $0x13] sm:$0x1]
    %v2501 = vmul.f32 %v2499, %v2491
    %v2502 = vsub.f32 %v2500, %v2501
    %v2503 = vlaneseq
    %v2504 = vshrl.u32 %v2503, 7
    %v2505 = vsub.s32 0, %v2504
    %v2506 = vrot.slane %v2499, %v2505
    %v2507 = vmul.f32 %v2475, %v2506
    %v2508 = vlaneseq
    %v2509 = vshrl.u32 %v2508, 7
    %v2510 = vsub.s32 0, %v2509
    %v2511 = vrot.slane %v2502, %v2510
    %v2512 = vadd.f32 %v2507, %v2511
    %s2513 = scalar_lea.vmem [#allocation5], 608
    %v2514 = vld [vmem:[%s2513] sm:$0xff]
    %v2515 = vld [vmem:[%s2513 + $0x8] sm:$0xff]
    %v2516 = vld [vmem:[%s2513 + $0x10] sm:$0xff]
    %v2517 = vld [vmem:[%s2513 + $0x18] sm:$0xff]
    %v2518 = vld [vmem:[%s4 + $0x13] sm:$0x1]
    %v2519 = vlaneseq
    %v2520 = vshrl.u32 %v2519, 7
    %v2521 = vsub.s32 0, %v2520
    %v2522 = vrot.slane %v2518, %v2521
    %v2524 = vsel %vm158, %v2512, 0
    %2526 = vmatprep.subr.mxu0 0.0
    %2527 = vmatpush1.msra.mxu0 %v2514
    %2528 = vmatprep.subr.mxu0 0.0
    %2529 = vmatpush1.msra.mxu0 %v2515
    %2530 = vmatprep.subr.mxu0 0.0
    %2531 = vmatpush1.msra.mxu0 %v2516
    %2532 = vmatprep.subr.mxu0 0.0
    %2533 = vmatpush1.msra.mxu0 %v2517
    %2534 = vmatprep.subr.mxu0 0.0
    %2535 = vmatpush1.msra.mxu0 0.0
    %2536 = vmatprep.subr.mxu0 0.0
    %2537 = vmatpush1.msra.mxu0 0.0
    %2538 = vmatprep.subr.mxu0 0.0
    %2539 = vmatpush1.msra.mxu0 0.0
    %2540 = vmatprep.subr.mxu0 0.0
    %2541 = vmatpush1.msra.mxu0 0.0
    %2542 = vmatprep.subr.mxu0 0.0
    %2543 = vmatpush1.msra.mxu0 0.0
    %2544 = vmatprep.subr.mxu0 0.0
    %2545 = vmatpush1.msra.mxu0 0.0
    %2546 = vmatprep.subr.mxu0 0.0
    %2547 = vmatpush1.msra.mxu0 0.0
    %2548 = vmatprep.subr.mxu0 0.0
    %2549 = vmatpush1.msra.mxu0 0.0
    %2550 = vmatprep.subr.mxu0 0.0
    %2551 = vmatpush1.msra.mxu0 0.0
    %2552 = vmatprep.subr.mxu0 0.0
    %2553 = vmatpush1.msra.mxu0 0.0
    %2554 = vmatprep.subr.mxu0 0.0
    %2555 = vmatpush1.msra.mxu0 0.0
    %2556 = vmatprep.subr.mxu0 0.0
    %2557 = vmatpush1.msra.mxu0 0.0
    %2558 = vmatprep.subr.mxu0 0.0
    %2559 = vmatpush1.msra.mxu0 0.0
    %2560 = vmatprep.subr.mxu0 0.0
    %2561 = vmatpush1.msra.mxu0 0.0
    %2562 = vmatprep.subr.mxu0 0.0
    %2563 = vmatpush1.msra.mxu0 0.0
    %2564 = vmatprep.subr.mxu0 0.0
    %2565 = vmatpush1.msra.mxu0 0.0
    %2566 = vmatprep.subr.mxu0 0.0
    %2567 = vmatpush1.msra.mxu0 0.0
    %2568 = vmatprep.subr.mxu0 0.0
    %2569 = vmatpush1.msra.mxu0 0.0
    %2570 = vmatprep.subr.mxu0 0.0
    %2571 = vmatpush1.msra.mxu0 0.0
    %2572 = vmatprep.subr.mxu0 0.0
    %2573 = vmatpush1.msra.mxu0 0.0
    %2574 = vmatprep.subr.mxu0 0.0
    %2575 = vmatpush1.msra.mxu0 0.0
    %2576 = vmatprep.subr.mxu0 0.0
    %2577 = vmatpush1.msra.mxu0 0.0
    %2578 = vmatprep.subr.mxu0 0.0
    %2579 = vmatpush1.msra.mxu0 0.0
    %2580 = vmatprep.subr.mxu0 0.0
    %2581 = vmatpush1.msra.mxu0 0.0
    %2582 = vmatprep.subr.mxu0 0.0
    %2583 = vmatpush1.msra.mxu0 0.0
    %2584 = vmatprep.subr.mxu0 0.0
    %2585 = vmatpush1.msra.mxu0 0.0
    %2586 = vmatprep.subr.mxu0 0.0
    %2587 = vmatpush1.msra.mxu0 0.0
    %2588 = vmatprep.subr.mxu0 0.0
    %2589 = vmatpush1.msra.mxu0 0.0
    %2590 = vmatprep.mubr.f32.mxu0 0.0
    %2591 = vmatmul.mubr.f32.gmra.mrb[0].mxu0 %v2524
    %v2592 = vpop.f32.mrb[0].mxu0
    %v2593 = vadd.f32 %v2522, %v2592
    %v2594 = vpop.f32.mrb[0].mxu0
    %2595 = vdwg.mxu0
    %v2596 = vmul.f32 %v2593, 0.5
    %v2597 = vmax.f32 %v2593, %v2596
    %s2598 = scalar_lea.vmem [#allocation5], 640
    %v2599 = vld [vmem:[%s2598] sm:$0xff]
    %v2600 = vld [vmem:[%s2598 + $0x8] sm:$0xff]
    %v2601 = vld [vmem:[%s2598 + $0x10] sm:$0xff]
    %v2602 = vld [vmem:[%s2598 + $0x18] sm:$0xff]
    %v2603 = vld [vmem:[%s4 + $0x14] sm:$0x1]
    %v2604 = vlaneseq
    %v2605 = vshrl.u32 %v2604, 7
    %v2606 = vsub.s32 0, %v2605
    %v2607 = vrot.slane %v2603, %v2606
    %v2609 = vsel %vm158, %v2597, 0
    %2611 = vmatprep.subr.mxu0 0.0
    %2612 = vmatpush1.msra.mxu0 %v2599
    %2613 = vmatprep.subr.mxu0 0.0
    %2614 = vmatpush1.msra.mxu0 %v2600
    %2615 = vmatprep.subr.mxu0 0.0
    %2616 = vmatpush1.msra.mxu0 %v2601
    %2617 = vmatprep.subr.mxu0 0.0
    %2618 = vmatpush1.msra.mxu0 %v2602
    %2619 = vmatprep.subr.mxu0 0.0
    %2620 = vmatpush1.msra.mxu0 0.0
    %2621 = vmatprep.subr.mxu0 0.0
    %2622 = vmatpush1.msra.mxu0 0.0
    %2623 = vmatprep.subr.mxu0 0.0
    %2624 = vmatpush1.msra.mxu0 0.0
    %2625 = vmatprep.subr.mxu0 0.0
    %2626 = vmatpush1.msra.mxu0 0.0
    %2627 = vmatprep.subr.mxu0 0.0
    %2628 = vmatpush1.msra.mxu0 0.0
    %2629 = vmatprep.subr.mxu0 0.0
    %2630 = vmatpush1.msra.mxu0 0.0
    %2631 = vmatprep.subr.mxu0 0.0
    %2632 = vmatpush1.msra.mxu0 0.0
    %2633 = vmatprep.subr.mxu0 0.0
    %2634 = vmatpush1.msra.mxu0 0.0
    %2635 = vmatprep.subr.mxu0 0.0
    %2636 = vmatpush1.msra.mxu0 0.0
    %2637 = vmatprep.subr.mxu0 0.0
    %2638 = vmatpush1.msra.mxu0 0.0
    %2639 = vmatprep.subr.mxu0 0.0
    %2640 = vmatpush1.msra.mxu0 0.0
    %2641 = vmatprep.subr.mxu0 0.0
    %2642 = vmatpush1.msra.mxu0 0.0
    %2643 = vmatprep.subr.mxu0 0.0
    %2644 = vmatpush1.msra.mxu0 0.0
    %2645 = vmatprep.subr.mxu0 0.0
    %2646 = vmatpush1.msra.mxu0 0.0
    %2647 = vmatprep.subr.mxu0 0.0
    %2648 = vmatpush1.msra.mxu0 0.0
    %2649 = vmatprep.subr.mxu0 0.0
    %2650 = vmatpush1.msra.mxu0 0.0
    %2651 = vmatprep.subr.mxu0 0.0
    %2652 = vmatpush1.msra.mxu0 0.0
    %2653 = vmatprep.subr.mxu0 0.0
    %2654 = vmatpush1.msra.mxu0 0.0
    %2655 = vmatprep.subr.mxu0 0.0
    %2656 = vmatpush1.msra.mxu0 0.0
    %2657 = vmatprep.subr.mxu0 0.0
    %2658 = vmatpush1.msra.mxu0 0.0
    %2659 = vmatprep.subr.mxu0 0.0
    %2660 = vmatpush1.msra.mxu0 0.0
    %2661 = vmatprep.subr.mxu0 0.0
    %2662 = vmatpush1.msra.mxu0 0.0
    %2663 = vmatprep.subr.mxu0 0.0
    %2664 = vmatpush1.msra.mxu0 0.0
    %2665 = vmatprep.subr.mxu0 0.0
    %2666 = vmatpush1.msra.mxu0 0.0
    %2667 = vmatprep.subr.mxu0 0.0
    %2668 = vmatpush1.msra.mxu0 0.0
    %2669 = vmatprep.subr.mxu0 0.0
    %2670 = vmatpush1.msra.mxu0 0.0
    %2671 = vmatprep.subr.mxu0 0.0
    %2672 = vmatpush1.msra.mxu0 0.0
    %2673 = vmatprep.subr.mxu0 0.0
    %2674 = vmatpush1.msra.mxu0 0.0
    %2675 = vmatprep.mubr.f32.mxu0 0.0
    %2676 = vmatmul.mubr.f32.gmra.mrb[0].mxu0 %v2609
    %v2677 = vpop.f32.mrb[0].mxu0
    %v2678 = vadd.f32 %v2607, %v2677
    %v2679 = vpop.f32.mrb[0].mxu0
    %2680 = vdwg.mxu0
    %v2681 = vmul.f32 %v2678, 0.5
    %v2682 = vmax.f32 %v2678, %v2681
    %s2683 = scalar_lea.vmem [#allocation5], 672
    %v2684 = vld [vmem:[%s2683] sm:$0xff]
    %v2685 = vld [vmem:[%s2683 + $0x8] sm:$0xff]
    %v2686 = vld [vmem:[%s2683 + $0x10] sm:$0xff]
    %v2687 = vld [vmem:[%s2683 + $0x18] sm:$0xff]
    %v2688 = vld [vmem:[%s4 + $0x15] sm:$0x1]
    %v2689 = vlaneseq
    %v2690 = vshrl.u32 %v2689, 7
    %v2691 = vsub.s32 0, %v2690
    %v2692 = vrot.slane %v2688, %v2691
    %v2694 = vsel %vm158, %v2682, 0
    %2696 = vmatprep.subr.mxu0 0.0
    %2697 = vmatpush1.msra.mxu0 %v2684
    %2698 = vmatprep.subr.mxu0 0.0
    %2699 = vmatpush1.msra.mxu0 %v2685
    %2700 = vmatprep.subr.mxu0 0.0
    %2701 = vmatpush1.msra.mxu0 %v2686
    %2702 = vmatprep.subr.mxu0 0.0
    %2703 = vmatpush1.msra.mxu0 %v2687
    %2704 = vmatprep.subr.mxu0 0.0
    %2705 = vmatpush1.msra.mxu0 0.0
    %2706 = vmatprep.subr.mxu0 0.0
    %2707 = vmatpush1.msra.mxu0 0.0
    %2708 = vmatprep.subr.mxu0 0.0
    %2709 = vmatpush1.msra.mxu0 0.0
    %2710 = vmatprep.subr.mxu0 0.0
    %2711 = vmatpush1.msra.mxu0 0.0
    %2712 = vmatprep.subr.mxu0 0.0
    %2713 = vmatpush1.msra.mxu0 0.0
    %2714 = vmatprep.subr.mxu0 0.0
    %2715 = vmatpush1.msra.mxu0 0.0
    %2716 = vmatprep.subr.mxu0 0.0
    %2717 = vmatpush1.msra.mxu0 0.0
    %2718 = vmatprep.subr.mxu0 0.0
    %2719 = vmatpush1.msra.mxu0 0.0
    %2720 = vmatprep.subr.mxu0 0.0
    %2721 = vmatpush1.msra.mxu0 0.0
    %2722 = vmatprep.subr.mxu0 0.0
    %2723 = vmatpush1.msra.mxu0 0.0
    %2724 = vmatprep.subr.mxu0 0.0
    %2725 = vmatpush1.msra.mxu0 0.0
    %2726 = vmatprep.subr.mxu0 0.0
    %2727 = vmatpush1.msra.mxu0 0.0
    %2728 = vmatprep.subr.mxu0 0.0
    %2729 = vmatpush1.msra.mxu0 0.0
    %2730 = vmatprep.subr.mxu0 0.0
    %2731 = vmatpush1.msra.mxu0 0.0
    %2732 = vmatprep.subr.mxu0 0.0
    %2733 = vmatpush1.msra.mxu0 0.0
    %2734 = vmatprep.subr.mxu0 0.0
    %2735 = vmatpush1.msra.mxu0 0.0
    %2736 = vmatprep.subr.mxu0 0.0
    %2737 = vmatpush1.msra.mxu0 0.0
    %2738 = vmatprep.subr.mxu0 0.0
    %2739 = vmatpush1.msra.mxu0 0.0
    %2740 = vmatprep.subr.mxu0 0.0
    %2741 = vmatpush1.msra.mxu0 0.0
    %2742 = vmatprep.subr.mxu0 0.0
    %2743 = vmatpush1.msra.mxu0 0.0
    %2744 = vmatprep.subr.mxu0 0.0
    %2745 = vmatpush1.msra.mxu0 0.0
    %2746 = vmatprep.subr.mxu0 0.0
    %2747 = vmatpush1.msra.mxu0 0.0
    %2748 = vmatprep.subr.mxu0 0.0
    %2749 = vmatpush1.msra.mxu0 0.0
    %2750 = vmatprep.subr.mxu0 0.0
    %2751 = vmatpush1.msra.mxu0 0.0
    %2752 = vmatprep.subr.mxu0 0.0
    %2753 = vmatpush1.msra.mxu0 0.0
    %2754 = vmatprep.subr.mxu0 0.0
    %2755 = vmatpush1.msra.mxu0 0.0
    %2756 = vmatprep.subr.mxu0 0.0
    %2757 = vmatpush1.msra.mxu0 0.0
    %2758 = vmatprep.subr.mxu0 0.0
    %2759 = vmatpush1.msra.mxu0 0.0
    %2760 = vmatprep.mubr.f32.mxu0 0.0
    %2761 = vmatmul.mubr.f32.gmra.mrb[0].mxu0 %v2694
    %v2762 = vpop.f32.mrb[0].mxu0
    %v2763 = vadd.f32 %v2692, %v2762
    %v2764 = vpop.f32.mrb[0].mxu0
    %2765 = vdwg.mxu0
    %v2766 = vmul.f32 %v2763, 0.5
    %v2767 = vmax.f32 %v2763, %v2766
    %s2768 = scalar_lea.vmem [#allocation5], 704
    %v2769 = vld [vmem:[%s2768] sm:$0xff]
    %v2770 = vld [vmem:[%s2768 + $0x8] sm:$0xff]
    %v2771 = vld [vmem:[%s2768 + $0x10] sm:$0xff]
    %v2772 = vld [vmem:[%s2768 + $0x18] sm:$0xff]
    %v2773 = vld [vmem:[%s4 + $0x16] sm:$0x1]
    %v2774 = vlaneseq
    %v2775 = vshrl.u32 %v2774, 7
    %v2776 = vsub.s32 0, %v2775
    %v2777 = vrot.slane %v2773, %v2776
    %v2779 = vsel %vm158, %v2767, 0
    %2781 = vmatprep.subr.mxu0 0.0
    %2782 = vmatpush1.msra.mxu0 %v2769
    %2783 = vmatprep.subr.mxu0 0.0
    %2784 = vmatpush1.msra.mxu0 %v2770
    %2785 = vmatprep.subr.mxu0 0.0
    %2786 = vmatpush1.msra.mxu0 %v2771
    %2787 = vmatprep.subr.mxu0 0.0
    %2788 = vmatpush1.msra.mxu0 %v2772
    %2789 = vmatprep.subr.mxu0 0.0
    %2790 = vmatpush1.msra.mxu0 0.0
    %2791 = vmatprep.subr.mxu0 0.0
    %2792 = vmatpush1.msra.mxu0 0.0
    %2793 = vmatprep.subr.mxu0 0.0
    %2794 = vmatpush1.msra.mxu0 0.0
    %2795 = vmatprep.subr.mxu0 0.0
    %2796 = vmatpush1.msra.mxu0 0.0
    %2797 = vmatprep.subr.mxu0 0.0
    %2798 = vmatpush1.msra.mxu0 0.0
    %2799 = vmatprep.subr.mxu0 0.0
    %2800 = vmatpush1.msra.mxu0 0.0
    %2801 = vmatprep.subr.mxu0 0.0
    %2802 = vmatpush1.msra.mxu0 0.0
    %2803 = vmatprep.subr.mxu0 0.0
    %2804 = vmatpush1.msra.mxu0 0.0
    %2805 = vmatprep.subr.mxu0 0.0
    %2806 = vmatpush1.msra.mxu0 0.0
    %2807 = vmatprep.subr.mxu0 0.0
    %2808 = vmatpush1.msra.mxu0 0.0
    %2809 = vmatprep.subr.mxu0 0.0
    %2810 = vmatpush1.msra.mxu0 0.0
    %2811 = vmatprep.subr.mxu0 0.0
    %2812 = vmatpush1.msra.mxu0 0.0
    %2813 = vmatprep.subr.mxu0 0.0
    %2814 = vmatpush1.msra.mxu0 0.0
    %2815 = vmatprep.subr.mxu0 0.0
    %2816 = vmatpush1.msra.mxu0 0.0
    %2817 = vmatprep.subr.mxu0 0.0
    %2818 = vmatpush1.msra.mxu0 0.0
    %2819 = vmatprep.subr.mxu0 0.0
    %2820 = vmatpush1.msra.mxu0 0.0
    %2821 = vmatprep.subr.mxu0 0.0
    %2822 = vmatpush1.msra.mxu0 0.0
    %2823 = vmatprep.subr.mxu0 0.0
    %2824 = vmatpush1.msra.mxu0 0.0
    %2825 = vmatprep.subr.mxu0 0.0
    %2826 = vmatpush1.msra.mxu0 0.0
    %2827 = vmatprep.subr.mxu0 0.0
    %2828 = vmatpush1.msra.mxu0 0.0
    %2829 = vmatprep.subr.mxu0 0.0
    %2830 = vmatpush1.msra.mxu0 0.0
    %2831 = vmatprep.subr.mxu0 0.0
    %2832 = vmatpush1.msra.mxu0 0.0
    %2833 = vmatprep.subr.mxu0 0.0
    %2834 = vmatpush1.msra.mxu0 0.0
    %2835 = vmatprep.subr.mxu0 0.0
    %2836 = vmatpush1.msra.mxu0 0.0
    %2837 = vmatprep.subr.mxu0 0.0
    %2838 = vmatpush1.msra.mxu0 0.0
    %2839 = vmatprep.subr.mxu0 0.0
    %2840 = vmatpush1.msra.mxu0 0.0
    %2841 = vmatprep.subr.mxu0 0.0
    %2842 = vmatpush1.msra.mxu0 0.0
    %2843 = vmatprep.subr.mxu0 0.0
    %2844 = vmatpush1.msra.mxu0 0.0
    %2845 = vmatprep.mubr.f32.mxu0 0.0
    %2846 = vmatmul.mubr.f32.gmra.mrb[0].mxu0 %v2779
    %v2847 = vpop.f32.mrb[0].mxu0
    %v2848 = vadd.f32 %v2777, %v2847
    %v2849 = vpop.f32.mrb[0].mxu0
    %2850 = vdwg.mxu0
    %v2851 = vmul.f32 %v2848, 0.5
    %v2852 = vmax.f32 %v2848, %v2851
    %s2853 = scalar_lea.vmem [#allocation5], 736
    %v2854 = vld [vmem:[%s2853] sm:$0xff]
    %v2855 = vld [vmem:[%s2853 + $0x8] sm:$0xff]
    %v2856 = vld [vmem:[%s2853 + $0x10] sm:$0xff]
    %v2857 = vld [vmem:[%s2853 + $0x18] sm:$0xff]
    %v2858 = vld [vmem:[%s4 + $0x17] sm:$0x1]
    %v2859 = vlaneseq
    %v2860 = vshrl.u32 %v2859, 7
    %v2861 = vsub.s32 0, %v2860
    %v2862 = vrot.slane %v2858, %v2861
    %v2864 = vsel %vm158, %v2852, 0
    %2866 = vmatprep.subr.mxu0 0.0
    %2867 = vmatpush1.msra.mxu0 %v2854
    %2868 = vmatprep.subr.mxu0 0.0
    %2869 = vmatpush1.msra.mxu0 %v2855
    %2870 = vmatprep.subr.mxu0 0.0
    %2871 = vmatpush1.msra.mxu0 %v2856
    %2872 = vmatprep.subr.mxu0 0.0
    %2873 = vmatpush1.msra.mxu0 %v2857
    %2874 = vmatprep.subr.mxu0 0.0
    %2875 = vmatpush1.msra.mxu0 0.0
    %2876 = vmatprep.subr.mxu0 0.0
    %2877 = vmatpush1.msra.mxu0 0.0
    %2878 = vmatprep.subr.mxu0 0.0
    %2879 = vmatpush1.msra.mxu0 0.0
    %2880 = vmatprep.subr.mxu0 0.0
    %2881 = vmatpush1.msra.mxu0 0.0
    %2882 = vmatprep.subr.mxu0 0.0
    %2883 = vmatpush1.msra.mxu0 0.0
    %2884 = vmatprep.subr.mxu0 0.0
    %2885 = vmatpush1.msra.mxu0 0.0
    %2886 = vmatprep.subr.mxu0 0.0
    %2887 = vmatpush1.msra.mxu0 0.0
    %2888 = vmatprep.subr.mxu0 0.0
    %2889 = vmatpush1.msra.mxu0 0.0
    %2890 = vmatprep.subr.mxu0 0.0
    %2891 = vmatpush1.msra.mxu0 0.0
    %2892 = vmatprep.subr.mxu0 0.0
    %2893 = vmatpush1.msra.mxu0 0.0
    %2894 = vmatprep.subr.mxu0 0.0
    %2895 = vmatpush1.msra.mxu0 0.0
    %2896 = vmatprep.subr.mxu0 0.0
    %2897 = vmatpush1.msra.mxu0 0.0
    %2898 = vmatprep.subr.mxu0 0.0
    %2899 = vmatpush1.msra.mxu0 0.0
    %2900 = vmatprep.subr.mxu0 0.0
    %2901 = vmatpush1.msra.mxu0 0.0
    %2902 = vmatprep.subr.mxu0 0.0
    %2903 = vmatpush1.msra.mxu0 0.0
    %2904 = vmatprep.subr.mxu0 0.0
    %2905 = vmatpush1.msra.mxu0 0.0
    %2906 = vmatprep.subr.mxu0 0.0
    %2907 = vmatpush1.msra.mxu0 0.0
    %2908 = vmatprep.subr.mxu0 0.0
    %2909 = vmatpush1.msra.mxu0 0.0
    %2910 = vmatprep.subr.mxu0 0.0
    %2911 = vmatpush1.msra.mxu0 0.0
    %2912 = vmatprep.subr.mxu0 0.0
    %2913 = vmatpush1.msra.mxu0 0.0
    %2914 = vmatprep.subr.mxu0 0.0
    %2915 = vmatpush1.msra.mxu0 0.0
    %2916 = vmatprep.subr.mxu0 0.0
    %2917 = vmatpush1.msra.mxu0 0.0
    %2918 = vmatprep.subr.mxu0 0.0
    %2919 = vmatpush1.msra.mxu0 0.0
    %2920 = vmatprep.subr.mxu0 0.0
    %2921 = vmatpush1.msra.mxu0 0.0
    %2922 = vmatprep.subr.mxu0 0.0
    %2923 = vmatpush1.msra.mxu0 0.0
    %2924 = vmatprep.subr.mxu0 0.0
    %2925 = vmatpush1.msra.mxu0 0.0
    %2926 = vmatprep.subr.mxu0 0.0
    %2927 = vmatpush1.msra.mxu0 0.0
    %2928 = vmatprep.subr.mxu0 0.0
    %2929 = vmatpush1.msra.mxu0 0.0
    %2930 = vmatprep.mubr.f32.mxu0 0.0
    %2931 = vmatmul.mubr.f32.gmra.mrb[0].mxu0 %v2864
    %v2932 = vpop.f32.mrb[0].mxu0
    %v2933 = vadd.f32 %v2862, %v2932
    %v2934 = vpop.f32.mrb[0].mxu0
    %2935 = vdwg.mxu0
    %v2936 = vmul.f32 %v2933, 0.5
    %v2937 = vmax.f32 %v2933, %v2936
    %v2938 = vld [vmem:[%s7] sm:$0xff]
    %v2939 = vld [vmem:[%s7 + $0x8] sm:$0xff]
    %v2940 = vld [vmem:[%s7 + $0x10] sm:$0xff]
    %v2941 = vld [vmem:[%s7 + $0x18] sm:$0xff]
    %v2942 = vld [vmem:[%s8] sm:$0x1]
    %v2944 = vlaneseq
    %v2945 = vshrl.u32 %v2944, 7
    %v2946 = vsub.s32 0, %v2945
    %v2947 = vrot.slane %v2942, %v2946
    %v2950 = vsel %vm158, %v2937, 0
    %2952 = vmatprep.subr.mxu0 0.0
    %2953 = vmatpush1.msra.mxu0 %v2938
    %2954 = vmatprep.subr.mxu0 0.0
    %2955 = vmatpush1.msra.mxu0 %v2939
    %2956 = vmatprep.subr.mxu0 0.0
    %2957 = vmatpush1.msra.mxu0 %v2940
    %2958 = vmatprep.subr.mxu0 0.0
    %2959 = vmatpush1.msra.mxu0 %v2941
    %2960 = vmatprep.subr.mxu0 0.0
    %2961 = vmatpush1.msra.mxu0 0.0
    %2962 = vmatprep.subr.mxu0 0.0
    %2963 = vmatpush1.msra.mxu0 0.0
    %2964 = vmatprep.subr.mxu0 0.0
    %2965 = vmatpush1.msra.mxu0 0.0
    %2966 = vmatprep.subr.mxu0 0.0
    %2967 = vmatpush1.msra.mxu0 0.0
    %2968 = vmatprep.subr.mxu0 0.0
    %2969 = vmatpush1.msra.mxu0 0.0
    %2970 = vmatprep.subr.mxu0 0.0
    %2971 = vmatpush1.msra.mxu0 0.0
    %2972 = vmatprep.subr.mxu0 0.0
    %2973 = vmatpush1.msra.mxu0 0.0
    %2974 = vmatprep.subr.mxu0 0.0
    %2975 = vmatpush1.msra.mxu0 0.0
    %2976 = vmatprep.subr.mxu0 0.0
    %2977 = vmatpush1.msra.mxu0 0.0
    %2978 = vmatprep.subr.mxu0 0.0
    %2979 = vmatpush1.msra.mxu0 0.0
    %2980 = vmatprep.subr.mxu0 0.0
    %2981 = vmatpush1.msra.mxu0 0.0
    %2982 = vmatprep.subr.mxu0 0.0
    %2983 = vmatpush1.msra.mxu0 0.0
    %2984 = vmatprep.subr.mxu0 0.0
    %2985 = vmatpush1.msra.mxu0 0.0
    %2986 = vmatprep.subr.mxu0 0.0
    %2987 = vmatpush1.msra.mxu0 0.0
    %2988 = vmatprep.subr.mxu0 0.0
    %2989 = vmatpush1.msra.mxu0 0.0
    %2990 = vmatprep.subr.mxu0 0.0
    %2991 = vmatpush1.msra.mxu0 0.0
    %2992 = vmatprep.subr.mxu0 0.0
    %2993 = vmatpush1.msra.mxu0 0.0
    %2994 = vmatprep.subr.mxu0 0.0
    %2995 = vmatpush1.msra.mxu0 0.0
    %2996 = vmatprep.subr.mxu0 0.0
    %2997 = vmatpush1.msra.mxu0 0.0
    %2998 = vmatprep.subr.mxu0 0.0
    %2999 = vmatpush1.msra.mxu0 0.0
    %3000 = vmatprep.subr.mxu0 0.0
    %3001 = vmatpush1.msra.mxu0 0.0
    %3002 = vmatprep.subr.mxu0 0.0
    %3003 = vmatpush1.msra.mxu0 0.0
    %3004 = vmatprep.subr.mxu0 0.0
    %3005 = vmatpush1.msra.mxu0 0.0
    %3006 = vmatprep.subr.mxu0 0.0
    %3007 = vmatpush1.msra.mxu0 0.0
    %3008 = vmatprep.subr.mxu0 0.0
    %3009 = vmatpush1.msra.mxu0 0.0
    %3010 = vmatprep.subr.mxu0 0.0
    %3011 = vmatpush1.msra.mxu0 0.0
    %3012 = vmatprep.subr.mxu0 0.0
    %3013 = vmatpush1.msra.mxu0 0.0
    %3014 = vmatprep.subr.mxu0 0.0
    %3015 = vmatpush1.msra.mxu0 0.0
    %3016 = vmatprep.mubr.f32.mxu0 0.0
    %3017 = vmatmul.mubr.f32.gmra.mrb[0].mxu0 %v2950
    %v3018 = vpop.f32.mrb[0].mxu0
    %v3019 = vadd.f32 %v2947, %v3018
    %v3020 = vpop.f32.mrb[0].mxu0
    %3021 = vdwg.mxu0
    %3022 = vst.msk [vmem:[#allocation8] sm:$0xff] %vm82, %v3019
    // Predicated region
    $region50: #{h_hat_forward.1} parent=1 // pred_check
      _
    $region51: #{h_hat_forward.1} parent=1 // pred_check_branch
      %3024 = sbr.rel (0) target = $region53
    $region52: #{h_hat_forward.1} parent=1 // pred_region
      %s3026 = ssub.s32 128, 128
      %3027 = vsyncadd [#allocation4], %s3026
      %s3029 = sshll.u32 [#allocation8], 4
      %s3030 = int_to_ptr.vmem [resolvable:$true] %s3029
      %3032 = dma.vmem_to_hbm [thread:$0]  %s3030, 128, %s9, [#allocation4]
    $region53: #{h_hat_forward.1} parent=1 // pred_fallthru
      _
    // Predicated region
    $region54: #{h_hat_forward.1} parent=1 // pred_check
      _
    $region55: #{h_hat_forward.1} parent=1 // pred_check_branch
      %3034 = sbr.rel (0) target = $region57
    $region56: #{h_hat_forward.1} parent=1 // pred_region
      %3035 = dma.done [#allocation4], 128
    $region57: #{h_hat_forward.1} parent=1 // pred_fallthru
      _
    %3036 = vsyncpa [#allocation3], 1
    %3037 = vsyncpa [#allocation6], 1
    %3038 = vsyncpa [#allocation4], 1

</llo_original>
